<compile_context>
chip_gen: v5e
topology: v5e:2x2
jax: 0.10.0
libtpu: 0.0.40
codegen_flags: <defaults>
</compile_context>

<pallas_src>
import math
import functools

import jax
import jax.numpy as jnp
from jax import lax
from jax.experimental import pallas as pl
from jax.experimental.pallas import tpu as pltpu


def _round_up(x, m):
    return ((x + m - 1) // m) * m


# ----------------------- Fused QKV-projection + attention kernel -----------------------
def _fused_self_attention_kernel(x_ref, w_ref, b_ref, mask_ref, ctx_ref, probs_ref, *,
                                 scale, num_heads, head_dim, approx_recip):
    """One grid step = one batch element."""
    w = w_ref[...]                                   # [H, 3H]  (f32 or bf16, resident)
    x = x_ref[0].astype(w.dtype)                     # [S_pad, H]
    # Fused Q|K|V projection: one pass of x through the MXU, f32 accumulation + f32 bias.
    qkv = jnp.dot(x, w, preferred_element_type=jnp.float32) + b_ref[...]   # [S_pad, 3H]
    qkv = qkv.astype(w.dtype)                        # MXU operand dtype for attention
    m = mask_ref[0, 0]                               # [1, S_pad] additive mask (broadcasts)

    H = num_heads * head_dim
    ctx_parts = []
    for h in range(num_heads):                       # static, small unrolled loop
        lo, hi = h * head_dim, (h + 1) * head_dim
        qh = qkv[:, lo:hi]                           # [S_pad, D]
        kh = qkv[:, H + lo:H + hi]                   # [S_pad, D]
        vh = qkv[:, 2 * H + lo:2 * H + hi]           # [S_pad, D]
        # scores [S_pad, S_pad]: contract head_dim of q with head_dim of k (no explicit k.T).
        s = lax.dot_general(qh, kh, (((1,), (1,)), ((), ())),
                            preferred_element_type=jnp.float32)
        s = s * scale + m
        smax = jnp.max(s, axis=-1, keepdims=True)
        e = jnp.exp(s - smax)
        p = e * pl.reciprocal(jnp.sum(e, axis=-1, keepdims=True), approx=approx_recip)
        probs_ref[0, h] = p.astype(probs_ref.dtype)  # full 128-lane-dense store
        ctx_parts.append(lax.dot_general(p.astype(vh.dtype), vh,
                                         (((1,), (0,)), ((), ())),
                                         preferred_element_type=jnp.float32))
    # Single full-tile (lane-dense) store instead of per-head 32-lane partial stores.
    ctx_ref[0] = jnp.concatenate(ctx_parts, axis=-1).astype(ctx_ref.dtype)


# ---------------------------------- Parameter prep ------------------------------------
def prepare_self_attention_params(params, *, precise=True):
    """One-time weight prep (hoisted out of the per-step forward).

    nn.Linear stores weight as [out, in]; y = x @ W.T + b.  Concatenate the three
    projections into one [H, 3H] weight so x streams through the MXU once.
    """
    compute_dtype = jnp.float32 if precise else jnp.bfloat16
    w_qkv = jnp.concatenate([params["wq"].T, params["wk"].T, params["wv"].T],
                            axis=1).astype(compute_dtype)
    h3 = w_qkv.shape[1]
    b_qkv = jnp.concatenate([params["bq"], params["bk"], params["bv"]]
                            ).reshape(1, h3).astype(jnp.float32)
    return {"w_qkv": w_qkv, "b_qkv": b_qkv}


# ------------------------------------ Forward wrapper ----------------------------------
def self_attention_forward(hidden_states, attention_mask, prepared, num_attention_heads,
                           *, precise=True):
    """SelfAttention.forward: hidden_states [B,S,H], attention_mask [B,1,1,S] (additive).

    precise=True  -> f32 MXU operands, exact reciprocal, f32 ctx/probs (module numerics).
    precise=False -> bf16 MXU operands / bf16 qkv / bf16 ctx + probs writeback / approx
                     reciprocal (perf path; accumulation stays f32).
    Returns (context_layer [B,S,H], attention_probs [B,NH,S,S]).
    """
    B, S, H = hidden_states.shape
    NH = num_attention_heads
    if H % NH != 0:
        raise ValueError(f"hidden size {H} not a multiple of num heads {NH}")
    D = H // NH
    w_qkv, b_qkv = prepared["w_qkv"], prepared["b_qkv"]
    H3 = w_qkv.shape[1]
    compute_dtype = jnp.float32 if precise else jnp.bfloat16
    out_dtype = compute_dtype

    # Pad the sequence axis to a 128-lane-dense length.  Padded keys get -1e4 in the
    # additive mask (exp underflows to 0); padded query rows are sliced away below.
    S_pad = max(_round_up(S, 128), 128)
    x = hidden_states.astype(compute_dtype)
    attention_mask = attention_mask.astype(jnp.float32)
    if S_pad != S:
        x = jnp.pad(x, ((0, 0), (0, S_pad - S), (0, 0)))
        attention_mask = jnp.pad(attention_mask,
                                 ((0, 0), (0, 0), (0, 0), (0, S_pad - S)),
                                 constant_values=-10000.0)

    # VMEM guard: per-step working set (v7x: 64 MiB physical / 32 MiB scoped default).
    c = jnp.dtype(compute_dtype).itemsize
    o = jnp.dtype(out_dtype).itemsize
    blocks = (S_pad * H * c + H * H3 * c + H3 * 4 + S_pad * 4
              + S_pad * H * o + NH * S_pad * S_pad * o)
    scratch = S_pad * H3 * 4 + S_pad * S_pad * 4 + S_pad * H * 4
    vmem_estimate = 2 * blocks + scratch            # 2x: BlockSpec double-buffering
    if vmem_estimate > 24 * 1024 * 1024:
        # TODO(synk): for long sequences, switch to a flash-style key-tiled online-softmax
        #             kernel with tiled tq instead of the full-S-resident form.
        raise NotImplementedError("working set too large for the fused full-S kernel")

    scale = 1.0 / math.sqrt(D)
    kernel = functools.partial(_fused_self_attention_kernel, scale=scale,
                               num_heads=NH, head_dim=D, approx_recip=not precise)

    ctx_pad, probs_pad = pl.pallas_call(
        kernel,
        out_shape=(jax.ShapeDtypeStruct((B, S_pad, H), out_dtype),
                   jax.ShapeDtypeStruct((B, NH, S_pad, S_pad), out_dtype)),
        grid_spec=pltpu.PrefetchScalarGridSpec(
            num_scalar_prefetch=0,
            grid=(B,),
            in_specs=[
                pl.BlockSpec((1, S_pad, H), lambda b: (b, 0, 0)),        # x
                pl.BlockSpec((H, H3), lambda b: (0, 0)),                 # weight resident
                pl.BlockSpec((1, H3), lambda b: (0, 0)),                 # bias resident
                pl.BlockSpec((1, 1, 1, S_pad), lambda b: (b, 0, 0, 0)),  # additive mask
            ],
            out_specs=[
                pl.BlockSpec((1, S_pad, H), lambda b: (b, 0, 0)),
                pl.BlockSpec((1, NH, S_pad, S_pad), lambda b: (b, 0, 0, 0)),
            ],
        ),
        compiler_params=pltpu.CompilerParams(
            dimension_semantics=("parallel",),        # one batch per TC on v7x
            vmem_limit_bytes=32 * 1024 * 1024),
    )(x, w_qkv, b_qkv, attention_mask)

    # Slice back to the module's shapes.
    return ctx_pad[:, :S, :], probs_pad[:, :, :S, :S]


# -------------------------------------- Reference --------------------------------------
def self_attention_reference(hidden_states, attention_mask, params, NH):
    B, S, H = hidden_states.shape
    D = H // NH
    q = hidden_states @ params["wq"].T + params["bq"]
    k = hidden_states @ params["wk"].T + params["bk"]
    v = hidden_states @ params["wv"].T + params["bv"]

    def split(t):
        return t.reshape(B, S, NH, D).transpose(0, 2, 1, 3)

    qh, kh, vh = split(q), split(k), split(v)
    scores = jnp.einsum("bhqd,bhkd->bhqk", qh, kh) / math.sqrt(D)
    scores = scores + attention_mask
    probs = jax.nn.softmax(scores, axis=-1)
    ctx = jnp.einsum("bhqk,bhkd->bhqd", probs, vh)
    ctx = ctx.transpose(0, 2, 1, 3).reshape(B, S, H)
    return ctx, probs


# ---------------------------------------- Main ------------------------------------------
if __name__ == "__main__":
    # Shapes consistent with the module's drug branch:
    # max_drug_len = 50 tokens, hidden_size = 128, 4 heads (head_dim = 32).
    B, S, H, NH = 2, 50, 128, 4
    key = jax.random.PRNGKey(0)
    k_x, k_m, k_wq, k_wk, k_wv, k_bq, k_bk, k_bv = jax.random.split(key, 8)

    hidden_states = jax.random.normal(k_x, (B, S, H), dtype=jnp.float32)
    # Additive attention mask (0 keep / -10000 masked), shape [B, 1, 1, S],
    # i.e. (1.0 - mask) * -10000.0 as built in Omics_DrugESPF_Model.forward.
    mask_bits = jax.random.bernoulli(k_m, 0.9, (B, 1, 1, S))
    attention_mask = jnp.where(mask_bits, 0.0, -10000.0).astype(jnp.float32)

    init_scale = 1.0 / math.sqrt(H)
    params = {
        "wq": jax.random.uniform(k_wq, (H, H), jnp.float32, -init_scale, init_scale),
        "wk": jax.random.uniform(k_wk, (H, H), jnp.float32, -init_scale, init_scale),
        "wv": jax.random.uniform(k_wv, (H, H), jnp.float32, -init_scale, init_scale),
        "bq": jax.random.uniform(k_bq, (H,), jnp.float32, -init_scale, init_scale),
        "bk": jax.random.uniform(k_bk, (H,), jnp.float32, -init_scale, init_scale),
        "bv": jax.random.uniform(k_bv, (H,), jnp.float32, -init_scale, init_scale),
    }

    ctx_ref, probs_ref = self_attention_reference(
        hidden_states, attention_mask, params, NH)

    # 1) Exact path (f32 operands, exact reciprocal, f32 outputs) — module semantics.
    prepared_f32 = prepare_self_attention_params(params, precise=True)
    ctx, probs = self_attention_forward(
        hidden_states, attention_mask, prepared_f32, NH, precise=True)
    jax.block_until_ready((ctx, probs))
    assert ctx.shape == (B, S, H) and ctx.dtype == jnp.float32
    assert probs.shape == (B, NH, S, S)
    assert jnp.allclose(ctx, ctx_ref, atol=5e-3, rtol=5e-3)
    assert jnp.allclose(probs, probs_ref, atol=1e-3, rtol=1e-2)

    # 2) Perf path (bf16 MXU operands, bf16 ctx + probs writeback, approx reciprocal).
    prepared_bf16 = prepare_self_attention_params(params, precise=False)
    ctx_b, probs_b = self_attention_forward(
        hidden_states, attention_mask, prepared_bf16, NH, precise=False)
    jax.block_until_ready((ctx_b, probs_b))
    assert ctx_b.dtype == jnp.bfloat16 and probs_b.dtype == jnp.bfloat16
    assert jnp.allclose(ctx_b.astype(jnp.float32), ctx_ref, atol=5e-2, rtol=5e-2)
    assert jnp.allclose(probs_b.astype(jnp.float32), probs_ref, atol=2e-2, rtol=5e-2)

    print("KERNEL_OK")
</pallas_src>

<mosaic_0001>
module attributes {stable_mosaic.version = 11 : i64} {
  func.func @_fused_self_attention_kernel(%arg0: i32, %arg1: memref<1x128x128xf32, #tpu.memory_space<vmem>>, %arg2: memref<128x384xf32, #tpu.memory_space<vmem>>, %arg3: memref<1x384xf32, #tpu.memory_space<vmem>>, %arg4: memref<1x1x1x128xf32, #tpu.memory_space<vmem>>, %arg5: memref<1x128x128xf32, #tpu.memory_space<vmem>>, %arg6: memref<1x4x128x128xf32, #tpu.memory_space<vmem>>) attributes {dimension_semantics = [#tpu.dimension_semantics<parallel>], iteration_bounds = array<i64: 2>, scalar_prefetch = 0 : i64, scratch_operands = 0 : i64, tpu.core_type = #tpu.core_type<tc>, window_params = [{transform_indices = @transform_0, window_bounds = array<i64: 1, 128, 128>}, {pipeline_mode = #tpu.pipeline_mode<synchronous>, transform_indices = @transform_1, window_bounds = array<i64: 128, 384>}, {pipeline_mode = #tpu.pipeline_mode<synchronous>, transform_indices = @transform_2, window_bounds = array<i64: 1, 384>}, {transform_indices = @transform_3, window_bounds = array<i64: 1, 1, 1, 128>}, {transform_indices = @transform_4, window_bounds = array<i64: 1, 128, 128>}, {transform_indices = @transform_5, window_bounds = array<i64: 1, 4, 128, 128>}]} {
    %c0 = arith.constant 0 : index
    %c0_0 = arith.constant 0 : index
    %0 = vector.load %arg2[%c0, %c0_0] : memref<128x384xf32, #tpu.memory_space<vmem>>, vector<128x384xf32>
    %c0_1 = arith.constant 0 : index
    %c0_2 = arith.constant 0 : index
    %c0_3 = arith.constant 0 : index
    %1 = vector.load %arg1[%c0_1, %c0_2, %c0_3] : memref<1x128x128xf32, #tpu.memory_space<vmem>>, vector<1x128x128xf32>
    %2 = vector.shape_cast %1 : vector<1x128x128xf32> to vector<128x128xf32>
    %cst = arith.constant dense<0.000000e+00> : vector<128x384xf32>
    %3 = tpu.matmul %2, %0, %cst {dimension_numbers = #tpu.dot_dimension_numbers<[1], [0], [0], [1], [0, 0, 1, 1], [], []>} : vector<128x128xf32>, vector<128x384xf32>, vector<128x384xf32> -> vector<128x384xf32>
    %c0_4 = arith.constant 0 : index
    %c0_5 = arith.constant 0 : index
    %4 = vector.load %arg3[%c0_4, %c0_5] : memref<1x384xf32, #tpu.memory_space<vmem>>, vector<1x384xf32>
    %5 = vector.broadcast %4 : vector<1x384xf32> to vector<128x384xf32>
    %6 = arith.addf %3, %5 : vector<128x384xf32>
    %c0_6 = arith.constant 0 : index
    %c0_7 = arith.constant 0 : index
    %c0_8 = arith.constant 0 : index
    %c0_9 = arith.constant 0 : index
    %7 = vector.load %arg4[%c0_6, %c0_7, %c0_8, %c0_9] : memref<1x1x1x128xf32, #tpu.memory_space<vmem>>, vector<1x1x1x128xf32>
    %8 = vector.shape_cast %7 : vector<1x1x1x128xf32> to vector<1x128xf32>
    %9 = vector.extract_strided_slice %6 {offsets = [0, 0], sizes = [128, 32], strides = [1, 1]} : vector<128x384xf32> to vector<128x32xf32>
    %10 = vector.extract_strided_slice %6 {offsets = [0, 128], sizes = [128, 32], strides = [1, 1]} : vector<128x384xf32> to vector<128x32xf32>
    %11 = vector.extract_strided_slice %6 {offsets = [0, 256], sizes = [128, 32], strides = [1, 1]} : vector<128x384xf32> to vector<128x32xf32>
    %cst_10 = arith.constant dense<0.000000e+00> : vector<128x128xf32>
    %12 = tpu.matmul %9, %10, %cst_10 {dimension_numbers = #tpu.dot_dimension_numbers<[1], [1], [0], [0], [0, 0, 1, 0], [], []>} : vector<128x32xf32>, vector<128x32xf32>, vector<128x128xf32> -> vector<128x128xf32>
    %cst_11 = arith.constant 0.176776692 : f32
    %13 = vector.broadcast %cst_11 : f32 to vector<128x128xf32>
    %14 = arith.mulf %12, %13 : vector<128x128xf32>
    %15 = vector.broadcast %8 : vector<1x128xf32> to vector<128x128xf32>
    %16 = arith.addf %14, %15 : vector<128x128xf32>
    %cst_12 = arith.constant dense<0xFF800000> : vector<128xf32>
    %17 = vector.multi_reduction <maximumf>, %16, %cst_12 [1] : vector<128x128xf32> to vector<128xf32>
    %18 = vector.shape_cast %17 : vector<128xf32> to vector<128x1xf32>
    %19 = vector.broadcast %18 : vector<128x1xf32> to vector<128x128xf32>
    %20 = arith.subf %16, %19 : vector<128x128xf32>
    %21 = math.exp %20 : vector<128x128xf32>
    %cst_13 = arith.constant dense<0.000000e+00> : vector<128xf32>
    %22 = vector.multi_reduction <add>, %21, %cst_13 [1] : vector<128x128xf32> to vector<128xf32>
    %23 = vector.shape_cast %22 : vector<128xf32> to vector<128x1xf32>
    %24 = tpu.reciprocal %23 : vector<128x1xf32> -> vector<128x1xf32>
    %25 = vector.broadcast %24 : vector<128x1xf32> to vector<128x128xf32>
    %26 = arith.mulf %21, %25 : vector<128x128xf32>
    %c0_14 = arith.constant 0 : index
    %c0_15 = arith.constant 0 : index
    %c0_16 = arith.constant 0 : index
    %c0_17 = arith.constant 0 : index
    %27 = vector.load %arg6[%c0_14, %c0_15, %c0_16, %c0_17] : memref<1x4x128x128xf32, #tpu.memory_space<vmem>>, vector<1x1x128x128xf32>
    %28 = vector.shape_cast %27 : vector<1x1x128x128xf32> to vector<128x128xf32>
    %29 = vector.shape_cast %26 : vector<128x128xf32> to vector<1x1x128x128xf32>
    tpu.vector_store %arg6[%c0_14, %c0_15, %c0_16, %c0_17], %29 {strides = array<i32>} : memref<1x4x128x128xf32, #tpu.memory_space<vmem>>, vector<1x1x128x128xf32>,
    %cst_18 = arith.constant dense<0.000000e+00> : vector<128x32xf32>
    %30 = tpu.matmul %26, %11, %cst_18 {dimension_numbers = #tpu.dot_dimension_numbers<[1], [0], [0], [1], [0, 0, 1, 1], [], []>} : vector<128x128xf32>, vector<128x32xf32>, vector<128x32xf32> -> vector<128x32xf32>
    %31 = vector.extract_strided_slice %6 {offsets = [0, 32], sizes = [128, 32], strides = [1, 1]} : vector<128x384xf32> to vector<128x32xf32>
    %32 = vector.extract_strided_slice %6 {offsets = [0, 160], sizes = [128, 32], strides = [1, 1]} : vector<128x384xf32> to vector<128x32xf32>
    %33 = vector.extract_strided_slice %6 {offsets = [0, 288], sizes = [128, 32], strides = [1, 1]} : vector<128x384xf32> to vector<128x32xf32>
    %cst_19 = arith.constant dense<0.000000e+00> : vector<128x128xf32>
    %34 = tpu.matmul %31, %32, %cst_19 {dimension_numbers = #tpu.dot_dimension_numbers<[1], [1], [0], [0], [0, 0, 1, 0], [], []>} : vector<128x32xf32>, vector<128x32xf32>, vector<128x128xf32> -> vector<128x128xf32>
    %cst_20 = arith.constant 0.176776692 : f32
    %35 = vector.broadcast %cst_20 : f32 to vector<128x128xf32>
    %36 = arith.mulf %34, %35 : vector<128x128xf32>
    %37 = vector.broadcast %8 : vector<1x128xf32> to vector<128x128xf32>
    %38 = arith.addf %36, %37 : vector<128x128xf32>
    %cst_21 = arith.constant dense<0xFF800000> : vector<128xf32>
    %39 = vector.multi_reduction <maximumf>, %38, %cst_21 [1] : vector<128x128xf32> to vector<128xf32>
    %40 = vector.shape_cast %39 : vector<128xf32> to vector<128x1xf32>
    %41 = vector.broadcast %40 : vector<128x1xf32> to vector<128x128xf32>
    %42 = arith.subf %38, %41 : vector<128x128xf32>
    %43 = math.exp %42 : vector<128x128xf32>
    %cst_22 = arith.constant dense<0.000000e+00> : vector<128xf32>
    %44 = vector.multi_reduction <add>, %43, %cst_22 [1] : vector<128x128xf32> to vector<128xf32>
    %45 = vector.shape_cast %44 : vector<128xf32> to vector<128x1xf32>
    %46 = tpu.reciprocal %45 : vector<128x1xf32> -> vector<128x1xf32>
    %47 = vector.broadcast %46 : vector<128x1xf32> to vector<128x128xf32>
    %48 = arith.mulf %43, %47 : vector<128x128xf32>
    %c0_23 = arith.constant 0 : index
    %c1 = arith.constant 1 : index
    %c0_24 = arith.constant 0 : index
    %c0_25 = arith.constant 0 : index
    %49 = vector.load %arg6[%c0_23, %c1, %c0_24, %c0_25] : memref<1x4x128x128xf32, #tpu.memory_space<vmem>>, vector<1x1x128x128xf32>
    %50 = vector.shape_cast %49 : vector<1x1x128x128xf32> to vector<128x128xf32>
    %51 = vector.shape_cast %48 : vector<128x128xf32> to vector<1x1x128x128xf32>
    tpu.vector_store %arg6[%c0_23, %c1, %c0_24, %c0_25], %51 {strides = array<i32>} : memref<1x4x128x128xf32, #tpu.memory_space<vmem>>, vector<1x1x128x128xf32>,
    %cst_26 = arith.constant dense<0.000000e+00> : vector<128x32xf32>
    %52 = tpu.matmul %48, %33, %cst_26 {dimension_numbers = #tpu.dot_dimension_numbers<[1], [0], [0], [1], [0, 0, 1, 1], [], []>} : vector<128x128xf32>, vector<128x32xf32>, vector<128x32xf32> -> vector<128x32xf32>
    %53 = vector.extract_strided_slice %6 {offsets = [0, 64], sizes = [128, 32], strides = [1, 1]} : vector<128x384xf32> to vector<128x32xf32>
    %54 = vector.extract_strided_slice %6 {offsets = [0, 192], sizes = [128, 32], strides = [1, 1]} : vector<128x384xf32> to vector<128x32xf32>
    %55 = vector.extract_strided_slice %6 {offsets = [0, 320], sizes = [128, 32], strides = [1, 1]} : vector<128x384xf32> to vector<128x32xf32>
    %cst_27 = arith.constant dense<0.000000e+00> : vector<128x128xf32>
    %56 = tpu.matmul %53, %54, %cst_27 {dimension_numbers = #tpu.dot_dimension_numbers<[1], [1], [0], [0], [0, 0, 1, 0], [], []>} : vector<128x32xf32>, vector<128x32xf32>, vector<128x128xf32> -> vector<128x128xf32>
    %cst_28 = arith.constant 0.176776692 : f32
    %57 = vector.broadcast %cst_28 : f32 to vector<128x128xf32>
    %58 = arith.mulf %56, %57 : vector<128x128xf32>
    %59 = vector.broadcast %8 : vector<1x128xf32> to vector<128x128xf32>
    %60 = arith.addf %58, %59 : vector<128x128xf32>
    %cst_29 = arith.constant dense<0xFF800000> : vector<128xf32>
    %61 = vector.multi_reduction <maximumf>, %60, %cst_29 [1] : vector<128x128xf32> to vector<128xf32>
    %62 = vector.shape_cast %61 : vector<128xf32> to vector<128x1xf32>
    %63 = vector.broadcast %62 : vector<128x1xf32> to vector<128x128xf32>
    %64 = arith.subf %60, %63 : vector<128x128xf32>
    %65 = math.exp %64 : vector<128x128xf32>
    %cst_30 = arith.constant dense<0.000000e+00> : vector<128xf32>
    %66 = vector.multi_reduction <add>, %65, %cst_30 [1] : vector<128x128xf32> to vector<128xf32>
    %67 = vector.shape_cast %66 : vector<128xf32> to vector<128x1xf32>
    %68 = tpu.reciprocal %67 : vector<128x1xf32> -> vector<128x1xf32>
    %69 = vector.broadcast %68 : vector<128x1xf32> to vector<128x128xf32>
    %70 = arith.mulf %65, %69 : vector<128x128xf32>
    %c0_31 = arith.constant 0 : index
    %c2 = arith.constant 2 : index
    %c0_32 = arith.constant 0 : index
    %c0_33 = arith.constant 0 : index
    %71 = vector.load %arg6[%c0_31, %c2, %c0_32, %c0_33] : memref<1x4x128x128xf32, #tpu.memory_space<vmem>>, vector<1x1x128x128xf32>
    %72 = vector.shape_cast %71 : vector<1x1x128x128xf32> to vector<128x128xf32>
    %73 = vector.shape_cast %70 : vector<128x128xf32> to vector<1x1x128x128xf32>
    tpu.vector_store %arg6[%c0_31, %c2, %c0_32, %c0_33], %73 {strides = array<i32>} : memref<1x4x128x128xf32, #tpu.memory_space<vmem>>, vector<1x1x128x128xf32>,
    %cst_34 = arith.constant dense<0.000000e+00> : vector<128x32xf32>
    %74 = tpu.matmul %70, %55, %cst_34 {dimension_numbers = #tpu.dot_dimension_numbers<[1], [0], [0], [1], [0, 0, 1, 1], [], []>} : vector<128x128xf32>, vector<128x32xf32>, vector<128x32xf32> -> vector<128x32xf32>
    %75 = vector.extract_strided_slice %6 {offsets = [0, 96], sizes = [128, 32], strides = [1, 1]} : vector<128x384xf32> to vector<128x32xf32>
    %76 = vector.extract_strided_slice %6 {offsets = [0, 224], sizes = [128, 32], strides = [1, 1]} : vector<128x384xf32> to vector<128x32xf32>
    %77 = vector.extract_strided_slice %6 {offsets = [0, 352], sizes = [128, 32], strides = [1, 1]} : vector<128x384xf32> to vector<128x32xf32>
    %cst_35 = arith.constant dense<0.000000e+00> : vector<128x128xf32>
    %78 = tpu.matmul %75, %76, %cst_35 {dimension_numbers = #tpu.dot_dimension_numbers<[1], [1], [0], [0], [0, 0, 1, 0], [], []>} : vector<128x32xf32>, vector<128x32xf32>, vector<128x128xf32> -> vector<128x128xf32>
    %cst_36 = arith.constant 0.176776692 : f32
    %79 = vector.broadcast %cst_36 : f32 to vector<128x128xf32>
    %80 = arith.mulf %78, %79 : vector<128x128xf32>
    %81 = vector.broadcast %8 : vector<1x128xf32> to vector<128x128xf32>
    %82 = arith.addf %80, %81 : vector<128x128xf32>
    %cst_37 = arith.constant dense<0xFF800000> : vector<128xf32>
    %83 = vector.multi_reduction <maximumf>, %82, %cst_37 [1] : vector<128x128xf32> to vector<128xf32>
    %84 = vector.shape_cast %83 : vector<128xf32> to vector<128x1xf32>
    %85 = vector.broadcast %84 : vector<128x1xf32> to vector<128x128xf32>
    %86 = arith.subf %82, %85 : vector<128x128xf32>
    %87 = math.exp %86 : vector<128x128xf32>
    %cst_38 = arith.constant dense<0.000000e+00> : vector<128xf32>
    %88 = vector.multi_reduction <add>, %87, %cst_38 [1] : vector<128x128xf32> to vector<128xf32>
    %89 = vector.shape_cast %88 : vector<128xf32> to vector<128x1xf32>
    %90 = tpu.reciprocal %89 : vector<128x1xf32> -> vector<128x1xf32>
    %91 = vector.broadcast %90 : vector<128x1xf32> to vector<128x128xf32>
    %92 = arith.mulf %87, %91 : vector<128x128xf32>
    %c0_39 = arith.constant 0 : index
    %c3 = arith.constant 3 : index
    %c0_40 = arith.constant 0 : index
    %c0_41 = arith.constant 0 : index
    %93 = vector.load %arg6[%c0_39, %c3, %c0_40, %c0_41] : memref<1x4x128x128xf32, #tpu.memory_space<vmem>>, vector<1x1x128x128xf32>
    %94 = vector.shape_cast %93 : vector<1x1x128x128xf32> to vector<128x128xf32>
    %95 = vector.shape_cast %92 : vector<128x128xf32> to vector<1x1x128x128xf32>
    tpu.vector_store %arg6[%c0_39, %c3, %c0_40, %c0_41], %95 {strides = array<i32>} : memref<1x4x128x128xf32, #tpu.memory_space<vmem>>, vector<1x1x128x128xf32>,
    %cst_42 = arith.constant dense<0.000000e+00> : vector<128x32xf32>
    %96 = tpu.matmul %92, %77, %cst_42 {dimension_numbers = #tpu.dot_dimension_numbers<[1], [0], [0], [1], [0, 0, 1, 1], [], []>} : vector<128x128xf32>, vector<128x32xf32>, vector<128x32xf32> -> vector<128x32xf32>
    %97 = tpu.concatenate %30, %52, %74, %96 in 1 : vector<128x32xf32>, vector<128x32xf32>, vector<128x32xf32>, vector<128x32xf32> -> vector<128x128xf32>
    %c0_43 = arith.constant 0 : index
    %c0_44 = arith.constant 0 : index
    %c0_45 = arith.constant 0 : index
    %98 = vector.load %arg5[%c0_43, %c0_44, %c0_45] : memref<1x128x128xf32, #tpu.memory_space<vmem>>, vector<1x128x128xf32>
    %99 = vector.shape_cast %98 : vector<1x128x128xf32> to vector<128x128xf32>
    %100 = vector.shape_cast %97 : vector<128x128xf32> to vector<1x128x128xf32>
    tpu.vector_store %arg5[%c0_43, %c0_44, %c0_45], %100 {strides = array<i32>} : memref<1x128x128xf32, #tpu.memory_space<vmem>>, vector<1x128x128xf32>,
    return
  }
  func.func @transform_0(%arg0: i32) -> (i32, i32, i32) {
    %c0_i32 = arith.constant 0 : i32
    %c0_i32_0 = arith.constant 0 : i32
    %c0_i32_1 = arith.constant 0 : i32
    return %arg0, %c0_i32, %c0_i32_0 : i32, i32, i32
  }
  func.func @transform_1(%arg0: i32) -> (i32, i32) {
    %c0_i32 = arith.constant 0 : i32
    %c0_i32_0 = arith.constant 0 : i32
    %c0_i32_1 = arith.constant 0 : i32
    return %c0_i32, %c0_i32_0 : i32, i32
  }
  func.func @transform_2(%arg0: i32) -> (i32, i32) {
    %c0_i32 = arith.constant 0 : i32
    %c0_i32_0 = arith.constant 0 : i32
    %c0_i32_1 = arith.constant 0 : i32
    return %c0_i32, %c0_i32_0 : i32, i32
  }
  func.func @transform_3(%arg0: i32) -> (i32, i32, i32, i32) {
    %c0_i32 = arith.constant 0 : i32
    %c0_i32_0 = arith.constant 0 : i32
    %c0_i32_1 = arith.constant 0 : i32
    %c0_i32_2 = arith.constant 0 : i32
    return %arg0, %c0_i32, %c0_i32_0, %c0_i32_1 : i32, i32, i32, i32
  }
  func.func @transform_4(%arg0: i32) -> (i32, i32, i32) {
    %c0_i32 = arith.constant 0 : i32
    %c0_i32_0 = arith.constant 0 : i32
    %c0_i32_1 = arith.constant 0 : i32
    return %arg0, %c0_i32, %c0_i32_0 : i32, i32, i32
  }
  func.func @transform_5(%arg0: i32) -> (i32, i32, i32, i32) {
    %c0_i32 = arith.constant 0 : i32
    %c0_i32_0 = arith.constant 0 : i32
    %c0_i32_1 = arith.constant 0 : i32
    %c0_i32_2 = arith.constant 0 : i32
    return %arg0, %c0_i32, %c0_i32_0, %c0_i32_1 : i32, i32, i32, i32
  }
}

</mosaic_0001>

<llo_original>
// kernel: tpu_custom_call.1
$region0: #{tpu_custom_call.1}
  #allocation0 [shape = 'u32[]', space=smem, size = 0x4, offset = 0x4, fixed_abs, tag = 'smem constant byte address 0x4 - core index']
  #allocation1 [shape = 'u32[72,128]{1,0:T(1,128)}', space=vmem, size = 0x9000, scoped, tag = 'internal scratch']
  %s0 = inlined_call_operand.hbm [shape: f32[2,128,128], index: 0, kind: input, shape index: {}]
  %s1 = inlined_call_operand.hbm [shape: f32[128,384], index: 1, kind: input, shape index: {}]
  %s2 = inlined_call_operand.hbm [shape: f32[1,384], index: 2, kind: input, shape index: {}]
  %s3 = inlined_call_operand.vmem [shape: f32[2,1,1,128], index: 3, kind: input, shape index: {}]
  %s4 = inlined_call_operand.hbm [shape: f32[2,128,128], index: 4, kind: output, shape index: {0}]
  %s5 = inlined_call_operand.hbm [shape: f32[2,4,128,128], index: 5, kind: output, shape index: {1}]
  %6 = xla_tuple %s4, %s5
  %s7 = sld [smem:[#allocation0]]
  $region69: #{tpu_custom_call.1} parent=0
    _
  %s9 = ssub.s32 1, %s7
  %s10 = scalar_select 0, %s9, %s7
  $region1: #{tpu_custom_call.1} parent=0
    #allocation2 [shape = 'u8[131072]{0}', space=vmem, size = 0x20000, scoped, tag = 'input window, operand 0']
    #allocation3 [shape = 's32[2]{0}', space=sflag, size = 0x8, scoped, tag = 'scoped memory for tpu_custom_call.1']
    #allocation4 [shape = 's32[2]{0}', space=sflag, size = 0x8, scoped, tag = 'scoped memory for tpu_custom_call.1']
    #allocation5 [shape = 'u8[196608]{0}', space=vmem, size = 0x30000, scoped, tag = 'input window, operand 1, single buffered']
    #allocation6 [shape = 's32[1]{0}', space=sflag, size = 0x4, scoped, tag = 'scoped memory for tpu_custom_call.1']
    #allocation7 [shape = 'u8[1536]{0}', space=vmem, size = 0x800, scoped, tag = 'input window, operand 2, single buffered']
    #allocation8 [shape = 'u8[131072]{0}', space=vmem, size = 0x20000, scoped, tag = 'output window, operand 0']
    #allocation9 [shape = 'u8[524288]{0}', space=vmem, size = 0x80000, scoped, tag = 'output window, operand 1']
    #allocation10 [shape = 's32[2]{0}', space=sflag, size = 0x8, scoped, tag = 'scoped memory for tpu_custom_call.1']
    %11 = vsyncpa [#allocation3], 0
    %s12 = scalar_lea.sflag [#allocation3], 1
    %13 = vsyncpa %s12, 0
    %14 = vsyncpa [#allocation6], 0
    %15 = vsyncpa [#allocation4], 0
    %s16 = scalar_lea.sflag [#allocation4], 1
    %17 = vsyncpa %s16, 0
    %18 = vsyncpa [#allocation10], 0
    %s19 = scalar_lea.sflag [#allocation10], 1
    %20 = vsyncpa %s19, 0
    loop: start=0, step=1, limit=4
    $region2: #{tpu_custom_call.1} parent=1 // loop_pre_header
      _
    $region3: #{tpu_custom_call.1} parent=1 // loop_header
      %s22 = sphi 0, %s26
      %p23 = scmp.ge.s32.totalorder %s22, 4
      %s32 = sphi 0, %s34
      %s35 = sphi 0, %s32
      %s36 = sphi 0, %s35
      %s52 = sphi 0, %s36
      %s56 = sphi 0, %s56
      %s58 = sphi 0, %s56
      %s59 = sphi 0, %s58
      %s73 = sphi 0, %s59
      %s77 = sphi 0, %s77
      %s79 = sphi 0, %s77
      %s80 = sphi 0, %s79
      %s94 = sphi 0, %s80
      %s100 = sphi 0, %s102
      %s103 = sphi 0, %s100
      %s104 = sphi 0, %s103
      %s120 = sphi 0, %s104
      %s126 = sphi 0, %s128
      %s129 = sphi 0, %s126
      %s130 = sphi 0, %s129
      %s146 = sphi 0, %s130
      %s152 = sphi 0, %s154
      %s155 = sphi 0, %s152
      %s156 = sphi 0, %s155
      %s172 = sphi 0, %s156
    $region4: #{tpu_custom_call.1} parent=1 // loop_header_branch
      %25 = sbr.rel (%p23) target = $region8
    $region5: #{tpu_custom_call.1} parent=1 // loop_body
      %s27 = ssub.s32 %s22, 1
      %s28 = ssub.s32 %s22, 2
      %s29 = sadd.s32 %s22, 1
      %s30 = ssub.s32 %s22, %s29
      %p31 = scmp.eq.s32.totalorder %s30, 0
      %s33 = sadd.s32 %s32, 1
      %s34 = scalar_select %p31, %s32, %s33
      %p37 = pneg %p31
      %p38 = scmp.eq.s32.totalorder %s22, 1
      %p39 = por %p37, %p38
      %p40 = scmp.ne.s32.totalorder %s32, %s35
      %p41 = scmp.eq.s32.totalorder %s22, 0
      %p42 = por %p40, %p41
      %p43 = scmp.ne.s32.totalorder %s32, %s35
      %p44 = scmp.eq.s32.totalorder %s27, 1
      %p45 = por %p43, %p44
      %p46 = scmp.ne.s32.totalorder %s35, %s36
      %p47 = scmp.eq.s32.totalorder %s27, 0
      %p48 = por %p46, %p47
      %p49 = scmp.ne.s32.totalorder %s35, %s36
      %p50 = scmp.eq.s32.totalorder %s28, 1
      %p51 = por %p49, %p50
      %p53 = scmp.ne.s32.totalorder %s36, %s52
      %p54 = scmp.eq.s32.totalorder %s28, 0
      %p55 = por %p53, %p54
      %s57 = sadd.s32 %s56, 1
      %p60 = scmp.eq.s32.totalorder %s22, 1
      %p61 = scmp.ne.s32.totalorder %s56, %s58
      %p62 = scmp.eq.s32.totalorder %s22, 0
      %p63 = por %p61, %p62
      %p64 = scmp.ne.s32.totalorder %s56, %s58
      %p65 = scmp.eq.s32.totalorder %s27, 1
      %p66 = por %p64, %p65
      %p67 = scmp.ne.s32.totalorder %s58, %s59
      %p68 = scmp.eq.s32.totalorder %s27, 0
      %p69 = por %p67, %p68
      %p70 = scmp.ne.s32.totalorder %s58, %s59
      %p71 = scmp.eq.s32.totalorder %s28, 1
      %p72 = por %p70, %p71
      %p74 = scmp.ne.s32.totalorder %s59, %s73
      %p75 = scmp.eq.s32.totalorder %s28, 0
      %p76 = por %p74, %p75
      %s78 = sadd.s32 %s77, 1
      %p81 = scmp.eq.s32.totalorder %s22, 1
      %p82 = scmp.ne.s32.totalorder %s77, %s79
      %p83 = scmp.eq.s32.totalorder %s22, 0
      %p84 = por %p82, %p83
      %p85 = scmp.ne.s32.totalorder %s77, %s79
      %p86 = scmp.eq.s32.totalorder %s27, 1
      %p87 = por %p85, %p86
      %p88 = scmp.ne.s32.totalorder %s79, %s80
      %p89 = scmp.eq.s32.totalorder %s27, 0
      %p90 = por %p88, %p89
      %p91 = scmp.ne.s32.totalorder %s79, %s80
      %p92 = scmp.eq.s32.totalorder %s28, 1
      %p93 = por %p91, %p92
      %p95 = scmp.ne.s32.totalorder %s80, %s94
      %p96 = scmp.eq.s32.totalorder %s28, 0
      %p97 = por %p95, %p96
      %s98 = ssub.s32 %s22, %s29
      %p99 = scmp.eq.s32.totalorder %s98, 0
      %s101 = sadd.s32 %s100, 1
      %s102 = scalar_select %p99, %s100, %s101
      %p105 = pneg %p99
      %p106 = scmp.eq.s32.totalorder %s22, 1
      %p107 = por %p105, %p106
      %p108 = scmp.ne.s32.totalorder %s100, %s103
      %p109 = scmp.eq.s32.totalorder %s22, 0
      %p110 = por %p108, %p109
      %p111 = scmp.ne.s32.totalorder %s100, %s103
      %p112 = scmp.eq.s32.totalorder %s27, 1
      %p113 = por %p111, %p112
      %p114 = scmp.ne.s32.totalorder %s103, %s104
      %p115 = scmp.eq.s32.totalorder %s27, 0
      %p116 = por %p114, %p115
      %p117 = scmp.ne.s32.totalorder %s103, %s104
      %p118 = scmp.eq.s32.totalorder %s28, 1
      %p119 = por %p117, %p118
      %p121 = scmp.ne.s32.totalorder %s104, %s120
      %p122 = scmp.eq.s32.totalorder %s28, 0
      %p123 = por %p121, %p122
      %s124 = ssub.s32 %s22, %s29
      %p125 = scmp.eq.s32.totalorder %s124, 0
      %s127 = sadd.s32 %s126, 1
      %s128 = scalar_select %p125, %s126, %s127
      %p131 = pneg %p125
      %p132 = scmp.eq.s32.totalorder %s22, 1
      %p133 = por %p131, %p132
      %p134 = scmp.ne.s32.totalorder %s126, %s129
      %p135 = scmp.eq.s32.totalorder %s22, 0
      %p136 = por %p134, %p135
      %p137 = scmp.ne.s32.totalorder %s126, %s129
      %p138 = scmp.eq.s32.totalorder %s27, 1
      %p139 = por %p137, %p138
      %p140 = scmp.ne.s32.totalorder %s129, %s130
      %p141 = scmp.eq.s32.totalorder %s27, 0
      %p142 = por %p140, %p141
      %p143 = scmp.ne.s32.totalorder %s129, %s130
      %p144 = scmp.eq.s32.totalorder %s28, 1
      %p145 = por %p143, %p144
      %p147 = scmp.ne.s32.totalorder %s130, %s146
      %p148 = scmp.eq.s32.totalorder %s28, 0
      %p149 = por %p147, %p148
      %s150 = ssub.s32 %s22, %s29
      %p151 = scmp.eq.s32.totalorder %s150, 0
      %s153 = sadd.s32 %s152, 1
      %s154 = scalar_select %p151, %s152, %s153
      %p157 = pneg %p151
      %p158 = scmp.eq.s32.totalorder %s22, 1
      %p159 = por %p157, %p158
      %p160 = scmp.ne.s32.totalorder %s152, %s155
      %p161 = scmp.eq.s32.totalorder %s22, 0
      %p162 = por %p160, %p161
      %p163 = scmp.ne.s32.totalorder %s152, %s155
      %p164 = scmp.eq.s32.totalorder %s27, 1
      %p165 = por %p163, %p164
      %p166 = scmp.ne.s32.totalorder %s155, %s156
      %p167 = scmp.eq.s32.totalorder %s27, 0
      %p168 = por %p166, %p167
      %p169 = scmp.ne.s32.totalorder %s155, %s156
      %p170 = scmp.eq.s32.totalorder %s28, 1
      %p171 = por %p169, %p170
      %p173 = scmp.ne.s32.totalorder %s156, %s172
      %p174 = scmp.eq.s32.totalorder %s28, 0
      %p175 = por %p173, %p174
      %p176 = scmp.le.s32.totalorder 1, %s22
      %p177 = scmp.lt.s32.totalorder %s22, 3
      %p178 = pnand %p176, %p177
      %p179 = pneg %p178
      // Predicated region
      $region9: #{tpu_custom_call.1} parent=5 // pred_check
        _
      $region10: #{tpu_custom_call.1} parent=5 // pred_check_branch
        %181 = sbr.rel (%p178) target = $region12
      $region11: #{tpu_custom_call.1} parent=5 // pred_region
        %s182 = ssub.s32 %s22, 1
        // Predicated region
        $region13: #{tpu_custom_call.1} parent=11 // pred_check
          %p183 = pneg %p69
        $region14: #{tpu_custom_call.1} parent=11 // pred_check_branch
          %185 = sbr.rel (%p183) target = $region16
        $region15: #{tpu_custom_call.1} parent=11 // pred_region
          %187 = vsyncadd [#allocation6], 0
          %s188 = sshll.u32 %s1, 4
          %s189 = int_to_ptr.hbm [resolvable:$true] %s188
          %s190 = sshll.u32 [#allocation5], 4
          %s191 = int_to_ptr.vmem [resolvable:$true] %s190
          %196 = dma.hbm_to_vmem [thread:$0]  %s189, 6144, %s191, [#allocation6], 384, 384, 24
        $region16: #{tpu_custom_call.1} parent=11 // pred_fallthru
          _
        // Predicated region
        $region17: #{tpu_custom_call.1} parent=11 // pred_check
          %p197 = pneg %p90
        $region18: #{tpu_custom_call.1} parent=11 // pred_check_branch
          %199 = sbr.rel (%p197) target = $region20
        $region19: #{tpu_custom_call.1} parent=11 // pred_region
          %201 = vsyncadd [#allocation6], 0
          %s203 = sshll.u32 %s2, 4
          %s204 = int_to_ptr.hbm [resolvable:$true] %s203
          %s205 = sshll.u32 [#allocation7], 4
          %s206 = int_to_ptr.vmem [resolvable:$true] %s205
          %208 = dma.hbm_to_vmem [thread:$0]  %s204, 48, %s206, [#allocation6]
        $region20: #{tpu_custom_call.1} parent=11 // pred_fallthru
          _
      $region12: #{tpu_custom_call.1} parent=5 // pred_fallthru
        _
      %p209 = scmp.lt.s32.totalorder %s22, 2
      // Predicated region
      $region21: #{tpu_custom_call.1} parent=5 // pred_check
        %p210 = pneg %p209
      $region22: #{tpu_custom_call.1} parent=5 // pred_check_branch
        %212 = sbr.rel (%p210) target = $region24
      $region23: #{tpu_custom_call.1} parent=5 // pred_region
        // Predicated region
        $region25: #{tpu_custom_call.1} parent=23 // pred_check
          %p213 = pneg %p42
        $region26: #{tpu_custom_call.1} parent=23 // pred_check_branch
          %215 = sbr.rel (%p213) target = $region28
        $region27: #{tpu_custom_call.1} parent=23 // pred_region
          %s216 = sand.u32 %s32, 1
          %s217 = scalar_lea.sflag [#allocation3], %s216
          %s218 = sand.u32 %s32, 1
          %s219 = smul.addr %s218, 128
          %s220 = scalar_lea.vmem [#allocation2], %s219
          %222 = vsyncadd %s217, 0
          %s223 = smul.addr %s22, 16
          %s224 = smul.addr %s223, 8
          %s225 = scalar_lea.hbm %s0, %s224
          %s226 = sshll.u32 %s225, 4
          %s227 = int_to_ptr.hbm [resolvable:$true] %s226
          %s228 = sshll.u32 %s220, 4
          %s229 = int_to_ptr.vmem [resolvable:$true] %s228
          %234 = dma.hbm_to_vmem [thread:$0]  %s227, 2048, %s229, %s217, 128, 128, 8
        $region28: #{tpu_custom_call.1} parent=23 // pred_fallthru
          _
        // Predicated region
        $region29: #{tpu_custom_call.1} parent=23 // pred_check
          %p235 = pneg %p110
        $region30: #{tpu_custom_call.1} parent=23 // pred_check_branch
          %237 = sbr.rel (%p235) target = $region32
        $region31: #{tpu_custom_call.1} parent=23 // pred_region
          %p238 = scmp.lt.s32.totalorder %s22, 1
          %s239 = scalar_select %p238, %s22, 1
          %s240 = scalar_lea.vmem %s3, %s239
        $region32: #{tpu_custom_call.1} parent=23 // pred_fallthru
          _
      $region24: #{tpu_custom_call.1} parent=5 // pred_fallthru
        _
      %p241 = scmp.le.s32.totalorder 1, %s22
      %p242 = scmp.lt.s32.totalorder %s22, 3
      %p243 = pnand %p241, %p242
      %p244 = pneg %p243
      // Predicated region
      $region33: #{tpu_custom_call.1} parent=5 // pred_check
        _
      $region34: #{tpu_custom_call.1} parent=5 // pred_check_branch
        %246 = sbr.rel (%p243) target = $region36
      $region35: #{tpu_custom_call.1} parent=5 // pred_region
        %s247 = ssub.s32 %s22, 1
        %s248 = sand.u32 %s35, 1
        %s249 = scalar_lea.sflag [#allocation3], %s248
        %s250 = sand.u32 %s35, 1
        %s251 = smul.addr %s250, 128
        %s252 = scalar_lea.vmem [#allocation2], %s251
        // Predicated region
        $region37: #{tpu_custom_call.1} parent=35 // pred_check
          %p253 = pneg %p48
        $region38: #{tpu_custom_call.1} parent=35 // pred_check_branch
          %255 = sbr.rel (%p253) target = $region40
        $region39: #{tpu_custom_call.1} parent=35 // pred_region
          %257 = dma.done %s249, 2048
        $region40: #{tpu_custom_call.1} parent=35 // pred_fallthru
          _
        // Predicated region
        $region41: #{tpu_custom_call.1} parent=35 // pred_check
          %p258 = pneg %p69
        $region42: #{tpu_custom_call.1} parent=35 // pred_check_branch
          %260 = sbr.rel (%p258) target = $region44
        $region43: #{tpu_custom_call.1} parent=35 // pred_region
          %262 = dma.done [#allocation6], 6144
        $region44: #{tpu_custom_call.1} parent=35 // pred_fallthru
          _
        // Predicated region
        $region45: #{tpu_custom_call.1} parent=35 // pred_check
          %p263 = pneg %p90
        $region46: #{tpu_custom_call.1} parent=35 // pred_check_branch
          %265 = sbr.rel (%p263) target = $region48
        $region47: #{tpu_custom_call.1} parent=35 // pred_region
          %267 = dma.done [#allocation6], 48
        $region48: #{tpu_custom_call.1} parent=35 // pred_fallthru
          _
        %s268 = sand.u32 %s35, 1
        %s269 = scalar_lea.sflag [#allocation3], %s268
        %s270 = sand.u32 %s35, 1
        %s271 = smul.addr %s270, 128
        %s272 = scalar_lea.vmem [#allocation2], %s271
        %p273 = pneg %p48
        %p274 = pneg %p45
        %p275 = pneg %p69
        %p276 = pneg %p66
        %p277 = pneg %p90
        %p278 = pneg %p87
        %p279 = scmp.lt.s32.totalorder %s27, 1
        %s280 = scalar_select %p279, %s27, 1
        %s281 = scalar_lea.vmem %s3, %s280
        %p282 = pneg %p116
        %p283 = pneg %p113
        %p284 = pneg %p142
        %p285 = pneg %p139
        %s286 = sand.u32 %s129, 1
        %s287 = scalar_lea.sflag [#allocation4], %s286
        %s288 = sand.u32 %s129, 1
        %s289 = smul.addr %s288, 128
        %s290 = scalar_lea.vmem [#allocation8], %s289
        %p291 = pneg %p168
        %p292 = pneg %p165
        %s293 = sand.u32 %s155, 1
        %s294 = scalar_lea.sflag [#allocation10], %s293
        %s295 = sand.u32 %s155, 1
        %s296 = smul.addr %s295, 512
        %s297 = scalar_lea.vmem [#allocation9], %s296
        %p298 = scmp.lt.s32.totalorder %s27, 1
        %s299 = scalar_select %p298, %s27, 1
        %s300 = scalar_lea.vmem %s3, %s299
        %v301 = vld [vmem:[#allocation5] sm:$0xff]
        %v302 = vld [vmem:[#allocation5 + $0x8] sm:$0xff]
        %v303 = vld [vmem:[#allocation5 + $0x10] sm:$0xff]
        %v304 = vld [vmem:[#allocation5 + $0x18] sm:$0xff]
        %v305 = vld [vmem:[#allocation5 + $0x20] sm:$0xff]
        %v306 = vld [vmem:[#allocation5 + $0x28] sm:$0xff]
        %v307 = vld [vmem:[#allocation5 + $0x30] sm:$0xff]
        %v308 = vld [vmem:[#allocation5 + $0x38] sm:$0xff]
        %v309 = vld [vmem:[#allocation5 + $0x40] sm:$0xff]
        %v310 = vld [vmem:[#allocation5 + $0x48] sm:$0xff]
        %v311 = vld [vmem:[#allocation5 + $0x50] sm:$0xff]
        %v312 = vld [vmem:[#allocation5 + $0x58] sm:$0xff]
        %v313 = vld [vmem:[#allocation5 + $0x60] sm:$0xff]
        %v314 = vld [vmem:[#allocation5 + $0x68] sm:$0xff]
        %v315 = vld [vmem:[#allocation5 + $0x70] sm:$0xff]
        %v316 = vld [vmem:[#allocation5 + $0x78] sm:$0xff]
        %v317 = vld [vmem:[#allocation5 + $0x80] sm:$0xff]
        %v318 = vld [vmem:[#allocation5 + $0x88] sm:$0xff]
        %v319 = vld [vmem:[#allocation5 + $0x90] sm:$0xff]
        %v320 = vld [vmem:[#allocation5 + $0x98] sm:$0xff]
        %v321 = vld [vmem:[#allocation5 + $0xa0] sm:$0xff]
        %v322 = vld [vmem:[#allocation5 + $0xa8] sm:$0xff]
        %v323 = vld [vmem:[#allocation5 + $0xb0] sm:$0xff]
        %v324 = vld [vmem:[#allocation5 + $0xb8] sm:$0xff]
        %v325 = vld [vmem:[#allocation5 + $0xc0] sm:$0xff]
        %v326 = vld [vmem:[#allocation5 + $0xc8] sm:$0xff]
        %v327 = vld [vmem:[#allocation5 + $0xd0] sm:$0xff]
        %v328 = vld [vmem:[#allocation5 + $0xd8] sm:$0xff]
        %v329 = vld [vmem:[#allocation5 + $0xe0] sm:$0xff]
        %v330 = vld [vmem:[#allocation5 + $0xe8] sm:$0xff]
        %v331 = vld [vmem:[#allocation5 + $0xf0] sm:$0xff]
        %v332 = vld [vmem:[#allocation5 + $0xf8] sm:$0xff]
        %v333 = vld [vmem:[#allocation5 + $0x100] sm:$0xff]
        %v334 = vld [vmem:[#allocation5 + $0x108] sm:$0xff]
        %v335 = vld [vmem:[#allocation5 + $0x110] sm:$0xff]
        %v336 = vld [vmem:[#allocation5 + $0x118] sm:$0xff]
        %v337 = vld [vmem:[#allocation5 + $0x120] sm:$0xff]
        %v338 = vld [vmem:[#allocation5 + $0x128] sm:$0xff]
        %v339 = vld [vmem:[#allocation5 + $0x130] sm:$0xff]
        %v340 = vld [vmem:[#allocation5 + $0x138] sm:$0xff]
        %v341 = vld [vmem:[#allocation5 + $0x140] sm:$0xff]
        %v342 = vld [vmem:[#allocation5 + $0x148] sm:$0xff]
        %v343 = vld [vmem:[#allocation5 + $0x150] sm:$0xff]
        %v344 = vld [vmem:[#allocation5 + $0x158] sm:$0xff]
        %v345 = vld [vmem:[#allocation5 + $0x160] sm:$0xff]
        %v346 = vld [vmem:[#allocation5 + $0x168] sm:$0xff]
        %v347 = vld [vmem:[#allocation5 + $0x170] sm:$0xff]
        %v348 = vld [vmem:[#allocation5 + $0x178] sm:$0xff]
        %v349 = vld [vmem:[%s252] sm:$0xff]
        %v350 = vld [vmem:[%s252 + $0x8] sm:$0xff]
        %v351 = vld [vmem:[%s252 + $0x10] sm:$0xff]
        %v352 = vld [vmem:[%s252 + $0x18] sm:$0xff]
        %v353 = vld [vmem:[%s252 + $0x20] sm:$0xff]
        %v354 = vld [vmem:[%s252 + $0x28] sm:$0xff]
        %v355 = vld [vmem:[%s252 + $0x30] sm:$0xff]
        %v356 = vld [vmem:[%s252 + $0x38] sm:$0xff]
        %v357 = vld [vmem:[%s252 + $0x40] sm:$0xff]
        %v358 = vld [vmem:[%s252 + $0x48] sm:$0xff]
        %v359 = vld [vmem:[%s252 + $0x50] sm:$0xff]
        %v360 = vld [vmem:[%s252 + $0x58] sm:$0xff]
        %v361 = vld [vmem:[%s252 + $0x60] sm:$0xff]
        %v362 = vld [vmem:[%s252 + $0x68] sm:$0xff]
        %v363 = vld [vmem:[%s252 + $0x70] sm:$0xff]
        %v364 = vld [vmem:[%s252 + $0x78] sm:$0xff]
        %v365 = vld [vmem:[#allocation7] sm:$0x7]
        %v367 = vperm.slane %v365, 0
        %v368 = vperm.slane %v365, 1
        %v369 = vperm.slane %v365, 2
        %373 = vmatpush.msra.mxu0 %v346
        %374 = vmatpush.msra.mxu0 %v343
        %375 = vmatpush.msra.mxu0 %v340
        %376 = vmatpush.msra.mxu0 %v337
        %377 = vmatpush.msra.mxu0 %v334
        %378 = vmatpush.msra.mxu0 %v331
        %379 = vmatpush.msra.mxu0 %v328
        %380 = vmatpush.msra.mxu0 %v325
        %381 = vmatpush.msra.mxu0 %v322
        %382 = vmatpush.msra.mxu0 %v319
        %383 = vmatpush.msra.mxu0 %v316
        %384 = vmatpush.msra.mxu0 %v313
        %385 = vmatpush.msra.mxu0 %v310
        %386 = vmatpush.msra.mxu0 %v307
        %387 = vmatpush.msra.mxu0 %v304
        %388 = vmatpush.msra.mxu0 %v301
        %389 = vmatmul.f32.gmra.mxu0 %v349
        %v390 = vpop.f32.mrf.mxu0
        %v391 = vadd.f32 %v367, %v390
        %392 = vmatmul.f32.gmra.mxu0 %v350
        %v393 = vpop.f32.mrf.mxu0
        %v394 = vadd.f32 %v367, %v393
        %395 = vmatmul.f32.gmra.mxu0 %v351
        %v396 = vpop.f32.mrf.mxu0
        %v397 = vadd.f32 %v367, %v396
        %398 = vmatmul.f32.gmra.mxu0 %v352
        %v399 = vpop.f32.mrf.mxu0
        %v400 = vadd.f32 %v367, %v399
        %401 = vmatmul.f32.gmra.mxu0 %v353
        %v402 = vpop.f32.mrf.mxu0
        %v403 = vadd.f32 %v367, %v402
        %404 = vmatmul.f32.gmra.mxu0 %v354
        %v405 = vpop.f32.mrf.mxu0
        %v406 = vadd.f32 %v367, %v405
        %407 = vmatmul.f32.gmra.mxu0 %v355
        %v408 = vpop.f32.mrf.mxu0
        %v409 = vadd.f32 %v367, %v408
        %410 = vmatmul.f32.gmra.mxu0 %v356
        %v411 = vpop.f32.mrf.mxu0
        %v412 = vadd.f32 %v367, %v411
        %413 = vmatmul.f32.gmra.mxu0 %v357
        %v414 = vpop.f32.mrf.mxu0
        %v415 = vadd.f32 %v367, %v414
        %416 = vmatmul.f32.gmra.mxu0 %v358
        %v417 = vpop.f32.mrf.mxu0
        %v418 = vadd.f32 %v367, %v417
        %419 = vmatmul.f32.gmra.mxu0 %v359
        %v420 = vpop.f32.mrf.mxu0
        %v421 = vadd.f32 %v367, %v420
        %422 = vmatmul.f32.gmra.mxu0 %v360
        %v423 = vpop.f32.mrf.mxu0
        %v424 = vadd.f32 %v367, %v423
        %425 = vmatmul.f32.gmra.mxu0 %v361
        %v426 = vpop.f32.mrf.mxu0
        %v427 = vadd.f32 %v367, %v426
        %428 = vmatmul.f32.gmra.mxu0 %v362
        %v429 = vpop.f32.mrf.mxu0
        %v430 = vadd.f32 %v367, %v429
        %431 = vmatmul.f32.gmra.mxu0 %v363
        %v432 = vpop.f32.mrf.mxu0
        %v433 = vadd.f32 %v367, %v432
        %434 = vmatmul.f32.gmra.mxu0 %v364
        %v435 = vpop.f32.mrf.mxu0
        %v436 = vadd.f32 %v367, %v435
        %437 = vdwg.mxu0
        %438 = vmatpush.msra.mxu0 %v347
        %439 = vmatpush.msra.mxu0 %v344
        %440 = vmatpush.msra.mxu0 %v341
        %441 = vmatpush.msra.mxu0 %v338
        %442 = vmatpush.msra.mxu0 %v335
        %443 = vmatpush.msra.mxu0 %v332
        %444 = vmatpush.msra.mxu0 %v329
        %445 = vmatpush.msra.mxu0 %v326
        %446 = vmatpush.msra.mxu0 %v323
        %447 = vmatpush.msra.mxu0 %v320
        %448 = vmatpush.msra.mxu0 %v317
        %449 = vmatpush.msra.mxu0 %v314
        %450 = vmatpush.msra.mxu0 %v311
        %451 = vmatpush.msra.mxu0 %v308
        %452 = vmatpush.msra.mxu0 %v305
        %453 = vmatpush.msra.mxu0 %v302
        %454 = vmatmul.f32.gmra.mxu0 %v349
        %v455 = vpop.f32.mrf.mxu0
        %v456 = vadd.f32 %v368, %v455
        %457 = vmatmul.f32.gmra.mxu0 %v350
        %v458 = vpop.f32.mrf.mxu0
        %v459 = vadd.f32 %v368, %v458
        %460 = vmatmul.f32.gmra.mxu0 %v351
        %v461 = vpop.f32.mrf.mxu0
        %v462 = vadd.f32 %v368, %v461
        %463 = vmatmul.f32.gmra.mxu0 %v352
        %v464 = vpop.f32.mrf.mxu0
        %v465 = vadd.f32 %v368, %v464
        %466 = vmatmul.f32.gmra.mxu0 %v353
        %v467 = vpop.f32.mrf.mxu0
        %v468 = vadd.f32 %v368, %v467
        %469 = vmatmul.f32.gmra.mxu0 %v354
        %v470 = vpop.f32.mrf.mxu0
        %v471 = vadd.f32 %v368, %v470
        %472 = vmatmul.f32.gmra.mxu0 %v355
        %v473 = vpop.f32.mrf.mxu0
        %v474 = vadd.f32 %v368, %v473
        %475 = vmatmul.f32.gmra.mxu0 %v356
        %v476 = vpop.f32.mrf.mxu0
        %v477 = vadd.f32 %v368, %v476
        %478 = vmatmul.f32.gmra.mxu0 %v357
        %v479 = vpop.f32.mrf.mxu0
        %v480 = vadd.f32 %v368, %v479
        %481 = vmatmul.f32.gmra.mxu0 %v358
        %v482 = vpop.f32.mrf.mxu0
        %v483 = vadd.f32 %v368, %v482
        %484 = vmatmul.f32.gmra.mxu0 %v359
        %v485 = vpop.f32.mrf.mxu0
        %v486 = vadd.f32 %v368, %v485
        %487 = vmatmul.f32.gmra.mxu0 %v360
        %v488 = vpop.f32.mrf.mxu0
        %v489 = vadd.f32 %v368, %v488
        %490 = vmatmul.f32.gmra.mxu0 %v361
        %v491 = vpop.f32.mrf.mxu0
        %v492 = vadd.f32 %v368, %v491
        %493 = vmatmul.f32.gmra.mxu0 %v362
        %v494 = vpop.f32.mrf.mxu0
        %v495 = vadd.f32 %v368, %v494
        %496 = vmatmul.f32.gmra.mxu0 %v363
        %v497 = vpop.f32.mrf.mxu0
        %v498 = vadd.f32 %v368, %v497
        %499 = vmatmul.f32.gmra.mxu0 %v364
        %v500 = vpop.f32.mrf.mxu0
        %v501 = vadd.f32 %v368, %v500
        %502 = vdwg.mxu0
        %503 = vmatpush.msra.mxu0 %v348
        %504 = vmatpush.msra.mxu0 %v345
        %505 = vmatpush.msra.mxu0 %v342
        %506 = vmatpush.msra.mxu0 %v339
        %507 = vmatpush.msra.mxu0 %v336
        %508 = vmatpush.msra.mxu0 %v333
        %509 = vmatpush.msra.mxu0 %v330
        %510 = vmatpush.msra.mxu0 %v327
        %511 = vmatpush.msra.mxu0 %v324
        %512 = vmatpush.msra.mxu0 %v321
        %513 = vmatpush.msra.mxu0 %v318
        %514 = vmatpush.msra.mxu0 %v315
        %515 = vmatpush.msra.mxu0 %v312
        %516 = vmatpush.msra.mxu0 %v309
        %517 = vmatpush.msra.mxu0 %v306
        %518 = vmatpush.msra.mxu0 %v303
        %519 = vmatmul.f32.gmra.mxu0 %v349
        %v520 = vpop.f32.mrf.mxu0
        %v521 = vadd.f32 %v369, %v520
        %522 = vmatmul.f32.gmra.mxu0 %v350
        %v523 = vpop.f32.mrf.mxu0
        %v524 = vadd.f32 %v369, %v523
        %525 = vmatmul.f32.gmra.mxu0 %v351
        %v526 = vpop.f32.mrf.mxu0
        %v527 = vadd.f32 %v369, %v526
        %528 = vmatmul.f32.gmra.mxu0 %v352
        %v529 = vpop.f32.mrf.mxu0
        %v530 = vadd.f32 %v369, %v529
        %531 = vmatmul.f32.gmra.mxu0 %v353
        %v532 = vpop.f32.mrf.mxu0
        %v533 = vadd.f32 %v369, %v532
        %534 = vmatmul.f32.gmra.mxu0 %v354
        %v535 = vpop.f32.mrf.mxu0
        %v536 = vadd.f32 %v369, %v535
        %537 = vmatmul.f32.gmra.mxu0 %v355
        %v538 = vpop.f32.mrf.mxu0
        %v539 = vadd.f32 %v369, %v538
        %540 = vmatmul.f32.gmra.mxu0 %v356
        %v541 = vpop.f32.mrf.mxu0
        %v542 = vadd.f32 %v369, %v541
        %543 = vmatmul.f32.gmra.mxu0 %v357
        %v544 = vpop.f32.mrf.mxu0
        %v545 = vadd.f32 %v369, %v544
        %546 = vmatmul.f32.gmra.mxu0 %v358
        %v547 = vpop.f32.mrf.mxu0
        %v548 = vadd.f32 %v369, %v547
        %549 = vmatmul.f32.gmra.mxu0 %v359
        %v550 = vpop.f32.mrf.mxu0
        %v551 = vadd.f32 %v369, %v550
        %552 = vmatmul.f32.gmra.mxu0 %v360
        %v553 = vpop.f32.mrf.mxu0
        %v554 = vadd.f32 %v369, %v553
        %555 = vmatmul.f32.gmra.mxu0 %v361
        %v556 = vpop.f32.mrf.mxu0
        %v557 = vadd.f32 %v369, %v556
        %558 = vmatmul.f32.gmra.mxu0 %v362
        %v559 = vpop.f32.mrf.mxu0
        %v560 = vadd.f32 %v369, %v559
        %561 = vmatmul.f32.gmra.mxu0 %v363
        %v562 = vpop.f32.mrf.mxu0
        %v563 = vadd.f32 %v369, %v562
        %564 = vmatmul.f32.gmra.mxu0 %v364
        %v565 = vpop.f32.mrf.mxu0
        %v566 = vadd.f32 %v369, %v565
        %567 = vdwg.mxu0
        %v568 = vld [vmem:[%s300] sm:$0x1]
        %vm569 = vcmask 261120
        %v571 = vsel %vm569, %v391, 0
        %v574 = vsel %vm569, %v394, 0
        %v577 = vsel %vm569, %v397, 0
        %v580 = vsel %vm569, %v400, 0
        %v583 = vsel %vm569, %v403, 0
        %v586 = vsel %vm569, %v406, 0
        %v589 = vsel %vm569, %v409, 0
        %v592 = vsel %vm569, %v412, 0
        %v595 = vsel %vm569, %v415, 0
        %v598 = vsel %vm569, %v418, 0
        %v601 = vsel %vm569, %v421, 0
        %v604 = vsel %vm569, %v424, 0
        %v607 = vsel %vm569, %v427, 0
        %v610 = vsel %vm569, %v430, 0
        %v613 = vsel %vm569, %v433, 0
        %v616 = vsel %vm569, %v436, 0
        %v619 = vsel %vm569, %v456, 0
        %v622 = vsel %vm569, %v459, 0
        %v625 = vsel %vm569, %v462, 0
        %v628 = vsel %vm569, %v465, 0
        %v631 = vsel %vm569, %v468, 0
        %v634 = vsel %vm569, %v471, 0
        %v637 = vsel %vm569, %v474, 0
        %v640 = vsel %vm569, %v477, 0
        %v643 = vsel %vm569, %v480, 0
        %v646 = vsel %vm569, %v483, 0
        %v649 = vsel %vm569, %v486, 0
        %v652 = vsel %vm569, %v489, 0
        %v655 = vsel %vm569, %v492, 0
        %v658 = vsel %vm569, %v495, 0
        %v661 = vsel %vm569, %v498, 0
        %v664 = vsel %vm569, %v501, 0
        %666 = vmatpush.xpose.msra.mxu0 %v664
        %667 = vmatpush.xpose.msra.mxu0 %v661
        %668 = vmatpush.xpose.msra.mxu0 %v658
        %669 = vmatpush.xpose.msra.mxu0 %v655
        %670 = vmatpush.xpose.msra.mxu0 %v652
        %671 = vmatpush.xpose.msra.mxu0 %v649
        %672 = vmatpush.xpose.msra.mxu0 %v646
        %673 = vmatpush.xpose.msra.mxu0 %v643
        %674 = vmatpush.xpose.msra.mxu0 %v640
        %675 = vmatpush.xpose.msra.mxu0 %v637
        %676 = vmatpush.xpose.msra.mxu0 %v634
        %677 = vmatpush.xpose.msra.mxu0 %v631
        %678 = vmatpush.xpose.msra.mxu0 %v628
        %679 = vmatpush.xpose.msra.mxu0 %v625
        %680 = vmatpush.xpose.msra.mxu0 %v622
        %681 = vmatpush.xpose.msra.mxu0 %v619
        %682 = vmatmul.f32.gmra.mxu0 %v571
        %v683 = vpop.f32.mrf.mxu0
        %v684 = vadd.f32 0.0, %v683
        %685 = vmatmul.f32.gmra.mxu0 %v574
        %v686 = vpop.f32.mrf.mxu0
        %v687 = vadd.f32 0.0, %v686
        %688 = vmatmul.f32.gmra.mxu0 %v577
        %v689 = vpop.f32.mrf.mxu0
        %v690 = vadd.f32 0.0, %v689
        %691 = vmatmul.f32.gmra.mxu0 %v580
        %v692 = vpop.f32.mrf.mxu0
        %v693 = vadd.f32 0.0, %v692
        %694 = vmatmul.f32.gmra.mxu0 %v583
        %v695 = vpop.f32.mrf.mxu0
        %v696 = vadd.f32 0.0, %v695
        %697 = vmatmul.f32.gmra.mxu0 %v586
        %v698 = vpop.f32.mrf.mxu0
        %v699 = vadd.f32 0.0, %v698
        %700 = vmatmul.f32.gmra.mxu0 %v589
        %v701 = vpop.f32.mrf.mxu0
        %v702 = vadd.f32 0.0, %v701
        %703 = vmatmul.f32.gmra.mxu0 %v592
        %v704 = vpop.f32.mrf.mxu0
        %v705 = vadd.f32 0.0, %v704
        %706 = vmatmul.f32.gmra.mxu0 %v595
        %v707 = vpop.f32.mrf.mxu0
        %v708 = vadd.f32 0.0, %v707
        %709 = vmatmul.f32.gmra.mxu0 %v598
        %v710 = vpop.f32.mrf.mxu0
        %v711 = vadd.f32 0.0, %v710
        %712 = vmatmul.f32.gmra.mxu0 %v601
        %v713 = vpop.f32.mrf.mxu0
        %v714 = vadd.f32 0.0, %v713
        %715 = vmatmul.f32.gmra.mxu0 %v604
        %v716 = vpop.f32.mrf.mxu0
        %v717 = vadd.f32 0.0, %v716
        %718 = vmatmul.f32.gmra.mxu0 %v607
        %v719 = vpop.f32.mrf.mxu0
        %v720 = vadd.f32 0.0, %v719
        %721 = vmatmul.f32.gmra.mxu0 %v610
        %v722 = vpop.f32.mrf.mxu0
        %v723 = vadd.f32 0.0, %v722
        %724 = vmatmul.f32.gmra.mxu0 %v613
        %v725 = vpop.f32.mrf.mxu0
        %v726 = vadd.f32 0.0, %v725
        %727 = vmatmul.f32.gmra.mxu0 %v616
        %v728 = vpop.f32.mrf.mxu0
        %v729 = vadd.f32 0.0, %v728
        %730 = vdwg.mxu0
        %v731 = vmul.f32 %v684, 0.17677669
        %v732 = vmul.f32 %v687, 0.17677669
        %v733 = vmul.f32 %v690, 0.17677669
        %v734 = vmul.f32 %v693, 0.17677669
        %v735 = vmul.f32 %v696, 0.17677669
        %v736 = vmul.f32 %v699, 0.17677669
        %v737 = vmul.f32 %v702, 0.17677669
        %v738 = vmul.f32 %v705, 0.17677669
        %v739 = vmul.f32 %v708, 0.17677669
        %v740 = vmul.f32 %v711, 0.17677669
        %v741 = vmul.f32 %v714, 0.17677669
        %v742 = vmul.f32 %v717, 0.17677669
        %v743 = vmul.f32 %v720, 0.17677669
        %v744 = vmul.f32 %v723, 0.17677669
        %v745 = vmul.f32 %v726, 0.17677669
        %v746 = vmul.f32 %v729, 0.17677669
        %v748 = vperm.slane %v568, 0
        %v750 = vadd.f32 %v731, %v748
        %v751 = vadd.f32 %v732, %v748
        %v752 = vadd.f32 %v733, %v748
        %v753 = vadd.f32 %v734, %v748
        %v754 = vadd.f32 %v735, %v748
        %v755 = vadd.f32 %v736, %v748
        %v756 = vadd.f32 %v737, %v748
        %v757 = vadd.f32 %v738, %v748
        %v758 = vadd.f32 %v739, %v748
        %v759 = vadd.f32 %v740, %v748
        %v760 = vadd.f32 %v741, %v748
        %v761 = vadd.f32 %v742, %v748
        %v762 = vadd.f32 %v743, %v748
        %v763 = vadd.f32 %v744, %v748
        %v764 = vadd.f32 %v745, %v748
        %v765 = vadd.f32 %v746, %v748
        %766 = vmax.xlane.f32.xlu0 %v750
        %v767 = vpop.xlane.xlu0 %766
        %768 = vmax.xlane.f32.xlu0 %v751
        %v769 = vpop.xlane.xlu0 %768
        %770 = vmax.xlane.f32.xlu0 %v752
        %v771 = vpop.xlane.xlu0 %770
        %772 = vmax.xlane.f32.xlu0 %v753
        %v773 = vpop.xlane.xlu0 %772
        %774 = vmax.xlane.f32.xlu0 %v754
        %v775 = vpop.xlane.xlu0 %774
        %776 = vmax.xlane.f32.xlu0 %v755
        %v777 = vpop.xlane.xlu0 %776
        %778 = vmax.xlane.f32.xlu0 %v756
        %v779 = vpop.xlane.xlu0 %778
        %780 = vmax.xlane.f32.xlu0 %v757
        %v781 = vpop.xlane.xlu0 %780
        %782 = vmax.xlane.f32.xlu0 %v758
        %v783 = vpop.xlane.xlu0 %782
        %784 = vmax.xlane.f32.xlu0 %v759
        %v785 = vpop.xlane.xlu0 %784
        %786 = vmax.xlane.f32.xlu0 %v760
        %v787 = vpop.xlane.xlu0 %786
        %788 = vmax.xlane.f32.xlu0 %v761
        %v789 = vpop.xlane.xlu0 %788
        %790 = vmax.xlane.f32.xlu0 %v762
        %v791 = vpop.xlane.xlu0 %790
        %792 = vmax.xlane.f32.xlu0 %v763
        %v793 = vpop.xlane.xlu0 %792
        %794 = vmax.xlane.f32.xlu0 %v764
        %v795 = vpop.xlane.xlu0 %794
        %796 = vmax.xlane.f32.xlu0 %v765
        %v797 = vpop.xlane.xlu0 %796
        %v798 = vsub.f32 %v750, %v767
        %v799 = vsub.f32 %v751, %v769
        %v800 = vsub.f32 %v752, %v771
        %v801 = vsub.f32 %v753, %v773
        %v802 = vsub.f32 %v754, %v775
        %v803 = vsub.f32 %v755, %v777
        %v804 = vsub.f32 %v756, %v779
        %v805 = vsub.f32 %v757, %v781
        %v806 = vsub.f32 %v758, %v783
        %v807 = vsub.f32 %v759, %v785
        %v808 = vsub.f32 %v760, %v787
        %v809 = vsub.f32 %v761, %v789
        %v810 = vsub.f32 %v762, %v791
        %v811 = vsub.f32 %v763, %v793
        %v812 = vsub.f32 %v764, %v795
        %v813 = vsub.f32 %v765, %v797
        %v814 = vmul.f32 %v798, 1.442695
        %v815 = vpow.pop %v814
        %v816 = vmul.f32 %v799, 1.442695
        %v817 = vpow.pop %v816
        %v818 = vmul.f32 %v800, 1.442695
        %v819 = vpow.pop %v818
        %v820 = vmul.f32 %v801, 1.442695
        %v821 = vpow.pop %v820
        %v822 = vmul.f32 %v802, 1.442695
        %v823 = vpow.pop %v822
        %v824 = vmul.f32 %v803, 1.442695
        %v825 = vpow.pop %v824
        %v826 = vmul.f32 %v804, 1.442695
        %v827 = vpow.pop %v826
        %v828 = vmul.f32 %v805, 1.442695
        %v829 = vpow.pop %v828
        %v830 = vmul.f32 %v806, 1.442695
        %v831 = vpow.pop %v830
        %v832 = vmul.f32 %v807, 1.442695
        %v833 = vpow.pop %v832
        %v834 = vmul.f32 %v808, 1.442695
        %v835 = vpow.pop %v834
        %v836 = vmul.f32 %v809, 1.442695
        %v837 = vpow.pop %v836
        %v838 = vmul.f32 %v810, 1.442695
        %v839 = vpow.pop %v838
        %v840 = vmul.f32 %v811, 1.442695
        %v841 = vpow.pop %v840
        %v842 = vmul.f32 %v812, 1.442695
        %v843 = vpow.pop %v842
        %v844 = vmul.f32 %v813, 1.442695
        %v845 = vpow.pop %v844
        %846 = vadd.xlane.f32.xlu0 %v815
        %v847 = vpop.xlane.xlu0 %846
        %848 = vadd.xlane.f32.xlu0 %v817
        %v849 = vpop.xlane.xlu0 %848
        %850 = vadd.xlane.f32.xlu0 %v819
        %v851 = vpop.xlane.xlu0 %850
        %852 = vadd.xlane.f32.xlu0 %v821
        %v853 = vpop.xlane.xlu0 %852
        %854 = vadd.xlane.f32.xlu0 %v823
        %v855 = vpop.xlane.xlu0 %854
        %856 = vadd.xlane.f32.xlu0 %v825
        %v857 = vpop.xlane.xlu0 %856
        %858 = vadd.xlane.f32.xlu0 %v827
        %v859 = vpop.xlane.xlu0 %858
        %860 = vadd.xlane.f32.xlu0 %v829
        %v861 = vpop.xlane.xlu0 %860
        %862 = vadd.xlane.f32.xlu0 %v831
        %v863 = vpop.xlane.xlu0 %862
        %864 = vadd.xlane.f32.xlu0 %v833
        %v865 = vpop.xlane.xlu0 %864
        %866 = vadd.xlane.f32.xlu0 %v835
        %v867 = vpop.xlane.xlu0 %866
        %868 = vadd.xlane.f32.xlu0 %v837
        %v869 = vpop.xlane.xlu0 %868
        %870 = vadd.xlane.f32.xlu0 %v839
        %v871 = vpop.xlane.xlu0 %870
        %872 = vadd.xlane.f32.xlu0 %v841
        %v873 = vpop.xlane.xlu0 %872
        %874 = vadd.xlane.f32.xlu0 %v843
        %v875 = vpop.xlane.xlu0 %874
        %876 = vadd.xlane.f32.xlu0 %v845
        %v877 = vpop.xlane.xlu0 %876
        %v878 = vrcp.pop %v847
        %v879 = vmul.f32 %v847, %v878
        %v880 = vsub.f32 1.0, %v879
        %v881 = vmul.f32 %v878, %v880
        %v882 = vadd.f32 %v878, %v881
        %vm883 = vweird.f32 %v847
        %vm884 = vweird.f32 %v878
        %vm885 = vmor %vm883, %vm884
        %v886 = vsel %vm885, %v878, %v882
        %v887 = vand.u32 2147483647, %v847
        %vm888 = vcmp.eq.f32.partialorder %v887, 8.507059e+37
        %v889 = vand.u32 %v847, 2147483648
        %v890 = vor.u32 1.1754944e-38, %v889
        %v891 = vsel %vm888, %v890, %v886
        %v892 = vrcp.pop %v849
        %v893 = vmul.f32 %v849, %v892
        %v894 = vsub.f32 1.0, %v893
        %v895 = vmul.f32 %v892, %v894
        %v896 = vadd.f32 %v892, %v895
        %vm897 = vweird.f32 %v849
        %vm898 = vweird.f32 %v892
        %vm899 = vmor %vm897, %vm898
        %v900 = vsel %vm899, %v892, %v896
        %v901 = vand.u32 2147483647, %v849
        %vm902 = vcmp.eq.f32.partialorder %v901, 8.507059e+37
        %v903 = vand.u32 %v849, 2147483648
        %v904 = vor.u32 1.1754944e-38, %v903
        %v905 = vsel %vm902, %v904, %v900
        %v906 = vrcp.pop %v851
        %v907 = vmul.f32 %v851, %v906
        %v908 = vsub.f32 1.0, %v907
        %v909 = vmul.f32 %v906, %v908
        %v910 = vadd.f32 %v906, %v909
        %vm911 = vweird.f32 %v851
        %vm912 = vweird.f32 %v906
        %vm913 = vmor %vm911, %vm912
        %v914 = vsel %vm913, %v906, %v910
        %v915 = vand.u32 2147483647, %v851
        %vm916 = vcmp.eq.f32.partialorder %v915, 8.507059e+37
        %v917 = vand.u32 %v851, 2147483648
        %v918 = vor.u32 1.1754944e-38, %v917
        %v919 = vsel %vm916, %v918, %v914
        %v920 = vrcp.pop %v853
        %v921 = vmul.f32 %v853, %v920
        %v922 = vsub.f32 1.0, %v921
        %v923 = vmul.f32 %v920, %v922
        %v924 = vadd.f32 %v920, %v923
        %vm925 = vweird.f32 %v853
        %vm926 = vweird.f32 %v920
        %vm927 = vmor %vm925, %vm926
        %v928 = vsel %vm927, %v920, %v924
        %v929 = vand.u32 2147483647, %v853
        %vm930 = vcmp.eq.f32.partialorder %v929, 8.507059e+37
        %v931 = vand.u32 %v853, 2147483648
        %v932 = vor.u32 1.1754944e-38, %v931
        %v933 = vsel %vm930, %v932, %v928
        %v934 = vrcp.pop %v855
        %v935 = vmul.f32 %v855, %v934
        %v936 = vsub.f32 1.0, %v935
        %v937 = vmul.f32 %v934, %v936
        %v938 = vadd.f32 %v934, %v937
        %vm939 = vweird.f32 %v855
        %vm940 = vweird.f32 %v934
        %vm941 = vmor %vm939, %vm940
        %v942 = vsel %vm941, %v934, %v938
        %v943 = vand.u32 2147483647, %v855
        %vm944 = vcmp.eq.f32.partialorder %v943, 8.507059e+37
        %v945 = vand.u32 %v855, 2147483648
        %v946 = vor.u32 1.1754944e-38, %v945
        %v947 = vsel %vm944, %v946, %v942
        %v948 = vrcp.pop %v857
        %v949 = vmul.f32 %v857, %v948
        %v950 = vsub.f32 1.0, %v949
        %v951 = vmul.f32 %v948, %v950
        %v952 = vadd.f32 %v948, %v951
        %vm953 = vweird.f32 %v857
        %vm954 = vweird.f32 %v948
        %vm955 = vmor %vm953, %vm954
        %v956 = vsel %vm955, %v948, %v952
        %v957 = vand.u32 2147483647, %v857
        %vm958 = vcmp.eq.f32.partialorder %v957, 8.507059e+37
        %v959 = vand.u32 %v857, 2147483648
        %v960 = vor.u32 1.1754944e-38, %v959
        %v961 = vsel %vm958, %v960, %v956
        %v962 = vrcp.pop %v859
        %v963 = vmul.f32 %v859, %v962
        %v964 = vsub.f32 1.0, %v963
        %v965 = vmul.f32 %v962, %v964
        %v966 = vadd.f32 %v962, %v965
        %vm967 = vweird.f32 %v859
        %vm968 = vweird.f32 %v962
        %vm969 = vmor %vm967, %vm968
        %v970 = vsel %vm969, %v962, %v966
        %v971 = vand.u32 2147483647, %v859
        %vm972 = vcmp.eq.f32.partialorder %v971, 8.507059e+37
        %v973 = vand.u32 %v859, 2147483648
        %v974 = vor.u32 1.1754944e-38, %v973
        %v975 = vsel %vm972, %v974, %v970
        %v976 = vrcp.pop %v861
        %v977 = vmul.f32 %v861, %v976
        %v978 = vsub.f32 1.0, %v977
        %v979 = vmul.f32 %v976, %v978
        %v980 = vadd.f32 %v976, %v979
        %vm981 = vweird.f32 %v861
        %vm982 = vweird.f32 %v976
        %vm983 = vmor %vm981, %vm982
        %v984 = vsel %vm983, %v976, %v980
        %v985 = vand.u32 2147483647, %v861
        %vm986 = vcmp.eq.f32.partialorder %v985, 8.507059e+37
        %v987 = vand.u32 %v861, 2147483648
        %v988 = vor.u32 1.1754944e-38, %v987
        %v989 = vsel %vm986, %v988, %v984
        %v990 = vrcp.pop %v863
        %v991 = vmul.f32 %v863, %v990
        %v992 = vsub.f32 1.0, %v991
        %v993 = vmul.f32 %v990, %v992
        %v994 = vadd.f32 %v990, %v993
        %vm995 = vweird.f32 %v863
        %vm996 = vweird.f32 %v990
        %vm997 = vmor %vm995, %vm996
        %v998 = vsel %vm997, %v990, %v994
        %v999 = vand.u32 2147483647, %v863
        %vm1000 = vcmp.eq.f32.partialorder %v999, 8.507059e+37
        %v1001 = vand.u32 %v863, 2147483648
        %v1002 = vor.u32 1.1754944e-38, %v1001
        %v1003 = vsel %vm1000, %v1002, %v998
        %v1004 = vrcp.pop %v865
        %v1005 = vmul.f32 %v865, %v1004
        %v1006 = vsub.f32 1.0, %v1005
        %v1007 = vmul.f32 %v1004, %v1006
        %v1008 = vadd.f32 %v1004, %v1007
        %vm1009 = vweird.f32 %v865
        %vm1010 = vweird.f32 %v1004
        %vm1011 = vmor %vm1009, %vm1010
        %v1012 = vsel %vm1011, %v1004, %v1008
        %v1013 = vand.u32 2147483647, %v865
        %vm1014 = vcmp.eq.f32.partialorder %v1013, 8.507059e+37
        %v1015 = vand.u32 %v865, 2147483648
        %v1016 = vor.u32 1.1754944e-38, %v1015
        %v1017 = vsel %vm1014, %v1016, %v1012
        %v1018 = vrcp.pop %v867
        %v1019 = vmul.f32 %v867, %v1018
        %v1020 = vsub.f32 1.0, %v1019
        %v1021 = vmul.f32 %v1018, %v1020
        %v1022 = vadd.f32 %v1018, %v1021
        %vm1023 = vweird.f32 %v867
        %vm1024 = vweird.f32 %v1018
        %vm1025 = vmor %vm1023, %vm1024
        %v1026 = vsel %vm1025, %v1018, %v1022
        %v1027 = vand.u32 2147483647, %v867
        %vm1028 = vcmp.eq.f32.partialorder %v1027, 8.507059e+37
        %v1029 = vand.u32 %v867, 2147483648
        %v1030 = vor.u32 1.1754944e-38, %v1029
        %v1031 = vsel %vm1028, %v1030, %v1026
        %v1032 = vrcp.pop %v869
        %v1033 = vmul.f32 %v869, %v1032
        %v1034 = vsub.f32 1.0, %v1033
        %v1035 = vmul.f32 %v1032, %v1034
        %v1036 = vadd.f32 %v1032, %v1035
        %vm1037 = vweird.f32 %v869
        %vm1038 = vweird.f32 %v1032
        %vm1039 = vmor %vm1037, %vm1038
        %v1040 = vsel %vm1039, %v1032, %v1036
        %v1041 = vand.u32 2147483647, %v869
        %vm1042 = vcmp.eq.f32.partialorder %v1041, 8.507059e+37
        %v1043 = vand.u32 %v869, 2147483648
        %v1044 = vor.u32 1.1754944e-38, %v1043
        %v1045 = vsel %vm1042, %v1044, %v1040
        %v1046 = vrcp.pop %v871
        %v1047 = vmul.f32 %v871, %v1046
        %v1048 = vsub.f32 1.0, %v1047
        %v1049 = vmul.f32 %v1046, %v1048
        %v1050 = vadd.f32 %v1046, %v1049
        %vm1051 = vweird.f32 %v871
        %vm1052 = vweird.f32 %v1046
        %vm1053 = vmor %vm1051, %vm1052
        %v1054 = vsel %vm1053, %v1046, %v1050
        %v1055 = vand.u32 2147483647, %v871
        %vm1056 = vcmp.eq.f32.partialorder %v1055, 8.507059e+37
        %v1057 = vand.u32 %v871, 2147483648
        %v1058 = vor.u32 1.1754944e-38, %v1057
        %v1059 = vsel %vm1056, %v1058, %v1054
        %v1060 = vrcp.pop %v873
        %v1061 = vmul.f32 %v873, %v1060
        %v1062 = vsub.f32 1.0, %v1061
        %v1063 = vmul.f32 %v1060, %v1062
        %v1064 = vadd.f32 %v1060, %v1063
        %vm1065 = vweird.f32 %v873
        %vm1066 = vweird.f32 %v1060
        %vm1067 = vmor %vm1065, %vm1066
        %v1068 = vsel %vm1067, %v1060, %v1064
        %v1069 = vand.u32 2147483647, %v873
        %vm1070 = vcmp.eq.f32.partialorder %v1069, 8.507059e+37
        %v1071 = vand.u32 %v873, 2147483648
        %v1072 = vor.u32 1.1754944e-38, %v1071
        %v1073 = vsel %vm1070, %v1072, %v1068
        %v1074 = vrcp.pop %v875
        %v1075 = vmul.f32 %v875, %v1074
        %v1076 = vsub.f32 1.0, %v1075
        %v1077 = vmul.f32 %v1074, %v1076
        %v1078 = vadd.f32 %v1074, %v1077
        %vm1079 = vweird.f32 %v875
        %vm1080 = vweird.f32 %v1074
        %vm1081 = vmor %vm1079, %vm1080
        %v1082 = vsel %vm1081, %v1074, %v1078
        %v1083 = vand.u32 2147483647, %v875
        %vm1084 = vcmp.eq.f32.partialorder %v1083, 8.507059e+37
        %v1085 = vand.u32 %v875, 2147483648
        %v1086 = vor.u32 1.1754944e-38, %v1085
        %v1087 = vsel %vm1084, %v1086, %v1082
        %v1088 = vrcp.pop %v877
        %v1089 = vmul.f32 %v877, %v1088
        %v1090 = vsub.f32 1.0, %v1089
        %v1091 = vmul.f32 %v1088, %v1090
        %v1092 = vadd.f32 %v1088, %v1091
        %vm1093 = vweird.f32 %v877
        %vm1094 = vweird.f32 %v1088
        %vm1095 = vmor %vm1093, %vm1094
        %v1096 = vsel %vm1095, %v1088, %v1092
        %v1097 = vand.u32 2147483647, %v877
        %vm1098 = vcmp.eq.f32.partialorder %v1097, 8.507059e+37
        %v1099 = vand.u32 %v877, 2147483648
        %v1100 = vor.u32 1.1754944e-38, %v1099
        %v1101 = vsel %vm1098, %v1100, %v1096
        %v1102 = vmul.f32 %v815, %v891
        %v1103 = vmul.f32 %v817, %v905
        %v1104 = vmul.f32 %v819, %v919
        %v1105 = vmul.f32 %v821, %v933
        %v1106 = vmul.f32 %v823, %v947
        %v1107 = vmul.f32 %v825, %v961
        %v1108 = vmul.f32 %v827, %v975
        %v1109 = vmul.f32 %v829, %v989
        %v1110 = vmul.f32 %v831, %v1003
        %v1111 = vmul.f32 %v833, %v1017
        %v1112 = vmul.f32 %v835, %v1031
        %v1113 = vmul.f32 %v837, %v1045
        %v1114 = vmul.f32 %v839, %v1059
        %v1115 = vmul.f32 %v841, %v1073
        %v1116 = vmul.f32 %v843, %v1087
        %v1117 = vmul.f32 %v845, %v1101
        %1118 = vst [vmem:[%s297] sm:$0xff] %v1102
        %1119 = vst [vmem:[%s297 + $0x8] sm:$0xff] %v1103
        %1120 = vst [vmem:[%s297 + $0x10] sm:$0xff] %v1104
        %1121 = vst [vmem:[%s297 + $0x18] sm:$0xff] %v1105
        %1122 = vst [vmem:[%s297 + $0x20] sm:$0xff] %v1106
        %1123 = vst [vmem:[%s297 + $0x28] sm:$0xff] %v1107
        %1124 = vst [vmem:[%s297 + $0x30] sm:$0xff] %v1108
        %1125 = vst [vmem:[%s297 + $0x38] sm:$0xff] %v1109
        %1126 = vst [vmem:[%s297 + $0x40] sm:$0xff] %v1110
        %1127 = vst [vmem:[%s297 + $0x48] sm:$0xff] %v1111
        %1128 = vst [vmem:[%s297 + $0x50] sm:$0xff] %v1112
        %1129 = vst [vmem:[%s297 + $0x58] sm:$0xff] %v1113
        %1130 = vst [vmem:[%s297 + $0x60] sm:$0xff] %v1114
        %1131 = vst [vmem:[%s297 + $0x68] sm:$0xff] %v1115
        %1132 = vst [vmem:[%s297 + $0x70] sm:$0xff] %v1116
        %1133 = vst [vmem:[%s297 + $0x78] sm:$0xff] %v1117
        %1134 = vmatpush.msra.mxu0 %v566
        %1135 = vmatpush.msra.mxu0 %v563
        %1136 = vmatpush.msra.mxu0 %v560
        %1137 = vmatpush.msra.mxu0 %v557
        %1138 = vmatpush.msra.mxu0 %v554
        %1139 = vmatpush.msra.mxu0 %v551
        %1140 = vmatpush.msra.mxu0 %v548
        %1141 = vmatpush.msra.mxu0 %v545
        %1142 = vmatpush.msra.mxu0 %v542
        %1143 = vmatpush.msra.mxu0 %v539
        %1144 = vmatpush.msra.mxu0 %v536
        %1145 = vmatpush.msra.mxu0 %v533
        %1146 = vmatpush.msra.mxu0 %v530
        %1147 = vmatpush.msra.mxu0 %v527
        %1148 = vmatpush.msra.mxu0 %v524
        %1149 = vmatpush.msra.mxu0 %v521
        %1150 = vmatmul.f32.gmra.mxu0 %v1102
        %v1151 = vpop.f32.mrf.mxu0
        %v1152 = vadd.f32 0.0, %v1151
        %1153 = vmatmul.f32.gmra.mxu0 %v1103
        %v1154 = vpop.f32.mrf.mxu0
        %v1155 = vadd.f32 0.0, %v1154
        %1156 = vmatmul.f32.gmra.mxu0 %v1104
        %v1157 = vpop.f32.mrf.mxu0
        %v1158 = vadd.f32 0.0, %v1157
        %1159 = vmatmul.f32.gmra.mxu0 %v1105
        %v1160 = vpop.f32.mrf.mxu0
        %v1161 = vadd.f32 0.0, %v1160
        %1162 = vmatmul.f32.gmra.mxu0 %v1106
        %v1163 = vpop.f32.mrf.mxu0
        %v1164 = vadd.f32 0.0, %v1163
        %1165 = vmatmul.f32.gmra.mxu0 %v1107
        %v1166 = vpop.f32.mrf.mxu0
        %v1167 = vadd.f32 0.0, %v1166
        %1168 = vmatmul.f32.gmra.mxu0 %v1108
        %v1169 = vpop.f32.mrf.mxu0
        %v1170 = vadd.f32 0.0, %v1169
        %1171 = vmatmul.f32.gmra.mxu0 %v1109
        %v1172 = vpop.f32.mrf.mxu0
        %v1173 = vadd.f32 0.0, %v1172
        %1174 = vmatmul.f32.gmra.mxu0 %v1110
        %v1175 = vpop.f32.mrf.mxu0
        %v1176 = vadd.f32 0.0, %v1175
        %1177 = vmatmul.f32.gmra.mxu0 %v1111
        %v1178 = vpop.f32.mrf.mxu0
        %v1179 = vadd.f32 0.0, %v1178
        %1180 = vmatmul.f32.gmra.mxu0 %v1112
        %v1181 = vpop.f32.mrf.mxu0
        %v1182 = vadd.f32 0.0, %v1181
        %1183 = vmatmul.f32.gmra.mxu0 %v1113
        %v1184 = vpop.f32.mrf.mxu0
        %v1185 = vadd.f32 0.0, %v1184
        %1186 = vmatmul.f32.gmra.mxu0 %v1114
        %v1187 = vpop.f32.mrf.mxu0
        %v1188 = vadd.f32 0.0, %v1187
        %1189 = vmatmul.f32.gmra.mxu0 %v1115
        %v1190 = vpop.f32.mrf.mxu0
        %v1191 = vadd.f32 0.0, %v1190
        %1192 = vmatmul.f32.gmra.mxu0 %v1116
        %v1193 = vpop.f32.mrf.mxu0
        %v1194 = vadd.f32 0.0, %v1193
        %1195 = vmatmul.f32.gmra.mxu0 %v1117
        %v1196 = vpop.f32.mrf.mxu0
        %v1197 = vadd.f32 0.0, %v1196
        %1198 = vdwg.mxu0
        %1199 = vrot.lane.b32.xlu0 %v391, 96
        %v1200 = vpop.permute.xlu0 %1199
        %1201 = vrot.lane.b32.xlu0 %v394, 96
        %v1202 = vpop.permute.xlu0 %1201
        %1203 = vrot.lane.b32.xlu0 %v397, 96
        %v1204 = vpop.permute.xlu0 %1203
        %1205 = vrot.lane.b32.xlu0 %v400, 96
        %v1206 = vpop.permute.xlu0 %1205
        %1207 = vrot.lane.b32.xlu0 %v403, 96
        %v1208 = vpop.permute.xlu0 %1207
        %1209 = vrot.lane.b32.xlu0 %v406, 96
        %v1210 = vpop.permute.xlu0 %1209
        %1211 = vrot.lane.b32.xlu0 %v409, 96
        %v1212 = vpop.permute.xlu0 %1211
        %1213 = vrot.lane.b32.xlu0 %v412, 96
        %v1214 = vpop.permute.xlu0 %1213
        %1215 = vrot.lane.b32.xlu0 %v415, 96
        %v1216 = vpop.permute.xlu0 %1215
        %1217 = vrot.lane.b32.xlu0 %v418, 96
        %v1218 = vpop.permute.xlu0 %1217
        %1219 = vrot.lane.b32.xlu0 %v421, 96
        %v1220 = vpop.permute.xlu0 %1219
        %1221 = vrot.lane.b32.xlu0 %v424, 96
        %v1222 = vpop.permute.xlu0 %1221
        %1223 = vrot.lane.b32.xlu0 %v427, 96
        %v1224 = vpop.permute.xlu0 %1223
        %1225 = vrot.lane.b32.xlu0 %v430, 96
        %v1226 = vpop.permute.xlu0 %1225
        %1227 = vrot.lane.b32.xlu0 %v433, 96
        %v1228 = vpop.permute.xlu0 %1227
        %1229 = vrot.lane.b32.xlu0 %v436, 96
        %v1230 = vpop.permute.xlu0 %1229
        %1231 = vrot.lane.b32.xlu0 %v456, 96
        %v1232 = vpop.permute.xlu0 %1231
        %1233 = vrot.lane.b32.xlu0 %v459, 96
        %v1234 = vpop.permute.xlu0 %1233
        %1235 = vrot.lane.b32.xlu0 %v462, 96
        %v1236 = vpop.permute.xlu0 %1235
        %1237 = vrot.lane.b32.xlu0 %v465, 96
        %v1238 = vpop.permute.xlu0 %1237
        %1239 = vrot.lane.b32.xlu0 %v468, 96
        %v1240 = vpop.permute.xlu0 %1239
        %1241 = vrot.lane.b32.xlu0 %v471, 96
        %v1242 = vpop.permute.xlu0 %1241
        %1243 = vrot.lane.b32.xlu0 %v474, 96
        %v1244 = vpop.permute.xlu0 %1243
        %1245 = vrot.lane.b32.xlu0 %v477, 96
        %v1246 = vpop.permute.xlu0 %1245
        %1247 = vrot.lane.b32.xlu0 %v480, 96
        %v1248 = vpop.permute.xlu0 %1247
        %1249 = vrot.lane.b32.xlu0 %v483, 96
        %v1250 = vpop.permute.xlu0 %1249
        %1251 = vrot.lane.b32.xlu0 %v486, 96
        %v1252 = vpop.permute.xlu0 %1251
        %1253 = vrot.lane.b32.xlu0 %v489, 96
        %v1254 = vpop.permute.xlu0 %1253
        %1255 = vrot.lane.b32.xlu0 %v492, 96
        %v1256 = vpop.permute.xlu0 %1255
        %1257 = vrot.lane.b32.xlu0 %v495, 96
        %v1258 = vpop.permute.xlu0 %1257
        %1259 = vrot.lane.b32.xlu0 %v498, 96
        %v1260 = vpop.permute.xlu0 %1259
        %1261 = vrot.lane.b32.xlu0 %v501, 96
        %v1262 = vpop.permute.xlu0 %1261
        %v1263 = vsel %vm569, %v1200, 0
        %v1265 = vsel %vm569, %v1202, 0
        %v1267 = vsel %vm569, %v1204, 0
        %v1269 = vsel %vm569, %v1206, 0
        %v1271 = vsel %vm569, %v1208, 0
        %v1273 = vsel %vm569, %v1210, 0
        %v1275 = vsel %vm569, %v1212, 0
        %v1277 = vsel %vm569, %v1214, 0
        %v1279 = vsel %vm569, %v1216, 0
        %v1281 = vsel %vm569, %v1218, 0
        %v1283 = vsel %vm569, %v1220, 0
        %v1285 = vsel %vm569, %v1222, 0
        %v1287 = vsel %vm569, %v1224, 0
        %v1289 = vsel %vm569, %v1226, 0
        %v1291 = vsel %vm569, %v1228, 0
        %v1293 = vsel %vm569, %v1230, 0
        %v1295 = vsel %vm569, %v1232, 0
        %v1297 = vsel %vm569, %v1234, 0
        %v1299 = vsel %vm569, %v1236, 0
        %v1301 = vsel %vm569, %v1238, 0
        %v1303 = vsel %vm569, %v1240, 0
        %v1305 = vsel %vm569, %v1242, 0
        %v1307 = vsel %vm569, %v1244, 0
        %v1309 = vsel %vm569, %v1246, 0
        %v1311 = vsel %vm569, %v1248, 0
        %v1313 = vsel %vm569, %v1250, 0
        %v1315 = vsel %vm569, %v1252, 0
        %v1317 = vsel %vm569, %v1254, 0
        %v1319 = vsel %vm569, %v1256, 0
        %v1321 = vsel %vm569, %v1258, 0
        %v1323 = vsel %vm569, %v1260, 0
        %v1325 = vsel %vm569, %v1262, 0
        %1327 = vmatpush.xpose.msra.mxu0 %v1325
        %1328 = vmatpush.xpose.msra.mxu0 %v1323
        %1329 = vmatpush.xpose.msra.mxu0 %v1321
        %1330 = vmatpush.xpose.msra.mxu0 %v1319
        %1331 = vmatpush.xpose.msra.mxu0 %v1317
        %1332 = vmatpush.xpose.msra.mxu0 %v1315
        %1333 = vmatpush.xpose.msra.mxu0 %v1313
        %1334 = vmatpush.xpose.msra.mxu0 %v1311
        %1335 = vmatpush.xpose.msra.mxu0 %v1309
        %1336 = vmatpush.xpose.msra.mxu0 %v1307
        %1337 = vmatpush.xpose.msra.mxu0 %v1305
        %1338 = vmatpush.xpose.msra.mxu0 %v1303
        %1339 = vmatpush.xpose.msra.mxu0 %v1301
        %1340 = vmatpush.xpose.msra.mxu0 %v1299
        %1341 = vmatpush.xpose.msra.mxu0 %v1297
        %1342 = vmatpush.xpose.msra.mxu0 %v1295
        %1343 = vmatmul.f32.gmra.mxu0 %v1263
        %v1344 = vpop.f32.mrf.mxu0
        %v1345 = vadd.f32 0.0, %v1344
        %1346 = vmatmul.f32.gmra.mxu0 %v1265
        %v1347 = vpop.f32.mrf.mxu0
        %v1348 = vadd.f32 0.0, %v1347
        %1349 = vmatmul.f32.gmra.mxu0 %v1267
        %v1350 = vpop.f32.mrf.mxu0
        %v1351 = vadd.f32 0.0, %v1350
        %1352 = vmatmul.f32.gmra.mxu0 %v1269
        %v1353 = vpop.f32.mrf.mxu0
        %v1354 = vadd.f32 0.0, %v1353
        %1355 = vmatmul.f32.gmra.mxu0 %v1271
        %v1356 = vpop.f32.mrf.mxu0
        %v1357 = vadd.f32 0.0, %v1356
        %1358 = vmatmul.f32.gmra.mxu0 %v1273
        %v1359 = vpop.f32.mrf.mxu0
        %v1360 = vadd.f32 0.0, %v1359
        %1361 = vmatmul.f32.gmra.mxu0 %v1275
        %v1362 = vpop.f32.mrf.mxu0
        %v1363 = vadd.f32 0.0, %v1362
        %1364 = vmatmul.f32.gmra.mxu0 %v1277
        %v1365 = vpop.f32.mrf.mxu0
        %v1366 = vadd.f32 0.0, %v1365
        %1367 = vmatmul.f32.gmra.mxu0 %v1279
        %v1368 = vpop.f32.mrf.mxu0
        %v1369 = vadd.f32 0.0, %v1368
        %1370 = vmatmul.f32.gmra.mxu0 %v1281
        %v1371 = vpop.f32.mrf.mxu0
        %v1372 = vadd.f32 0.0, %v1371
        %1373 = vmatmul.f32.gmra.mxu0 %v1283
        %v1374 = vpop.f32.mrf.mxu0
        %v1375 = vadd.f32 0.0, %v1374
        %1376 = vmatmul.f32.gmra.mxu0 %v1285
        %v1377 = vpop.f32.mrf.mxu0
        %v1378 = vadd.f32 0.0, %v1377
        %1379 = vmatmul.f32.gmra.mxu0 %v1287
        %v1380 = vpop.f32.mrf.mxu0
        %v1381 = vadd.f32 0.0, %v1380
        %1382 = vmatmul.f32.gmra.mxu0 %v1289
        %v1383 = vpop.f32.mrf.mxu0
        %v1384 = vadd.f32 0.0, %v1383
        %1385 = vmatmul.f32.gmra.mxu0 %v1291
        %v1386 = vpop.f32.mrf.mxu0
        %v1387 = vadd.f32 0.0, %v1386
        %1388 = vmatmul.f32.gmra.mxu0 %v1293
        %v1389 = vpop.f32.mrf.mxu0
        %v1390 = vadd.f32 0.0, %v1389
        %1391 = vdwg.mxu0
        %v1392 = vmul.f32 %v1345, 0.17677669
        %v1393 = vmul.f32 %v1348, 0.17677669
        %v1394 = vmul.f32 %v1351, 0.17677669
        %v1395 = vmul.f32 %v1354, 0.17677669
        %v1396 = vmul.f32 %v1357, 0.17677669
        %v1397 = vmul.f32 %v1360, 0.17677669
        %v1398 = vmul.f32 %v1363, 0.17677669
        %v1399 = vmul.f32 %v1366, 0.17677669
        %v1400 = vmul.f32 %v1369, 0.17677669
        %v1401 = vmul.f32 %v1372, 0.17677669
        %v1402 = vmul.f32 %v1375, 0.17677669
        %v1403 = vmul.f32 %v1378, 0.17677669
        %v1404 = vmul.f32 %v1381, 0.17677669
        %v1405 = vmul.f32 %v1384, 0.17677669
        %v1406 = vmul.f32 %v1387, 0.17677669
        %v1407 = vmul.f32 %v1390, 0.17677669
        %v1408 = vadd.f32 %v1392, %v748
        %v1409 = vadd.f32 %v1393, %v748
        %v1410 = vadd.f32 %v1394, %v748
        %v1411 = vadd.f32 %v1395, %v748
        %v1412 = vadd.f32 %v1396, %v748
        %v1413 = vadd.f32 %v1397, %v748
        %v1414 = vadd.f32 %v1398, %v748
        %v1415 = vadd.f32 %v1399, %v748
        %v1416 = vadd.f32 %v1400, %v748
        %v1417 = vadd.f32 %v1401, %v748
        %v1418 = vadd.f32 %v1402, %v748
        %v1419 = vadd.f32 %v1403, %v748
        %v1420 = vadd.f32 %v1404, %v748
        %v1421 = vadd.f32 %v1405, %v748
        %v1422 = vadd.f32 %v1406, %v748
        %v1423 = vadd.f32 %v1407, %v748
        %1424 = vmax.xlane.f32.xlu0 %v1408
        %v1425 = vpop.xlane.xlu0 %1424
        %1426 = vmax.xlane.f32.xlu0 %v1409
        %v1427 = vpop.xlane.xlu0 %1426
        %1428 = vmax.xlane.f32.xlu0 %v1410
        %v1429 = vpop.xlane.xlu0 %1428
        %1430 = vmax.xlane.f32.xlu0 %v1411
        %v1431 = vpop.xlane.xlu0 %1430
        %1432 = vmax.xlane.f32.xlu0 %v1412
        %v1433 = vpop.xlane.xlu0 %1432
        %1434 = vmax.xlane.f32.xlu0 %v1413
        %v1435 = vpop.xlane.xlu0 %1434
        %1436 = vmax.xlane.f32.xlu0 %v1414
        %v1437 = vpop.xlane.xlu0 %1436
        %1438 = vmax.xlane.f32.xlu0 %v1415
        %v1439 = vpop.xlane.xlu0 %1438
        %1440 = vmax.xlane.f32.xlu0 %v1416
        %v1441 = vpop.xlane.xlu0 %1440
        %1442 = vmax.xlane.f32.xlu0 %v1417
        %v1443 = vpop.xlane.xlu0 %1442
        %1444 = vmax.xlane.f32.xlu0 %v1418
        %v1445 = vpop.xlane.xlu0 %1444
        %1446 = vmax.xlane.f32.xlu0 %v1419
        %v1447 = vpop.xlane.xlu0 %1446
        %1448 = vmax.xlane.f32.xlu0 %v1420
        %v1449 = vpop.xlane.xlu0 %1448
        %1450 = vmax.xlane.f32.xlu0 %v1421
        %v1451 = vpop.xlane.xlu0 %1450
        %1452 = vmax.xlane.f32.xlu0 %v1422
        %v1453 = vpop.xlane.xlu0 %1452
        %1454 = vmax.xlane.f32.xlu0 %v1423
        %v1455 = vpop.xlane.xlu0 %1454
        %v1456 = vsub.f32 %v1408, %v1425
        %v1457 = vsub.f32 %v1409, %v1427
        %v1458 = vsub.f32 %v1410, %v1429
        %v1459 = vsub.f32 %v1411, %v1431
        %v1460 = vsub.f32 %v1412, %v1433
        %v1461 = vsub.f32 %v1413, %v1435
        %v1462 = vsub.f32 %v1414, %v1437
        %v1463 = vsub.f32 %v1415, %v1439
        %v1464 = vsub.f32 %v1416, %v1441
        %v1465 = vsub.f32 %v1417, %v1443
        %v1466 = vsub.f32 %v1418, %v1445
        %v1467 = vsub.f32 %v1419, %v1447
        %v1468 = vsub.f32 %v1420, %v1449
        %v1469 = vsub.f32 %v1421, %v1451
        %v1470 = vsub.f32 %v1422, %v1453
        %v1471 = vsub.f32 %v1423, %v1455
        %v1472 = vmul.f32 %v1456, 1.442695
        %v1473 = vpow.pop %v1472
        %v1474 = vmul.f32 %v1457, 1.442695
        %v1475 = vpow.pop %v1474
        %v1476 = vmul.f32 %v1458, 1.442695
        %v1477 = vpow.pop %v1476
        %v1478 = vmul.f32 %v1459, 1.442695
        %v1479 = vpow.pop %v1478
        %v1480 = vmul.f32 %v1460, 1.442695
        %v1481 = vpow.pop %v1480
        %v1482 = vmul.f32 %v1461, 1.442695
        %v1483 = vpow.pop %v1482
        %v1484 = vmul.f32 %v1462, 1.442695
        %v1485 = vpow.pop %v1484
        %v1486 = vmul.f32 %v1463, 1.442695
        %v1487 = vpow.pop %v1486
        %v1488 = vmul.f32 %v1464, 1.442695
        %v1489 = vpow.pop %v1488
        %v1490 = vmul.f32 %v1465, 1.442695
        %v1491 = vpow.pop %v1490
        %v1492 = vmul.f32 %v1466, 1.442695
        %v1493 = vpow.pop %v1492
        %v1494 = vmul.f32 %v1467, 1.442695
        %v1495 = vpow.pop %v1494
        %v1496 = vmul.f32 %v1468, 1.442695
        %v1497 = vpow.pop %v1496
        %v1498 = vmul.f32 %v1469, 1.442695
        %v1499 = vpow.pop %v1498
        %v1500 = vmul.f32 %v1470, 1.442695
        %v1501 = vpow.pop %v1500
        %v1502 = vmul.f32 %v1471, 1.442695
        %v1503 = vpow.pop %v1502
        %1504 = vadd.xlane.f32.xlu0 %v1473
        %v1505 = vpop.xlane.xlu0 %1504
        %1506 = vadd.xlane.f32.xlu0 %v1475
        %v1507 = vpop.xlane.xlu0 %1506
        %1508 = vadd.xlane.f32.xlu0 %v1477
        %v1509 = vpop.xlane.xlu0 %1508
        %1510 = vadd.xlane.f32.xlu0 %v1479
        %v1511 = vpop.xlane.xlu0 %1510
        %1512 = vadd.xlane.f32.xlu0 %v1481
        %v1513 = vpop.xlane.xlu0 %1512
        %1514 = vadd.xlane.f32.xlu0 %v1483
        %v1515 = vpop.xlane.xlu0 %1514
        %1516 = vadd.xlane.f32.xlu0 %v1485
        %v1517 = vpop.xlane.xlu0 %1516
        %1518 = vadd.xlane.f32.xlu0 %v1487
        %v1519 = vpop.xlane.xlu0 %1518
        %1520 = vadd.xlane.f32.xlu0 %v1489
        %v1521 = vpop.xlane.xlu0 %1520
        %1522 = vadd.xlane.f32.xlu0 %v1491
        %v1523 = vpop.xlane.xlu0 %1522
        %1524 = vadd.xlane.f32.xlu0 %v1493
        %v1525 = vpop.xlane.xlu0 %1524
        %1526 = vadd.xlane.f32.xlu0 %v1495
        %v1527 = vpop.xlane.xlu0 %1526
        %1528 = vadd.xlane.f32.xlu0 %v1497
        %v1529 = vpop.xlane.xlu0 %1528
        %1530 = vadd.xlane.f32.xlu0 %v1499
        %v1531 = vpop.xlane.xlu0 %1530
        %1532 = vadd.xlane.f32.xlu0 %v1501
        %v1533 = vpop.xlane.xlu0 %1532
        %1534 = vadd.xlane.f32.xlu0 %v1503
        %v1535 = vpop.xlane.xlu0 %1534
        %v1536 = vrcp.pop %v1505
        %v1537 = vmul.f32 %v1505, %v1536
        %v1538 = vsub.f32 1.0, %v1537
        %v1539 = vmul.f32 %v1536, %v1538
        %v1540 = vadd.f32 %v1536, %v1539
        %vm1541 = vweird.f32 %v1505
        %vm1542 = vweird.f32 %v1536
        %vm1543 = vmor %vm1541, %vm1542
        %v1544 = vsel %vm1543, %v1536, %v1540
        %v1545 = vand.u32 2147483647, %v1505
        %vm1546 = vcmp.eq.f32.partialorder %v1545, 8.507059e+37
        %v1547 = vand.u32 %v1505, 2147483648
        %v1548 = vor.u32 1.1754944e-38, %v1547
        %v1549 = vsel %vm1546, %v1548, %v1544
        %v1550 = vrcp.pop %v1507
        %v1551 = vmul.f32 %v1507, %v1550
        %v1552 = vsub.f32 1.0, %v1551
        %v1553 = vmul.f32 %v1550, %v1552
        %v1554 = vadd.f32 %v1550, %v1553
        %vm1555 = vweird.f32 %v1507
        %vm1556 = vweird.f32 %v1550
        %vm1557 = vmor %vm1555, %vm1556
        %v1558 = vsel %vm1557, %v1550, %v1554
        %v1559 = vand.u32 2147483647, %v1507
        %vm1560 = vcmp.eq.f32.partialorder %v1559, 8.507059e+37
        %v1561 = vand.u32 %v1507, 2147483648
        %v1562 = vor.u32 1.1754944e-38, %v1561
        %v1563 = vsel %vm1560, %v1562, %v1558
        %v1564 = vrcp.pop %v1509
        %v1565 = vmul.f32 %v1509, %v1564
        %v1566 = vsub.f32 1.0, %v1565
        %v1567 = vmul.f32 %v1564, %v1566
        %v1568 = vadd.f32 %v1564, %v1567
        %vm1569 = vweird.f32 %v1509
        %vm1570 = vweird.f32 %v1564
        %vm1571 = vmor %vm1569, %vm1570
        %v1572 = vsel %vm1571, %v1564, %v1568
        %v1573 = vand.u32 2147483647, %v1509
        %vm1574 = vcmp.eq.f32.partialorder %v1573, 8.507059e+37
        %v1575 = vand.u32 %v1509, 2147483648
        %v1576 = vor.u32 1.1754944e-38, %v1575
        %v1577 = vsel %vm1574, %v1576, %v1572
        %v1578 = vrcp.pop %v1511
        %v1579 = vmul.f32 %v1511, %v1578
        %v1580 = vsub.f32 1.0, %v1579
        %v1581 = vmul.f32 %v1578, %v1580
        %v1582 = vadd.f32 %v1578, %v1581
        %vm1583 = vweird.f32 %v1511
        %vm1584 = vweird.f32 %v1578
        %vm1585 = vmor %vm1583, %vm1584
        %v1586 = vsel %vm1585, %v1578, %v1582
        %v1587 = vand.u32 2147483647, %v1511
        %vm1588 = vcmp.eq.f32.partialorder %v1587, 8.507059e+37
        %v1589 = vand.u32 %v1511, 2147483648
        %v1590 = vor.u32 1.1754944e-38, %v1589
        %v1591 = vsel %vm1588, %v1590, %v1586
        %v1592 = vrcp.pop %v1513
        %v1593 = vmul.f32 %v1513, %v1592
        %v1594 = vsub.f32 1.0, %v1593
        %v1595 = vmul.f32 %v1592, %v1594
        %v1596 = vadd.f32 %v1592, %v1595
        %vm1597 = vweird.f32 %v1513
        %vm1598 = vweird.f32 %v1592
        %vm1599 = vmor %vm1597, %vm1598
        %v1600 = vsel %vm1599, %v1592, %v1596
        %v1601 = vand.u32 2147483647, %v1513
        %vm1602 = vcmp.eq.f32.partialorder %v1601, 8.507059e+37
        %v1603 = vand.u32 %v1513, 2147483648
        %v1604 = vor.u32 1.1754944e-38, %v1603
        %v1605 = vsel %vm1602, %v1604, %v1600
        %v1606 = vrcp.pop %v1515
        %v1607 = vmul.f32 %v1515, %v1606
        %v1608 = vsub.f32 1.0, %v1607
        %v1609 = vmul.f32 %v1606, %v1608
        %v1610 = vadd.f32 %v1606, %v1609
        %vm1611 = vweird.f32 %v1515
        %vm1612 = vweird.f32 %v1606
        %vm1613 = vmor %vm1611, %vm1612
        %v1614 = vsel %vm1613, %v1606, %v1610
        %v1615 = vand.u32 2147483647, %v1515
        %vm1616 = vcmp.eq.f32.partialorder %v1615, 8.507059e+37
        %v1617 = vand.u32 %v1515, 2147483648
        %v1618 = vor.u32 1.1754944e-38, %v1617
        %v1619 = vsel %vm1616, %v1618, %v1614
        %v1620 = vrcp.pop %v1517
        %v1621 = vmul.f32 %v1517, %v1620
        %v1622 = vsub.f32 1.0, %v1621
        %v1623 = vmul.f32 %v1620, %v1622
        %v1624 = vadd.f32 %v1620, %v1623
        %vm1625 = vweird.f32 %v1517
        %vm1626 = vweird.f32 %v1620
        %vm1627 = vmor %vm1625, %vm1626
        %v1628 = vsel %vm1627, %v1620, %v1624
        %v1629 = vand.u32 2147483647, %v1517
        %vm1630 = vcmp.eq.f32.partialorder %v1629, 8.507059e+37
        %v1631 = vand.u32 %v1517, 2147483648
        %v1632 = vor.u32 1.1754944e-38, %v1631
        %v1633 = vsel %vm1630, %v1632, %v1628
        %v1634 = vrcp.pop %v1519
        %v1635 = vmul.f32 %v1519, %v1634
        %v1636 = vsub.f32 1.0, %v1635
        %v1637 = vmul.f32 %v1634, %v1636
        %v1638 = vadd.f32 %v1634, %v1637
        %vm1639 = vweird.f32 %v1519
        %vm1640 = vweird.f32 %v1634
        %vm1641 = vmor %vm1639, %vm1640
        %v1642 = vsel %vm1641, %v1634, %v1638
        %v1643 = vand.u32 2147483647, %v1519
        %vm1644 = vcmp.eq.f32.partialorder %v1643, 8.507059e+37
        %v1645 = vand.u32 %v1519, 2147483648
        %v1646 = vor.u32 1.1754944e-38, %v1645
        %v1647 = vsel %vm1644, %v1646, %v1642
        %v1648 = vrcp.pop %v1521
        %v1649 = vmul.f32 %v1521, %v1648
        %v1650 = vsub.f32 1.0, %v1649
        %v1651 = vmul.f32 %v1648, %v1650
        %v1652 = vadd.f32 %v1648, %v1651
        %vm1653 = vweird.f32 %v1521
        %vm1654 = vweird.f32 %v1648
        %vm1655 = vmor %vm1653, %vm1654
        %v1656 = vsel %vm1655, %v1648, %v1652
        %v1657 = vand.u32 2147483647, %v1521
        %vm1658 = vcmp.eq.f32.partialorder %v1657, 8.507059e+37
        %v1659 = vand.u32 %v1521, 2147483648
        %v1660 = vor.u32 1.1754944e-38, %v1659
        %v1661 = vsel %vm1658, %v1660, %v1656
        %v1662 = vrcp.pop %v1523
        %v1663 = vmul.f32 %v1523, %v1662
        %v1664 = vsub.f32 1.0, %v1663
        %v1665 = vmul.f32 %v1662, %v1664
        %v1666 = vadd.f32 %v1662, %v1665
        %vm1667 = vweird.f32 %v1523
        %vm1668 = vweird.f32 %v1662
        %vm1669 = vmor %vm1667, %vm1668
        %v1670 = vsel %vm1669, %v1662, %v1666
        %v1671 = vand.u32 2147483647, %v1523
        %vm1672 = vcmp.eq.f32.partialorder %v1671, 8.507059e+37
        %v1673 = vand.u32 %v1523, 2147483648
        %v1674 = vor.u32 1.1754944e-38, %v1673
        %v1675 = vsel %vm1672, %v1674, %v1670
        %v1676 = vrcp.pop %v1525
        %v1677 = vmul.f32 %v1525, %v1676
        %v1678 = vsub.f32 1.0, %v1677
        %v1679 = vmul.f32 %v1676, %v1678
        %v1680 = vadd.f32 %v1676, %v1679
        %vm1681 = vweird.f32 %v1525
        %vm1682 = vweird.f32 %v1676
        %vm1683 = vmor %vm1681, %vm1682
        %v1684 = vsel %vm1683, %v1676, %v1680
        %v1685 = vand.u32 2147483647, %v1525
        %vm1686 = vcmp.eq.f32.partialorder %v1685, 8.507059e+37
        %v1687 = vand.u32 %v1525, 2147483648
        %v1688 = vor.u32 1.1754944e-38, %v1687
        %v1689 = vsel %vm1686, %v1688, %v1684
        %v1690 = vrcp.pop %v1527
        %v1691 = vmul.f32 %v1527, %v1690
        %v1692 = vsub.f32 1.0, %v1691
        %v1693 = vmul.f32 %v1690, %v1692
        %v1694 = vadd.f32 %v1690, %v1693
        %vm1695 = vweird.f32 %v1527
        %vm1696 = vweird.f32 %v1690
        %vm1697 = vmor %vm1695, %vm1696
        %v1698 = vsel %vm1697, %v1690, %v1694
        %v1699 = vand.u32 2147483647, %v1527
        %vm1700 = vcmp.eq.f32.partialorder %v1699, 8.507059e+37
        %v1701 = vand.u32 %v1527, 2147483648
        %v1702 = vor.u32 1.1754944e-38, %v1701
        %v1703 = vsel %vm1700, %v1702, %v1698
        %v1704 = vrcp.pop %v1529
        %v1705 = vmul.f32 %v1529, %v1704
        %v1706 = vsub.f32 1.0, %v1705
        %v1707 = vmul.f32 %v1704, %v1706
        %v1708 = vadd.f32 %v1704, %v1707
        %vm1709 = vweird.f32 %v1529
        %vm1710 = vweird.f32 %v1704
        %vm1711 = vmor %vm1709, %vm1710
        %v1712 = vsel %vm1711, %v1704, %v1708
        %v1713 = vand.u32 2147483647, %v1529
        %vm1714 = vcmp.eq.f32.partialorder %v1713, 8.507059e+37
        %v1715 = vand.u32 %v1529, 2147483648
        %v1716 = vor.u32 1.1754944e-38, %v1715
        %v1717 = vsel %vm1714, %v1716, %v1712
        %v1718 = vrcp.pop %v1531
        %v1719 = vmul.f32 %v1531, %v1718
        %v1720 = vsub.f32 1.0, %v1719
        %v1721 = vmul.f32 %v1718, %v1720
        %v1722 = vadd.f32 %v1718, %v1721
        %vm1723 = vweird.f32 %v1531
        %vm1724 = vweird.f32 %v1718
        %vm1725 = vmor %vm1723, %vm1724
        %v1726 = vsel %vm1725, %v1718, %v1722
        %v1727 = vand.u32 2147483647, %v1531
        %vm1728 = vcmp.eq.f32.partialorder %v1727, 8.507059e+37
        %v1729 = vand.u32 %v1531, 2147483648
        %v1730 = vor.u32 1.1754944e-38, %v1729
        %v1731 = vsel %vm1728, %v1730, %v1726
        %v1732 = vrcp.pop %v1533
        %v1733 = vmul.f32 %v1533, %v1732
        %v1734 = vsub.f32 1.0, %v1733
        %v1735 = vmul.f32 %v1732, %v1734
        %v1736 = vadd.f32 %v1732, %v1735
        %vm1737 = vweird.f32 %v1533
        %vm1738 = vweird.f32 %v1732
        %vm1739 = vmor %vm1737, %vm1738
        %v1740 = vsel %vm1739, %v1732, %v1736
        %v1741 = vand.u32 2147483647, %v1533
        %vm1742 = vcmp.eq.f32.partialorder %v1741, 8.507059e+37
        %v1743 = vand.u32 %v1533, 2147483648
        %v1744 = vor.u32 1.1754944e-38, %v1743
        %v1745 = vsel %vm1742, %v1744, %v1740
        %v1746 = vrcp.pop %v1535
        %v1747 = vmul.f32 %v1535, %v1746
        %v1748 = vsub.f32 1.0, %v1747
        %v1749 = vmul.f32 %v1746, %v1748
        %v1750 = vadd.f32 %v1746, %v1749
        %vm1751 = vweird.f32 %v1535
        %vm1752 = vweird.f32 %v1746
        %vm1753 = vmor %vm1751, %vm1752
        %v1754 = vsel %vm1753, %v1746, %v1750
        %v1755 = vand.u32 2147483647, %v1535
        %vm1756 = vcmp.eq.f32.partialorder %v1755, 8.507059e+37
        %v1757 = vand.u32 %v1535, 2147483648
        %v1758 = vor.u32 1.1754944e-38, %v1757
        %v1759 = vsel %vm1756, %v1758, %v1754
        %v1760 = vmul.f32 %v1473, %v1549
        %v1761 = vmul.f32 %v1475, %v1563
        %v1762 = vmul.f32 %v1477, %v1577
        %v1763 = vmul.f32 %v1479, %v1591
        %v1764 = vmul.f32 %v1481, %v1605
        %v1765 = vmul.f32 %v1483, %v1619
        %v1766 = vmul.f32 %v1485, %v1633
        %v1767 = vmul.f32 %v1487, %v1647
        %v1768 = vmul.f32 %v1489, %v1661
        %v1769 = vmul.f32 %v1491, %v1675
        %v1770 = vmul.f32 %v1493, %v1689
        %v1771 = vmul.f32 %v1495, %v1703
        %v1772 = vmul.f32 %v1497, %v1717
        %v1773 = vmul.f32 %v1499, %v1731
        %v1774 = vmul.f32 %v1501, %v1745
        %v1775 = vmul.f32 %v1503, %v1759
        %s1776 = scalar_lea.vmem %s297, 128 [#allocation9]
        %1777 = vst [vmem:[%s1776] sm:$0xff] %v1760
        %1778 = vst [vmem:[%s1776 + $0x8] sm:$0xff] %v1761
        %1779 = vst [vmem:[%s1776 + $0x10] sm:$0xff] %v1762
        %1780 = vst [vmem:[%s1776 + $0x18] sm:$0xff] %v1763
        %1781 = vst [vmem:[%s1776 + $0x20] sm:$0xff] %v1764
        %1782 = vst [vmem:[%s1776 + $0x28] sm:$0xff] %v1765
        %1783 = vst [vmem:[%s1776 + $0x30] sm:$0xff] %v1766
        %1784 = vst [vmem:[%s1776 + $0x38] sm:$0xff] %v1767
        %1785 = vst [vmem:[%s1776 + $0x40] sm:$0xff] %v1768
        %1786 = vst [vmem:[%s1776 + $0x48] sm:$0xff] %v1769
        %1787 = vst [vmem:[%s1776 + $0x50] sm:$0xff] %v1770
        %1788 = vst [vmem:[%s1776 + $0x58] sm:$0xff] %v1771
        %1789 = vst [vmem:[%s1776 + $0x60] sm:$0xff] %v1772
        %1790 = vst [vmem:[%s1776 + $0x68] sm:$0xff] %v1773
        %1791 = vst [vmem:[%s1776 + $0x70] sm:$0xff] %v1774
        %1792 = vst [vmem:[%s1776 + $0x78] sm:$0xff] %v1775
        %1809 = vrot.lane.b32.xlu0 %v521, 96
        %v1810 = vpop.permute.xlu0 %1809
        %1811 = vrot.lane.b32.xlu0 %v524, 96
        %v1812 = vpop.permute.xlu0 %1811
        %1813 = vrot.lane.b32.xlu0 %v527, 96
        %v1814 = vpop.permute.xlu0 %1813
        %1815 = vrot.lane.b32.xlu0 %v530, 96
        %v1816 = vpop.permute.xlu0 %1815
        %1817 = vrot.lane.b32.xlu0 %v533, 96
        %v1818 = vpop.permute.xlu0 %1817
        %1819 = vrot.lane.b32.xlu0 %v536, 96
        %v1820 = vpop.permute.xlu0 %1819
        %1821 = vrot.lane.b32.xlu0 %v539, 96
        %v1822 = vpop.permute.xlu0 %1821
        %1823 = vrot.lane.b32.xlu0 %v542, 96
        %v1824 = vpop.permute.xlu0 %1823
        %1825 = vrot.lane.b32.xlu0 %v545, 96
        %v1826 = vpop.permute.xlu0 %1825
        %1827 = vrot.lane.b32.xlu0 %v548, 96
        %v1828 = vpop.permute.xlu0 %1827
        %1829 = vrot.lane.b32.xlu0 %v551, 96
        %v1830 = vpop.permute.xlu0 %1829
        %1831 = vrot.lane.b32.xlu0 %v554, 96
        %v1832 = vpop.permute.xlu0 %1831
        %1833 = vrot.lane.b32.xlu0 %v557, 96
        %v1834 = vpop.permute.xlu0 %1833
        %1835 = vrot.lane.b32.xlu0 %v560, 96
        %v1836 = vpop.permute.xlu0 %1835
        %1837 = vrot.lane.b32.xlu0 %v563, 96
        %v1838 = vpop.permute.xlu0 %1837
        %1839 = vrot.lane.b32.xlu0 %v566, 96
        %v1840 = vpop.permute.xlu0 %1839
        %1857 = vmatpush.msra.mxu0 %v1840
        %1858 = vmatpush.msra.mxu0 %v1838
        %1859 = vmatpush.msra.mxu0 %v1836
        %1860 = vmatpush.msra.mxu0 %v1834
        %1861 = vmatpush.msra.mxu0 %v1832
        %1862 = vmatpush.msra.mxu0 %v1830
        %1863 = vmatpush.msra.mxu0 %v1828
        %1864 = vmatpush.msra.mxu0 %v1826
        %1865 = vmatpush.msra.mxu0 %v1824
        %1866 = vmatpush.msra.mxu0 %v1822
        %1867 = vmatpush.msra.mxu0 %v1820
        %1868 = vmatpush.msra.mxu0 %v1818
        %1869 = vmatpush.msra.mxu0 %v1816
        %1870 = vmatpush.msra.mxu0 %v1814
        %1871 = vmatpush.msra.mxu0 %v1812
        %1872 = vmatpush.msra.mxu0 %v1810
        %1873 = vmatmul.f32.gmra.mxu0 %v1760
        %v1874 = vpop.f32.mrf.mxu0
        %v1875 = vadd.f32 0.0, %v1874
        %1876 = vmatmul.f32.gmra.mxu0 %v1761
        %v1877 = vpop.f32.mrf.mxu0
        %v1878 = vadd.f32 0.0, %v1877
        %1879 = vmatmul.f32.gmra.mxu0 %v1762
        %v1880 = vpop.f32.mrf.mxu0
        %v1881 = vadd.f32 0.0, %v1880
        %1882 = vmatmul.f32.gmra.mxu0 %v1763
        %v1883 = vpop.f32.mrf.mxu0
        %v1884 = vadd.f32 0.0, %v1883
        %1885 = vmatmul.f32.gmra.mxu0 %v1764
        %v1886 = vpop.f32.mrf.mxu0
        %v1887 = vadd.f32 0.0, %v1886
        %1888 = vmatmul.f32.gmra.mxu0 %v1765
        %v1889 = vpop.f32.mrf.mxu0
        %v1890 = vadd.f32 0.0, %v1889
        %1891 = vmatmul.f32.gmra.mxu0 %v1766
        %v1892 = vpop.f32.mrf.mxu0
        %v1893 = vadd.f32 0.0, %v1892
        %1894 = vmatmul.f32.gmra.mxu0 %v1767
        %v1895 = vpop.f32.mrf.mxu0
        %v1896 = vadd.f32 0.0, %v1895
        %1897 = vmatmul.f32.gmra.mxu0 %v1768
        %v1898 = vpop.f32.mrf.mxu0
        %v1899 = vadd.f32 0.0, %v1898
        %1900 = vmatmul.f32.gmra.mxu0 %v1769
        %v1901 = vpop.f32.mrf.mxu0
        %v1902 = vadd.f32 0.0, %v1901
        %1903 = vmatmul.f32.gmra.mxu0 %v1770
        %v1904 = vpop.f32.mrf.mxu0
        %v1905 = vadd.f32 0.0, %v1904
        %1906 = vmatmul.f32.gmra.mxu0 %v1771
        %v1907 = vpop.f32.mrf.mxu0
        %v1908 = vadd.f32 0.0, %v1907
        %1909 = vmatmul.f32.gmra.mxu0 %v1772
        %v1910 = vpop.f32.mrf.mxu0
        %v1911 = vadd.f32 0.0, %v1910
        %1912 = vmatmul.f32.gmra.mxu0 %v1773
        %v1913 = vpop.f32.mrf.mxu0
        %v1914 = vadd.f32 0.0, %v1913
        %1915 = vmatmul.f32.gmra.mxu0 %v1774
        %v1916 = vpop.f32.mrf.mxu0
        %v1917 = vadd.f32 0.0, %v1916
        %1918 = vmatmul.f32.gmra.mxu0 %v1775
        %v1919 = vpop.f32.mrf.mxu0
        %v1920 = vadd.f32 0.0, %v1919
        %1921 = vdwg.mxu0
        %1922 = vrot.lane.b32.xlu0 %v391, 64
        %v1923 = vpop.permute.xlu0 %1922
        %1924 = vrot.lane.b32.xlu0 %v394, 64
        %v1925 = vpop.permute.xlu0 %1924
        %1926 = vrot.lane.b32.xlu0 %v397, 64
        %v1927 = vpop.permute.xlu0 %1926
        %1928 = vrot.lane.b32.xlu0 %v400, 64
        %v1929 = vpop.permute.xlu0 %1928
        %1930 = vrot.lane.b32.xlu0 %v403, 64
        %v1931 = vpop.permute.xlu0 %1930
        %1932 = vrot.lane.b32.xlu0 %v406, 64
        %v1933 = vpop.permute.xlu0 %1932
        %1934 = vrot.lane.b32.xlu0 %v409, 64
        %v1935 = vpop.permute.xlu0 %1934
        %1936 = vrot.lane.b32.xlu0 %v412, 64
        %v1937 = vpop.permute.xlu0 %1936
        %1938 = vrot.lane.b32.xlu0 %v415, 64
        %v1939 = vpop.permute.xlu0 %1938
        %1940 = vrot.lane.b32.xlu0 %v418, 64
        %v1941 = vpop.permute.xlu0 %1940
        %1942 = vrot.lane.b32.xlu0 %v421, 64
        %v1943 = vpop.permute.xlu0 %1942
        %1944 = vrot.lane.b32.xlu0 %v424, 64
        %v1945 = vpop.permute.xlu0 %1944
        %1946 = vrot.lane.b32.xlu0 %v427, 64
        %v1947 = vpop.permute.xlu0 %1946
        %1948 = vrot.lane.b32.xlu0 %v430, 64
        %v1949 = vpop.permute.xlu0 %1948
        %1950 = vrot.lane.b32.xlu0 %v433, 64
        %v1951 = vpop.permute.xlu0 %1950
        %1952 = vrot.lane.b32.xlu0 %v436, 64
        %v1953 = vpop.permute.xlu0 %1952
        %1954 = vrot.lane.b32.xlu0 %v456, 64
        %v1955 = vpop.permute.xlu0 %1954
        %1956 = vrot.lane.b32.xlu0 %v459, 64
        %v1957 = vpop.permute.xlu0 %1956
        %1958 = vrot.lane.b32.xlu0 %v462, 64
        %v1959 = vpop.permute.xlu0 %1958
        %1960 = vrot.lane.b32.xlu0 %v465, 64
        %v1961 = vpop.permute.xlu0 %1960
        %1962 = vrot.lane.b32.xlu0 %v468, 64
        %v1963 = vpop.permute.xlu0 %1962
        %1964 = vrot.lane.b32.xlu0 %v471, 64
        %v1965 = vpop.permute.xlu0 %1964
        %1966 = vrot.lane.b32.xlu0 %v474, 64
        %v1967 = vpop.permute.xlu0 %1966
        %1968 = vrot.lane.b32.xlu0 %v477, 64
        %v1969 = vpop.permute.xlu0 %1968
        %1970 = vrot.lane.b32.xlu0 %v480, 64
        %v1971 = vpop.permute.xlu0 %1970
        %1972 = vrot.lane.b32.xlu0 %v483, 64
        %v1973 = vpop.permute.xlu0 %1972
        %1974 = vrot.lane.b32.xlu0 %v486, 64
        %v1975 = vpop.permute.xlu0 %1974
        %1976 = vrot.lane.b32.xlu0 %v489, 64
        %v1977 = vpop.permute.xlu0 %1976
        %1978 = vrot.lane.b32.xlu0 %v492, 64
        %v1979 = vpop.permute.xlu0 %1978
        %1980 = vrot.lane.b32.xlu0 %v495, 64
        %v1981 = vpop.permute.xlu0 %1980
        %1982 = vrot.lane.b32.xlu0 %v498, 64
        %v1983 = vpop.permute.xlu0 %1982
        %1984 = vrot.lane.b32.xlu0 %v501, 64
        %v1985 = vpop.permute.xlu0 %1984
        %v1986 = vsel %vm569, %v1923, 0
        %v1988 = vsel %vm569, %v1925, 0
        %v1990 = vsel %vm569, %v1927, 0
        %v1992 = vsel %vm569, %v1929, 0
        %v1994 = vsel %vm569, %v1931, 0
        %v1996 = vsel %vm569, %v1933, 0
        %v1998 = vsel %vm569, %v1935, 0
        %v2000 = vsel %vm569, %v1937, 0
        %v2002 = vsel %vm569, %v1939, 0
        %v2004 = vsel %vm569, %v1941, 0
        %v2006 = vsel %vm569, %v1943, 0
        %v2008 = vsel %vm569, %v1945, 0
        %v2010 = vsel %vm569, %v1947, 0
        %v2012 = vsel %vm569, %v1949, 0
        %v2014 = vsel %vm569, %v1951, 0
        %v2016 = vsel %vm569, %v1953, 0
        %v2018 = vsel %vm569, %v1955, 0
        %v2020 = vsel %vm569, %v1957, 0
        %v2022 = vsel %vm569, %v1959, 0
        %v2024 = vsel %vm569, %v1961, 0
        %v2026 = vsel %vm569, %v1963, 0
        %v2028 = vsel %vm569, %v1965, 0
        %v2030 = vsel %vm569, %v1967, 0
        %v2032 = vsel %vm569, %v1969, 0
        %v2034 = vsel %vm569, %v1971, 0
        %v2036 = vsel %vm569, %v1973, 0
        %v2038 = vsel %vm569, %v1975, 0
        %v2040 = vsel %vm569, %v1977, 0
        %v2042 = vsel %vm569, %v1979, 0
        %v2044 = vsel %vm569, %v1981, 0
        %v2046 = vsel %vm569, %v1983, 0
        %v2048 = vsel %vm569, %v1985, 0
        %2050 = vmatpush.xpose.msra.mxu0 %v2048
        %2051 = vmatpush.xpose.msra.mxu0 %v2046
        %2052 = vmatpush.xpose.msra.mxu0 %v2044
        %2053 = vmatpush.xpose.msra.mxu0 %v2042
        %2054 = vmatpush.xpose.msra.mxu0 %v2040
        %2055 = vmatpush.xpose.msra.mxu0 %v2038
        %2056 = vmatpush.xpose.msra.mxu0 %v2036
        %2057 = vmatpush.xpose.msra.mxu0 %v2034
        %2058 = vmatpush.xpose.msra.mxu0 %v2032
        %2059 = vmatpush.xpose.msra.mxu0 %v2030
        %2060 = vmatpush.xpose.msra.mxu0 %v2028
        %2061 = vmatpush.xpose.msra.mxu0 %v2026
        %2062 = vmatpush.xpose.msra.mxu0 %v2024
        %2063 = vmatpush.xpose.msra.mxu0 %v2022
        %2064 = vmatpush.xpose.msra.mxu0 %v2020
        %2065 = vmatpush.xpose.msra.mxu0 %v2018
        %2066 = vmatmul.f32.gmra.mxu0 %v1986
        %v2067 = vpop.f32.mrf.mxu0
        %v2068 = vadd.f32 0.0, %v2067
        %2069 = vmatmul.f32.gmra.mxu0 %v1988
        %v2070 = vpop.f32.mrf.mxu0
        %v2071 = vadd.f32 0.0, %v2070
        %2072 = vmatmul.f32.gmra.mxu0 %v1990
        %v2073 = vpop.f32.mrf.mxu0
        %v2074 = vadd.f32 0.0, %v2073
        %2075 = vmatmul.f32.gmra.mxu0 %v1992
        %v2076 = vpop.f32.mrf.mxu0
        %v2077 = vadd.f32 0.0, %v2076
        %2078 = vmatmul.f32.gmra.mxu0 %v1994
        %v2079 = vpop.f32.mrf.mxu0
        %v2080 = vadd.f32 0.0, %v2079
        %2081 = vmatmul.f32.gmra.mxu0 %v1996
        %v2082 = vpop.f32.mrf.mxu0
        %v2083 = vadd.f32 0.0, %v2082
        %2084 = vmatmul.f32.gmra.mxu0 %v1998
        %v2085 = vpop.f32.mrf.mxu0
        %v2086 = vadd.f32 0.0, %v2085
        %2087 = vmatmul.f32.gmra.mxu0 %v2000
        %v2088 = vpop.f32.mrf.mxu0
        %v2089 = vadd.f32 0.0, %v2088
        %2090 = vmatmul.f32.gmra.mxu0 %v2002
        %v2091 = vpop.f32.mrf.mxu0
        %v2092 = vadd.f32 0.0, %v2091
        %2093 = vmatmul.f32.gmra.mxu0 %v2004
        %v2094 = vpop.f32.mrf.mxu0
        %v2095 = vadd.f32 0.0, %v2094
        %2096 = vmatmul.f32.gmra.mxu0 %v2006
        %v2097 = vpop.f32.mrf.mxu0
        %v2098 = vadd.f32 0.0, %v2097
        %2099 = vmatmul.f32.gmra.mxu0 %v2008
        %v2100 = vpop.f32.mrf.mxu0
        %v2101 = vadd.f32 0.0, %v2100
        %2102 = vmatmul.f32.gmra.mxu0 %v2010
        %v2103 = vpop.f32.mrf.mxu0
        %v2104 = vadd.f32 0.0, %v2103
        %2105 = vmatmul.f32.gmra.mxu0 %v2012
        %v2106 = vpop.f32.mrf.mxu0
        %v2107 = vadd.f32 0.0, %v2106
        %2108 = vmatmul.f32.gmra.mxu0 %v2014
        %v2109 = vpop.f32.mrf.mxu0
        %v2110 = vadd.f32 0.0, %v2109
        %2111 = vmatmul.f32.gmra.mxu0 %v2016
        %v2112 = vpop.f32.mrf.mxu0
        %v2113 = vadd.f32 0.0, %v2112
        %2114 = vdwg.mxu0
        %v2115 = vmul.f32 %v2068, 0.17677669
        %v2116 = vmul.f32 %v2071, 0.17677669
        %v2117 = vmul.f32 %v2074, 0.17677669
        %v2118 = vmul.f32 %v2077, 0.17677669
        %v2119 = vmul.f32 %v2080, 0.17677669
        %v2120 = vmul.f32 %v2083, 0.17677669
        %v2121 = vmul.f32 %v2086, 0.17677669
        %v2122 = vmul.f32 %v2089, 0.17677669
        %v2123 = vmul.f32 %v2092, 0.17677669
        %v2124 = vmul.f32 %v2095, 0.17677669
        %v2125 = vmul.f32 %v2098, 0.17677669
        %v2126 = vmul.f32 %v2101, 0.17677669
        %v2127 = vmul.f32 %v2104, 0.17677669
        %v2128 = vmul.f32 %v2107, 0.17677669
        %v2129 = vmul.f32 %v2110, 0.17677669
        %v2130 = vmul.f32 %v2113, 0.17677669
        %v2131 = vadd.f32 %v2115, %v748
        %v2132 = vadd.f32 %v2116, %v748
        %v2133 = vadd.f32 %v2117, %v748
        %v2134 = vadd.f32 %v2118, %v748
        %v2135 = vadd.f32 %v2119, %v748
        %v2136 = vadd.f32 %v2120, %v748
        %v2137 = vadd.f32 %v2121, %v748
        %v2138 = vadd.f32 %v2122, %v748
        %v2139 = vadd.f32 %v2123, %v748
        %v2140 = vadd.f32 %v2124, %v748
        %v2141 = vadd.f32 %v2125, %v748
        %v2142 = vadd.f32 %v2126, %v748
        %v2143 = vadd.f32 %v2127, %v748
        %v2144 = vadd.f32 %v2128, %v748
        %v2145 = vadd.f32 %v2129, %v748
        %v2146 = vadd.f32 %v2130, %v748
        %2147 = vmax.xlane.f32.xlu0 %v2131
        %v2148 = vpop.xlane.xlu0 %2147
        %2149 = vmax.xlane.f32.xlu0 %v2132
        %v2150 = vpop.xlane.xlu0 %2149
        %2151 = vmax.xlane.f32.xlu0 %v2133
        %v2152 = vpop.xlane.xlu0 %2151
        %2153 = vmax.xlane.f32.xlu0 %v2134
        %v2154 = vpop.xlane.xlu0 %2153
        %2155 = vmax.xlane.f32.xlu0 %v2135
        %v2156 = vpop.xlane.xlu0 %2155
        %2157 = vmax.xlane.f32.xlu0 %v2136
        %v2158 = vpop.xlane.xlu0 %2157
        %2159 = vmax.xlane.f32.xlu0 %v2137
        %v2160 = vpop.xlane.xlu0 %2159
        %2161 = vmax.xlane.f32.xlu0 %v2138
        %v2162 = vpop.xlane.xlu0 %2161
        %2163 = vmax.xlane.f32.xlu0 %v2139
        %v2164 = vpop.xlane.xlu0 %2163
        %2165 = vmax.xlane.f32.xlu0 %v2140
        %v2166 = vpop.xlane.xlu0 %2165
        %2167 = vmax.xlane.f32.xlu0 %v2141
        %v2168 = vpop.xlane.xlu0 %2167
        %2169 = vmax.xlane.f32.xlu0 %v2142
        %v2170 = vpop.xlane.xlu0 %2169
        %2171 = vmax.xlane.f32.xlu0 %v2143
        %v2172 = vpop.xlane.xlu0 %2171
        %2173 = vmax.xlane.f32.xlu0 %v2144
        %v2174 = vpop.xlane.xlu0 %2173
        %2175 = vmax.xlane.f32.xlu0 %v2145
        %v2176 = vpop.xlane.xlu0 %2175
        %2177 = vmax.xlane.f32.xlu0 %v2146
        %v2178 = vpop.xlane.xlu0 %2177
        %v2179 = vsub.f32 %v2131, %v2148
        %v2180 = vsub.f32 %v2132, %v2150
        %v2181 = vsub.f32 %v2133, %v2152
        %v2182 = vsub.f32 %v2134, %v2154
        %v2183 = vsub.f32 %v2135, %v2156
        %v2184 = vsub.f32 %v2136, %v2158
        %v2185 = vsub.f32 %v2137, %v2160
        %v2186 = vsub.f32 %v2138, %v2162
        %v2187 = vsub.f32 %v2139, %v2164
        %v2188 = vsub.f32 %v2140, %v2166
        %v2189 = vsub.f32 %v2141, %v2168
        %v2190 = vsub.f32 %v2142, %v2170
        %v2191 = vsub.f32 %v2143, %v2172
        %v2192 = vsub.f32 %v2144, %v2174
        %v2193 = vsub.f32 %v2145, %v2176
        %v2194 = vsub.f32 %v2146, %v2178
        %v2195 = vmul.f32 %v2179, 1.442695
        %v2196 = vpow.pop %v2195
        %v2197 = vmul.f32 %v2180, 1.442695
        %v2198 = vpow.pop %v2197
        %v2199 = vmul.f32 %v2181, 1.442695
        %v2200 = vpow.pop %v2199
        %v2201 = vmul.f32 %v2182, 1.442695
        %v2202 = vpow.pop %v2201
        %v2203 = vmul.f32 %v2183, 1.442695
        %v2204 = vpow.pop %v2203
        %v2205 = vmul.f32 %v2184, 1.442695
        %v2206 = vpow.pop %v2205
        %v2207 = vmul.f32 %v2185, 1.442695
        %v2208 = vpow.pop %v2207
        %v2209 = vmul.f32 %v2186, 1.442695
        %v2210 = vpow.pop %v2209
        %v2211 = vmul.f32 %v2187, 1.442695
        %v2212 = vpow.pop %v2211
        %v2213 = vmul.f32 %v2188, 1.442695
        %v2214 = vpow.pop %v2213
        %v2215 = vmul.f32 %v2189, 1.442695
        %v2216 = vpow.pop %v2215
        %v2217 = vmul.f32 %v2190, 1.442695
        %v2218 = vpow.pop %v2217
        %v2219 = vmul.f32 %v2191, 1.442695
        %v2220 = vpow.pop %v2219
        %v2221 = vmul.f32 %v2192, 1.442695
        %v2222 = vpow.pop %v2221
        %v2223 = vmul.f32 %v2193, 1.442695
        %v2224 = vpow.pop %v2223
        %v2225 = vmul.f32 %v2194, 1.442695
        %v2226 = vpow.pop %v2225
        %2227 = vadd.xlane.f32.xlu0 %v2196
        %v2228 = vpop.xlane.xlu0 %2227
        %2229 = vadd.xlane.f32.xlu0 %v2198
        %v2230 = vpop.xlane.xlu0 %2229
        %2231 = vadd.xlane.f32.xlu0 %v2200
        %v2232 = vpop.xlane.xlu0 %2231
        %2233 = vadd.xlane.f32.xlu0 %v2202
        %v2234 = vpop.xlane.xlu0 %2233
        %2235 = vadd.xlane.f32.xlu0 %v2204
        %v2236 = vpop.xlane.xlu0 %2235
        %2237 = vadd.xlane.f32.xlu0 %v2206
        %v2238 = vpop.xlane.xlu0 %2237
        %2239 = vadd.xlane.f32.xlu0 %v2208
        %v2240 = vpop.xlane.xlu0 %2239
        %2241 = vadd.xlane.f32.xlu0 %v2210
        %v2242 = vpop.xlane.xlu0 %2241
        %2243 = vadd.xlane.f32.xlu0 %v2212
        %v2244 = vpop.xlane.xlu0 %2243
        %2245 = vadd.xlane.f32.xlu0 %v2214
        %v2246 = vpop.xlane.xlu0 %2245
        %2247 = vadd.xlane.f32.xlu0 %v2216
        %v2248 = vpop.xlane.xlu0 %2247
        %2249 = vadd.xlane.f32.xlu0 %v2218
        %v2250 = vpop.xlane.xlu0 %2249
        %2251 = vadd.xlane.f32.xlu0 %v2220
        %v2252 = vpop.xlane.xlu0 %2251
        %2253 = vadd.xlane.f32.xlu0 %v2222
        %v2254 = vpop.xlane.xlu0 %2253
        %2255 = vadd.xlane.f32.xlu0 %v2224
        %v2256 = vpop.xlane.xlu0 %2255
        %2257 = vadd.xlane.f32.xlu0 %v2226
        %v2258 = vpop.xlane.xlu0 %2257
        %v2259 = vrcp.pop %v2228
        %v2260 = vmul.f32 %v2228, %v2259
        %v2261 = vsub.f32 1.0, %v2260
        %v2262 = vmul.f32 %v2259, %v2261
        %v2263 = vadd.f32 %v2259, %v2262
        %vm2264 = vweird.f32 %v2228
        %vm2265 = vweird.f32 %v2259
        %vm2266 = vmor %vm2264, %vm2265
        %v2267 = vsel %vm2266, %v2259, %v2263
        %v2268 = vand.u32 2147483647, %v2228
        %vm2269 = vcmp.eq.f32.partialorder %v2268, 8.507059e+37
        %v2270 = vand.u32 %v2228, 2147483648
        %v2271 = vor.u32 1.1754944e-38, %v2270
        %v2272 = vsel %vm2269, %v2271, %v2267
        %v2273 = vrcp.pop %v2230
        %v2274 = vmul.f32 %v2230, %v2273
        %v2275 = vsub.f32 1.0, %v2274
        %v2276 = vmul.f32 %v2273, %v2275
        %v2277 = vadd.f32 %v2273, %v2276
        %vm2278 = vweird.f32 %v2230
        %vm2279 = vweird.f32 %v2273
        %vm2280 = vmor %vm2278, %vm2279
        %v2281 = vsel %vm2280, %v2273, %v2277
        %v2282 = vand.u32 2147483647, %v2230
        %vm2283 = vcmp.eq.f32.partialorder %v2282, 8.507059e+37
        %v2284 = vand.u32 %v2230, 2147483648
        %v2285 = vor.u32 1.1754944e-38, %v2284
        %v2286 = vsel %vm2283, %v2285, %v2281
        %v2287 = vrcp.pop %v2232
        %v2288 = vmul.f32 %v2232, %v2287
        %v2289 = vsub.f32 1.0, %v2288
        %v2290 = vmul.f32 %v2287, %v2289
        %v2291 = vadd.f32 %v2287, %v2290
        %vm2292 = vweird.f32 %v2232
        %vm2293 = vweird.f32 %v2287
        %vm2294 = vmor %vm2292, %vm2293
        %v2295 = vsel %vm2294, %v2287, %v2291
        %v2296 = vand.u32 2147483647, %v2232
        %vm2297 = vcmp.eq.f32.partialorder %v2296, 8.507059e+37
        %v2298 = vand.u32 %v2232, 2147483648
        %v2299 = vor.u32 1.1754944e-38, %v2298
        %v2300 = vsel %vm2297, %v2299, %v2295
        %v2301 = vrcp.pop %v2234
        %v2302 = vmul.f32 %v2234, %v2301
        %v2303 = vsub.f32 1.0, %v2302
        %v2304 = vmul.f32 %v2301, %v2303
        %v2305 = vadd.f32 %v2301, %v2304
        %vm2306 = vweird.f32 %v2234
        %vm2307 = vweird.f32 %v2301
        %vm2308 = vmor %vm2306, %vm2307
        %v2309 = vsel %vm2308, %v2301, %v2305
        %v2310 = vand.u32 2147483647, %v2234
        %vm2311 = vcmp.eq.f32.partialorder %v2310, 8.507059e+37
        %v2312 = vand.u32 %v2234, 2147483648
        %v2313 = vor.u32 1.1754944e-38, %v2312
        %v2314 = vsel %vm2311, %v2313, %v2309
        %v2315 = vrcp.pop %v2236
        %v2316 = vmul.f32 %v2236, %v2315
        %v2317 = vsub.f32 1.0, %v2316
        %v2318 = vmul.f32 %v2315, %v2317
        %v2319 = vadd.f32 %v2315, %v2318
        %vm2320 = vweird.f32 %v2236
        %vm2321 = vweird.f32 %v2315
        %vm2322 = vmor %vm2320, %vm2321
        %v2323 = vsel %vm2322, %v2315, %v2319
        %v2324 = vand.u32 2147483647, %v2236
        %vm2325 = vcmp.eq.f32.partialorder %v2324, 8.507059e+37
        %v2326 = vand.u32 %v2236, 2147483648
        %v2327 = vor.u32 1.1754944e-38, %v2326
        %v2328 = vsel %vm2325, %v2327, %v2323
        %v2329 = vrcp.pop %v2238
        %v2330 = vmul.f32 %v2238, %v2329
        %v2331 = vsub.f32 1.0, %v2330
        %v2332 = vmul.f32 %v2329, %v2331
        %v2333 = vadd.f32 %v2329, %v2332
        %vm2334 = vweird.f32 %v2238
        %vm2335 = vweird.f32 %v2329
        %vm2336 = vmor %vm2334, %vm2335
        %v2337 = vsel %vm2336, %v2329, %v2333
        %v2338 = vand.u32 2147483647, %v2238
        %vm2339 = vcmp.eq.f32.partialorder %v2338, 8.507059e+37
        %v2340 = vand.u32 %v2238, 2147483648
        %v2341 = vor.u32 1.1754944e-38, %v2340
        %v2342 = vsel %vm2339, %v2341, %v2337
        %v2343 = vrcp.pop %v2240
        %v2344 = vmul.f32 %v2240, %v2343
        %v2345 = vsub.f32 1.0, %v2344
        %v2346 = vmul.f32 %v2343, %v2345
        %v2347 = vadd.f32 %v2343, %v2346
        %vm2348 = vweird.f32 %v2240
        %vm2349 = vweird.f32 %v2343
        %vm2350 = vmor %vm2348, %vm2349
        %v2351 = vsel %vm2350, %v2343, %v2347
        %v2352 = vand.u32 2147483647, %v2240
        %vm2353 = vcmp.eq.f32.partialorder %v2352, 8.507059e+37
        %v2354 = vand.u32 %v2240, 2147483648
        %v2355 = vor.u32 1.1754944e-38, %v2354
        %v2356 = vsel %vm2353, %v2355, %v2351
        %v2357 = vrcp.pop %v2242
        %v2358 = vmul.f32 %v2242, %v2357
        %v2359 = vsub.f32 1.0, %v2358
        %v2360 = vmul.f32 %v2357, %v2359
        %v2361 = vadd.f32 %v2357, %v2360
        %vm2362 = vweird.f32 %v2242
        %vm2363 = vweird.f32 %v2357
        %vm2364 = vmor %vm2362, %vm2363
        %v2365 = vsel %vm2364, %v2357, %v2361
        %v2366 = vand.u32 2147483647, %v2242
        %vm2367 = vcmp.eq.f32.partialorder %v2366, 8.507059e+37
        %v2368 = vand.u32 %v2242, 2147483648
        %v2369 = vor.u32 1.1754944e-38, %v2368
        %v2370 = vsel %vm2367, %v2369, %v2365
        %v2371 = vrcp.pop %v2244
        %v2372 = vmul.f32 %v2244, %v2371
        %v2373 = vsub.f32 1.0, %v2372
        %v2374 = vmul.f32 %v2371, %v2373
        %v2375 = vadd.f32 %v2371, %v2374
        %vm2376 = vweird.f32 %v2244
        %vm2377 = vweird.f32 %v2371
        %vm2378 = vmor %vm2376, %vm2377
        %v2379 = vsel %vm2378, %v2371, %v2375
        %v2380 = vand.u32 2147483647, %v2244
        %vm2381 = vcmp.eq.f32.partialorder %v2380, 8.507059e+37
        %v2382 = vand.u32 %v2244, 2147483648
        %v2383 = vor.u32 1.1754944e-38, %v2382
        %v2384 = vsel %vm2381, %v2383, %v2379
        %v2385 = vrcp.pop %v2246
        %v2386 = vmul.f32 %v2246, %v2385
        %v2387 = vsub.f32 1.0, %v2386
        %v2388 = vmul.f32 %v2385, %v2387
        %v2389 = vadd.f32 %v2385, %v2388
        %vm2390 = vweird.f32 %v2246
        %vm2391 = vweird.f32 %v2385
        %vm2392 = vmor %vm2390, %vm2391
        %v2393 = vsel %vm2392, %v2385, %v2389
        %v2394 = vand.u32 2147483647, %v2246
        %vm2395 = vcmp.eq.f32.partialorder %v2394, 8.507059e+37
        %v2396 = vand.u32 %v2246, 2147483648
        %v2397 = vor.u32 1.1754944e-38, %v2396
        %v2398 = vsel %vm2395, %v2397, %v2393
        %v2399 = vrcp.pop %v2248
        %v2400 = vmul.f32 %v2248, %v2399
        %v2401 = vsub.f32 1.0, %v2400
        %v2402 = vmul.f32 %v2399, %v2401
        %v2403 = vadd.f32 %v2399, %v2402
        %vm2404 = vweird.f32 %v2248
        %vm2405 = vweird.f32 %v2399
        %vm2406 = vmor %vm2404, %vm2405
        %v2407 = vsel %vm2406, %v2399, %v2403
        %v2408 = vand.u32 2147483647, %v2248
        %vm2409 = vcmp.eq.f32.partialorder %v2408, 8.507059e+37
        %v2410 = vand.u32 %v2248, 2147483648
        %v2411 = vor.u32 1.1754944e-38, %v2410
        %v2412 = vsel %vm2409, %v2411, %v2407
        %v2413 = vrcp.pop %v2250
        %v2414 = vmul.f32 %v2250, %v2413
        %v2415 = vsub.f32 1.0, %v2414
        %v2416 = vmul.f32 %v2413, %v2415
        %v2417 = vadd.f32 %v2413, %v2416
        %vm2418 = vweird.f32 %v2250
        %vm2419 = vweird.f32 %v2413
        %vm2420 = vmor %vm2418, %vm2419
        %v2421 = vsel %vm2420, %v2413, %v2417
        %v2422 = vand.u32 2147483647, %v2250
        %vm2423 = vcmp.eq.f32.partialorder %v2422, 8.507059e+37
        %v2424 = vand.u32 %v2250, 2147483648
        %v2425 = vor.u32 1.1754944e-38, %v2424
        %v2426 = vsel %vm2423, %v2425, %v2421
        %v2427 = vrcp.pop %v2252
        %v2428 = vmul.f32 %v2252, %v2427
        %v2429 = vsub.f32 1.0, %v2428
        %v2430 = vmul.f32 %v2427, %v2429
        %v2431 = vadd.f32 %v2427, %v2430
        %vm2432 = vweird.f32 %v2252
        %vm2433 = vweird.f32 %v2427
        %vm2434 = vmor %vm2432, %vm2433
        %v2435 = vsel %vm2434, %v2427, %v2431
        %v2436 = vand.u32 2147483647, %v2252
        %vm2437 = vcmp.eq.f32.partialorder %v2436, 8.507059e+37
        %v2438 = vand.u32 %v2252, 2147483648
        %v2439 = vor.u32 1.1754944e-38, %v2438
        %v2440 = vsel %vm2437, %v2439, %v2435
        %v2441 = vrcp.pop %v2254
        %v2442 = vmul.f32 %v2254, %v2441
        %v2443 = vsub.f32 1.0, %v2442
        %v2444 = vmul.f32 %v2441, %v2443
        %v2445 = vadd.f32 %v2441, %v2444
        %vm2446 = vweird.f32 %v2254
        %vm2447 = vweird.f32 %v2441
        %vm2448 = vmor %vm2446, %vm2447
        %v2449 = vsel %vm2448, %v2441, %v2445
        %v2450 = vand.u32 2147483647, %v2254
        %vm2451 = vcmp.eq.f32.partialorder %v2450, 8.507059e+37
        %v2452 = vand.u32 %v2254, 2147483648
        %v2453 = vor.u32 1.1754944e-38, %v2452
        %v2454 = vsel %vm2451, %v2453, %v2449
        %v2455 = vrcp.pop %v2256
        %v2456 = vmul.f32 %v2256, %v2455
        %v2457 = vsub.f32 1.0, %v2456
        %v2458 = vmul.f32 %v2455, %v2457
        %v2459 = vadd.f32 %v2455, %v2458
        %vm2460 = vweird.f32 %v2256
        %vm2461 = vweird.f32 %v2455
        %vm2462 = vmor %vm2460, %vm2461
        %v2463 = vsel %vm2462, %v2455, %v2459
        %v2464 = vand.u32 2147483647, %v2256
        %vm2465 = vcmp.eq.f32.partialorder %v2464, 8.507059e+37
        %v2466 = vand.u32 %v2256, 2147483648
        %v2467 = vor.u32 1.1754944e-38, %v2466
        %v2468 = vsel %vm2465, %v2467, %v2463
        %v2469 = vrcp.pop %v2258
        %v2470 = vmul.f32 %v2258, %v2469
        %v2471 = vsub.f32 1.0, %v2470
        %v2472 = vmul.f32 %v2469, %v2471
        %v2473 = vadd.f32 %v2469, %v2472
        %vm2474 = vweird.f32 %v2258
        %vm2475 = vweird.f32 %v2469
        %vm2476 = vmor %vm2474, %vm2475
        %v2477 = vsel %vm2476, %v2469, %v2473
        %v2478 = vand.u32 2147483647, %v2258
        %vm2479 = vcmp.eq.f32.partialorder %v2478, 8.507059e+37
        %v2480 = vand.u32 %v2258, 2147483648
        %v2481 = vor.u32 1.1754944e-38, %v2480
        %v2482 = vsel %vm2479, %v2481, %v2477
        %v2483 = vmul.f32 %v2196, %v2272
        %v2484 = vmul.f32 %v2198, %v2286
        %v2485 = vmul.f32 %v2200, %v2300
        %v2486 = vmul.f32 %v2202, %v2314
        %v2487 = vmul.f32 %v2204, %v2328
        %v2488 = vmul.f32 %v2206, %v2342
        %v2489 = vmul.f32 %v2208, %v2356
        %v2490 = vmul.f32 %v2210, %v2370
        %v2491 = vmul.f32 %v2212, %v2384
        %v2492 = vmul.f32 %v2214, %v2398
        %v2493 = vmul.f32 %v2216, %v2412
        %v2494 = vmul.f32 %v2218, %v2426
        %v2495 = vmul.f32 %v2220, %v2440
        %v2496 = vmul.f32 %v2222, %v2454
        %v2497 = vmul.f32 %v2224, %v2468
        %v2498 = vmul.f32 %v2226, %v2482
        %s2499 = scalar_lea.vmem %s297, 256 [#allocation9]
        %2500 = vst [vmem:[%s2499] sm:$0xff] %v2483
        %2501 = vst [vmem:[%s2499 + $0x8] sm:$0xff] %v2484
        %2502 = vst [vmem:[%s2499 + $0x10] sm:$0xff] %v2485
        %2503 = vst [vmem:[%s2499 + $0x18] sm:$0xff] %v2486
        %2504 = vst [vmem:[%s2499 + $0x20] sm:$0xff] %v2487
        %2505 = vst [vmem:[%s2499 + $0x28] sm:$0xff] %v2488
        %2506 = vst [vmem:[%s2499 + $0x30] sm:$0xff] %v2489
        %2507 = vst [vmem:[%s2499 + $0x38] sm:$0xff] %v2490
        %2508 = vst [vmem:[%s2499 + $0x40] sm:$0xff] %v2491
        %2509 = vst [vmem:[%s2499 + $0x48] sm:$0xff] %v2492
        %2510 = vst [vmem:[%s2499 + $0x50] sm:$0xff] %v2493
        %2511 = vst [vmem:[%s2499 + $0x58] sm:$0xff] %v2494
        %2512 = vst [vmem:[%s2499 + $0x60] sm:$0xff] %v2495
        %2513 = vst [vmem:[%s2499 + $0x68] sm:$0xff] %v2496
        %2514 = vst [vmem:[%s2499 + $0x70] sm:$0xff] %v2497
        %2515 = vst [vmem:[%s2499 + $0x78] sm:$0xff] %v2498
        %2516 = vrot.lane.b32.xlu0 %v521, 64
        %v2517 = vpop.permute.xlu0 %2516
        %2518 = vrot.lane.b32.xlu0 %v524, 64
        %v2519 = vpop.permute.xlu0 %2518
        %2520 = vrot.lane.b32.xlu0 %v527, 64
        %v2521 = vpop.permute.xlu0 %2520
        %2522 = vrot.lane.b32.xlu0 %v530, 64
        %v2523 = vpop.permute.xlu0 %2522
        %2524 = vrot.lane.b32.xlu0 %v533, 64
        %v2525 = vpop.permute.xlu0 %2524
        %2526 = vrot.lane.b32.xlu0 %v536, 64
        %v2527 = vpop.permute.xlu0 %2526
        %2528 = vrot.lane.b32.xlu0 %v539, 64
        %v2529 = vpop.permute.xlu0 %2528
        %2530 = vrot.lane.b32.xlu0 %v542, 64
        %v2531 = vpop.permute.xlu0 %2530
        %2532 = vrot.lane.b32.xlu0 %v545, 64
        %v2533 = vpop.permute.xlu0 %2532
        %2534 = vrot.lane.b32.xlu0 %v548, 64
        %v2535 = vpop.permute.xlu0 %2534
        %2536 = vrot.lane.b32.xlu0 %v551, 64
        %v2537 = vpop.permute.xlu0 %2536
        %2538 = vrot.lane.b32.xlu0 %v554, 64
        %v2539 = vpop.permute.xlu0 %2538
        %2540 = vrot.lane.b32.xlu0 %v557, 64
        %v2541 = vpop.permute.xlu0 %2540
        %2542 = vrot.lane.b32.xlu0 %v560, 64
        %v2543 = vpop.permute.xlu0 %2542
        %2544 = vrot.lane.b32.xlu0 %v563, 64
        %v2545 = vpop.permute.xlu0 %2544
        %2546 = vrot.lane.b32.xlu0 %v566, 64
        %v2547 = vpop.permute.xlu0 %2546
        %2564 = vmatpush.msra.mxu0 %v2547
        %2565 = vmatpush.msra.mxu0 %v2545
        %2566 = vmatpush.msra.mxu0 %v2543
        %2567 = vmatpush.msra.mxu0 %v2541
        %2568 = vmatpush.msra.mxu0 %v2539
        %2569 = vmatpush.msra.mxu0 %v2537
        %2570 = vmatpush.msra.mxu0 %v2535
        %2571 = vmatpush.msra.mxu0 %v2533
        %2572 = vmatpush.msra.mxu0 %v2531
        %2573 = vmatpush.msra.mxu0 %v2529
        %2574 = vmatpush.msra.mxu0 %v2527
        %2575 = vmatpush.msra.mxu0 %v2525
        %2576 = vmatpush.msra.mxu0 %v2523
        %2577 = vmatpush.msra.mxu0 %v2521
        %2578 = vmatpush.msra.mxu0 %v2519
        %2579 = vmatpush.msra.mxu0 %v2517
        %2580 = vmatmul.f32.gmra.mxu0 %v2483
        %v2581 = vpop.f32.mrf.mxu0
        %v2582 = vadd.f32 0.0, %v2581
        %2583 = vmatmul.f32.gmra.mxu0 %v2484
        %v2584 = vpop.f32.mrf.mxu0
        %v2585 = vadd.f32 0.0, %v2584
        %2586 = vmatmul.f32.gmra.mxu0 %v2485
        %v2587 = vpop.f32.mrf.mxu0
        %v2588 = vadd.f32 0.0, %v2587
        %2589 = vmatmul.f32.gmra.mxu0 %v2486
        %v2590 = vpop.f32.mrf.mxu0
        %v2591 = vadd.f32 0.0, %v2590
        %2592 = vmatmul.f32.gmra.mxu0 %v2487
        %v2593 = vpop.f32.mrf.mxu0
        %v2594 = vadd.f32 0.0, %v2593
        %2595 = vmatmul.f32.gmra.mxu0 %v2488
        %v2596 = vpop.f32.mrf.mxu0
        %v2597 = vadd.f32 0.0, %v2596
        %2598 = vmatmul.f32.gmra.mxu0 %v2489
        %v2599 = vpop.f32.mrf.mxu0
        %v2600 = vadd.f32 0.0, %v2599
        %2601 = vmatmul.f32.gmra.mxu0 %v2490
        %v2602 = vpop.f32.mrf.mxu0
        %v2603 = vadd.f32 0.0, %v2602
        %2604 = vmatmul.f32.gmra.mxu0 %v2491
        %v2605 = vpop.f32.mrf.mxu0
        %v2606 = vadd.f32 0.0, %v2605
        %2607 = vmatmul.f32.gmra.mxu0 %v2492
        %v2608 = vpop.f32.mrf.mxu0
        %v2609 = vadd.f32 0.0, %v2608
        %2610 = vmatmul.f32.gmra.mxu0 %v2493
        %v2611 = vpop.f32.mrf.mxu0
        %v2612 = vadd.f32 0.0, %v2611
        %2613 = vmatmul.f32.gmra.mxu0 %v2494
        %v2614 = vpop.f32.mrf.mxu0
        %v2615 = vadd.f32 0.0, %v2614
        %2616 = vmatmul.f32.gmra.mxu0 %v2495
        %v2617 = vpop.f32.mrf.mxu0
        %v2618 = vadd.f32 0.0, %v2617
        %2619 = vmatmul.f32.gmra.mxu0 %v2496
        %v2620 = vpop.f32.mrf.mxu0
        %v2621 = vadd.f32 0.0, %v2620
        %2622 = vmatmul.f32.gmra.mxu0 %v2497
        %v2623 = vpop.f32.mrf.mxu0
        %v2624 = vadd.f32 0.0, %v2623
        %2625 = vmatmul.f32.gmra.mxu0 %v2498
        %v2626 = vpop.f32.mrf.mxu0
        %v2627 = vadd.f32 0.0, %v2626
        %2628 = vdwg.mxu0
        %2629 = vrot.lane.b32.xlu0 %v391, 32
        %v2630 = vpop.permute.xlu0 %2629
        %2631 = vrot.lane.b32.xlu0 %v394, 32
        %v2632 = vpop.permute.xlu0 %2631
        %2633 = vrot.lane.b32.xlu0 %v397, 32
        %v2634 = vpop.permute.xlu0 %2633
        %2635 = vrot.lane.b32.xlu0 %v400, 32
        %v2636 = vpop.permute.xlu0 %2635
        %2637 = vrot.lane.b32.xlu0 %v403, 32
        %v2638 = vpop.permute.xlu0 %2637
        %2639 = vrot.lane.b32.xlu0 %v406, 32
        %v2640 = vpop.permute.xlu0 %2639
        %2641 = vrot.lane.b32.xlu0 %v409, 32
        %v2642 = vpop.permute.xlu0 %2641
        %2643 = vrot.lane.b32.xlu0 %v412, 32
        %v2644 = vpop.permute.xlu0 %2643
        %2645 = vrot.lane.b32.xlu0 %v415, 32
        %v2646 = vpop.permute.xlu0 %2645
        %2647 = vrot.lane.b32.xlu0 %v418, 32
        %v2648 = vpop.permute.xlu0 %2647
        %2649 = vrot.lane.b32.xlu0 %v421, 32
        %v2650 = vpop.permute.xlu0 %2649
        %2651 = vrot.lane.b32.xlu0 %v424, 32
        %v2652 = vpop.permute.xlu0 %2651
        %2653 = vrot.lane.b32.xlu0 %v427, 32
        %v2654 = vpop.permute.xlu0 %2653
        %2655 = vrot.lane.b32.xlu0 %v430, 32
        %v2656 = vpop.permute.xlu0 %2655
        %2657 = vrot.lane.b32.xlu0 %v433, 32
        %v2658 = vpop.permute.xlu0 %2657
        %2659 = vrot.lane.b32.xlu0 %v436, 32
        %v2660 = vpop.permute.xlu0 %2659
        %2661 = vrot.lane.b32.xlu0 %v456, 32
        %v2662 = vpop.permute.xlu0 %2661
        %2663 = vrot.lane.b32.xlu0 %v459, 32
        %v2664 = vpop.permute.xlu0 %2663
        %2665 = vrot.lane.b32.xlu0 %v462, 32
        %v2666 = vpop.permute.xlu0 %2665
        %2667 = vrot.lane.b32.xlu0 %v465, 32
        %v2668 = vpop.permute.xlu0 %2667
        %2669 = vrot.lane.b32.xlu0 %v468, 32
        %v2670 = vpop.permute.xlu0 %2669
        %2671 = vrot.lane.b32.xlu0 %v471, 32
        %v2672 = vpop.permute.xlu0 %2671
        %2673 = vrot.lane.b32.xlu0 %v474, 32
        %v2674 = vpop.permute.xlu0 %2673
        %2675 = vrot.lane.b32.xlu0 %v477, 32
        %v2676 = vpop.permute.xlu0 %2675
        %2677 = vrot.lane.b32.xlu0 %v480, 32
        %v2678 = vpop.permute.xlu0 %2677
        %2679 = vrot.lane.b32.xlu0 %v483, 32
        %v2680 = vpop.permute.xlu0 %2679
        %2681 = vrot.lane.b32.xlu0 %v486, 32
        %v2682 = vpop.permute.xlu0 %2681
        %2683 = vrot.lane.b32.xlu0 %v489, 32
        %v2684 = vpop.permute.xlu0 %2683
        %2685 = vrot.lane.b32.xlu0 %v492, 32
        %v2686 = vpop.permute.xlu0 %2685
        %2687 = vrot.lane.b32.xlu0 %v495, 32
        %v2688 = vpop.permute.xlu0 %2687
        %2689 = vrot.lane.b32.xlu0 %v498, 32
        %v2690 = vpop.permute.xlu0 %2689
        %2691 = vrot.lane.b32.xlu0 %v501, 32
        %v2692 = vpop.permute.xlu0 %2691
        %v2693 = vsel %vm569, %v2630, 0
        %v2695 = vsel %vm569, %v2632, 0
        %v2697 = vsel %vm569, %v2634, 0
        %v2699 = vsel %vm569, %v2636, 0
        %v2701 = vsel %vm569, %v2638, 0
        %v2703 = vsel %vm569, %v2640, 0
        %v2705 = vsel %vm569, %v2642, 0
        %v2707 = vsel %vm569, %v2644, 0
        %v2709 = vsel %vm569, %v2646, 0
        %v2711 = vsel %vm569, %v2648, 0
        %v2713 = vsel %vm569, %v2650, 0
        %v2715 = vsel %vm569, %v2652, 0
        %v2717 = vsel %vm569, %v2654, 0
        %v2719 = vsel %vm569, %v2656, 0
        %v2721 = vsel %vm569, %v2658, 0
        %v2723 = vsel %vm569, %v2660, 0
        %v2725 = vsel %vm569, %v2662, 0
        %v2727 = vsel %vm569, %v2664, 0
        %v2729 = vsel %vm569, %v2666, 0
        %v2731 = vsel %vm569, %v2668, 0
        %v2733 = vsel %vm569, %v2670, 0
        %v2735 = vsel %vm569, %v2672, 0
        %v2737 = vsel %vm569, %v2674, 0
        %v2739 = vsel %vm569, %v2676, 0
        %v2741 = vsel %vm569, %v2678, 0
        %v2743 = vsel %vm569, %v2680, 0
        %v2745 = vsel %vm569, %v2682, 0
        %v2747 = vsel %vm569, %v2684, 0
        %v2749 = vsel %vm569, %v2686, 0
        %v2751 = vsel %vm569, %v2688, 0
        %v2753 = vsel %vm569, %v2690, 0
        %v2755 = vsel %vm569, %v2692, 0
        %2757 = vmatpush.xpose.msra.mxu0 %v2755
        %2758 = vmatpush.xpose.msra.mxu0 %v2753
        %2759 = vmatpush.xpose.msra.mxu0 %v2751
        %2760 = vmatpush.xpose.msra.mxu0 %v2749
        %2761 = vmatpush.xpose.msra.mxu0 %v2747
        %2762 = vmatpush.xpose.msra.mxu0 %v2745
        %2763 = vmatpush.xpose.msra.mxu0 %v2743
        %2764 = vmatpush.xpose.msra.mxu0 %v2741
        %2765 = vmatpush.xpose.msra.mxu0 %v2739
        %2766 = vmatpush.xpose.msra.mxu0 %v2737
        %2767 = vmatpush.xpose.msra.mxu0 %v2735
        %2768 = vmatpush.xpose.msra.mxu0 %v2733
        %2769 = vmatpush.xpose.msra.mxu0 %v2731
        %2770 = vmatpush.xpose.msra.mxu0 %v2729
        %2771 = vmatpush.xpose.msra.mxu0 %v2727
        %2772 = vmatpush.xpose.msra.mxu0 %v2725
        %2773 = vmatmul.f32.gmra.mxu0 %v2693
        %v2774 = vpop.f32.mrf.mxu0
        %v2775 = vadd.f32 0.0, %v2774
        %2776 = vmatmul.f32.gmra.mxu0 %v2695
        %v2777 = vpop.f32.mrf.mxu0
        %v2778 = vadd.f32 0.0, %v2777
        %2779 = vmatmul.f32.gmra.mxu0 %v2697
        %v2780 = vpop.f32.mrf.mxu0
        %v2781 = vadd.f32 0.0, %v2780
        %2782 = vmatmul.f32.gmra.mxu0 %v2699
        %v2783 = vpop.f32.mrf.mxu0
        %v2784 = vadd.f32 0.0, %v2783
        %2785 = vmatmul.f32.gmra.mxu0 %v2701
        %v2786 = vpop.f32.mrf.mxu0
        %v2787 = vadd.f32 0.0, %v2786
        %2788 = vmatmul.f32.gmra.mxu0 %v2703
        %v2789 = vpop.f32.mrf.mxu0
        %v2790 = vadd.f32 0.0, %v2789
        %2791 = vmatmul.f32.gmra.mxu0 %v2705
        %v2792 = vpop.f32.mrf.mxu0
        %v2793 = vadd.f32 0.0, %v2792
        %2794 = vmatmul.f32.gmra.mxu0 %v2707
        %v2795 = vpop.f32.mrf.mxu0
        %v2796 = vadd.f32 0.0, %v2795
        %2797 = vmatmul.f32.gmra.mxu0 %v2709
        %v2798 = vpop.f32.mrf.mxu0
        %v2799 = vadd.f32 0.0, %v2798
        %2800 = vmatmul.f32.gmra.mxu0 %v2711
        %v2801 = vpop.f32.mrf.mxu0
        %v2802 = vadd.f32 0.0, %v2801
        %2803 = vmatmul.f32.gmra.mxu0 %v2713
        %v2804 = vpop.f32.mrf.mxu0
        %v2805 = vadd.f32 0.0, %v2804
        %2806 = vmatmul.f32.gmra.mxu0 %v2715
        %v2807 = vpop.f32.mrf.mxu0
        %v2808 = vadd.f32 0.0, %v2807
        %2809 = vmatmul.f32.gmra.mxu0 %v2717
        %v2810 = vpop.f32.mrf.mxu0
        %v2811 = vadd.f32 0.0, %v2810
        %2812 = vmatmul.f32.gmra.mxu0 %v2719
        %v2813 = vpop.f32.mrf.mxu0
        %v2814 = vadd.f32 0.0, %v2813
        %2815 = vmatmul.f32.gmra.mxu0 %v2721
        %v2816 = vpop.f32.mrf.mxu0
        %v2817 = vadd.f32 0.0, %v2816
        %2818 = vmatmul.f32.gmra.mxu0 %v2723
        %v2819 = vpop.f32.mrf.mxu0
        %v2820 = vadd.f32 0.0, %v2819
        %2821 = vdwg.mxu0
        %v2822 = vmul.f32 %v2775, 0.17677669
        %v2823 = vmul.f32 %v2778, 0.17677669
        %v2824 = vmul.f32 %v2781, 0.17677669
        %v2825 = vmul.f32 %v2784, 0.17677669
        %v2826 = vmul.f32 %v2787, 0.17677669
        %v2827 = vmul.f32 %v2790, 0.17677669
        %v2828 = vmul.f32 %v2793, 0.17677669
        %v2829 = vmul.f32 %v2796, 0.17677669
        %v2830 = vmul.f32 %v2799, 0.17677669
        %v2831 = vmul.f32 %v2802, 0.17677669
        %v2832 = vmul.f32 %v2805, 0.17677669
        %v2833 = vmul.f32 %v2808, 0.17677669
        %v2834 = vmul.f32 %v2811, 0.17677669
        %v2835 = vmul.f32 %v2814, 0.17677669
        %v2836 = vmul.f32 %v2817, 0.17677669
        %v2837 = vmul.f32 %v2820, 0.17677669
        %v2838 = vadd.f32 %v2822, %v748
        %v2839 = vadd.f32 %v2823, %v748
        %v2840 = vadd.f32 %v2824, %v748
        %v2841 = vadd.f32 %v2825, %v748
        %v2842 = vadd.f32 %v2826, %v748
        %v2843 = vadd.f32 %v2827, %v748
        %v2844 = vadd.f32 %v2828, %v748
        %v2845 = vadd.f32 %v2829, %v748
        %v2846 = vadd.f32 %v2830, %v748
        %v2847 = vadd.f32 %v2831, %v748
        %v2848 = vadd.f32 %v2832, %v748
        %v2849 = vadd.f32 %v2833, %v748
        %v2850 = vadd.f32 %v2834, %v748
        %v2851 = vadd.f32 %v2835, %v748
        %v2852 = vadd.f32 %v2836, %v748
        %v2853 = vadd.f32 %v2837, %v748
        %2854 = vmax.xlane.f32.xlu0 %v2838
        %v2855 = vpop.xlane.xlu0 %2854
        %2856 = vmax.xlane.f32.xlu0 %v2839
        %v2857 = vpop.xlane.xlu0 %2856
        %2858 = vmax.xlane.f32.xlu0 %v2840
        %v2859 = vpop.xlane.xlu0 %2858
        %2860 = vmax.xlane.f32.xlu0 %v2841
        %v2861 = vpop.xlane.xlu0 %2860
        %2862 = vmax.xlane.f32.xlu0 %v2842
        %v2863 = vpop.xlane.xlu0 %2862
        %2864 = vmax.xlane.f32.xlu0 %v2843
        %v2865 = vpop.xlane.xlu0 %2864
        %2866 = vmax.xlane.f32.xlu0 %v2844
        %v2867 = vpop.xlane.xlu0 %2866
        %2868 = vmax.xlane.f32.xlu0 %v2845
        %v2869 = vpop.xlane.xlu0 %2868
        %2870 = vmax.xlane.f32.xlu0 %v2846
        %v2871 = vpop.xlane.xlu0 %2870
        %2872 = vmax.xlane.f32.xlu0 %v2847
        %v2873 = vpop.xlane.xlu0 %2872
        %2874 = vmax.xlane.f32.xlu0 %v2848
        %v2875 = vpop.xlane.xlu0 %2874
        %2876 = vmax.xlane.f32.xlu0 %v2849
        %v2877 = vpop.xlane.xlu0 %2876
        %2878 = vmax.xlane.f32.xlu0 %v2850
        %v2879 = vpop.xlane.xlu0 %2878
        %2880 = vmax.xlane.f32.xlu0 %v2851
        %v2881 = vpop.xlane.xlu0 %2880
        %2882 = vmax.xlane.f32.xlu0 %v2852
        %v2883 = vpop.xlane.xlu0 %2882
        %2884 = vmax.xlane.f32.xlu0 %v2853
        %v2885 = vpop.xlane.xlu0 %2884
        %v2886 = vsub.f32 %v2838, %v2855
        %v2887 = vsub.f32 %v2839, %v2857
        %v2888 = vsub.f32 %v2840, %v2859
        %v2889 = vsub.f32 %v2841, %v2861
        %v2890 = vsub.f32 %v2842, %v2863
        %v2891 = vsub.f32 %v2843, %v2865
        %v2892 = vsub.f32 %v2844, %v2867
        %v2893 = vsub.f32 %v2845, %v2869
        %v2894 = vsub.f32 %v2846, %v2871
        %v2895 = vsub.f32 %v2847, %v2873
        %v2896 = vsub.f32 %v2848, %v2875
        %v2897 = vsub.f32 %v2849, %v2877
        %v2898 = vsub.f32 %v2850, %v2879
        %v2899 = vsub.f32 %v2851, %v2881
        %v2900 = vsub.f32 %v2852, %v2883
        %v2901 = vsub.f32 %v2853, %v2885
        %v2902 = vmul.f32 %v2886, 1.442695
        %v2903 = vpow.pop %v2902
        %v2904 = vmul.f32 %v2887, 1.442695
        %v2905 = vpow.pop %v2904
        %v2906 = vmul.f32 %v2888, 1.442695
        %v2907 = vpow.pop %v2906
        %v2908 = vmul.f32 %v2889, 1.442695
        %v2909 = vpow.pop %v2908
        %v2910 = vmul.f32 %v2890, 1.442695
        %v2911 = vpow.pop %v2910
        %v2912 = vmul.f32 %v2891, 1.442695
        %v2913 = vpow.pop %v2912
        %v2914 = vmul.f32 %v2892, 1.442695
        %v2915 = vpow.pop %v2914
        %v2916 = vmul.f32 %v2893, 1.442695
        %v2917 = vpow.pop %v2916
        %v2918 = vmul.f32 %v2894, 1.442695
        %v2919 = vpow.pop %v2918
        %v2920 = vmul.f32 %v2895, 1.442695
        %v2921 = vpow.pop %v2920
        %v2922 = vmul.f32 %v2896, 1.442695
        %v2923 = vpow.pop %v2922
        %v2924 = vmul.f32 %v2897, 1.442695
        %v2925 = vpow.pop %v2924
        %v2926 = vmul.f32 %v2898, 1.442695
        %v2927 = vpow.pop %v2926
        %v2928 = vmul.f32 %v2899, 1.442695
        %v2929 = vpow.pop %v2928
        %v2930 = vmul.f32 %v2900, 1.442695
        %v2931 = vpow.pop %v2930
        %v2932 = vmul.f32 %v2901, 1.442695
        %v2933 = vpow.pop %v2932
        %2934 = vadd.xlane.f32.xlu0 %v2903
        %v2935 = vpop.xlane.xlu0 %2934
        %2936 = vadd.xlane.f32.xlu0 %v2905
        %v2937 = vpop.xlane.xlu0 %2936
        %2938 = vadd.xlane.f32.xlu0 %v2907
        %v2939 = vpop.xlane.xlu0 %2938
        %2940 = vadd.xlane.f32.xlu0 %v2909
        %v2941 = vpop.xlane.xlu0 %2940
        %2942 = vadd.xlane.f32.xlu0 %v2911
        %v2943 = vpop.xlane.xlu0 %2942
        %2944 = vadd.xlane.f32.xlu0 %v2913
        %v2945 = vpop.xlane.xlu0 %2944
        %2946 = vadd.xlane.f32.xlu0 %v2915
        %v2947 = vpop.xlane.xlu0 %2946
        %2948 = vadd.xlane.f32.xlu0 %v2917
        %v2949 = vpop.xlane.xlu0 %2948
        %2950 = vadd.xlane.f32.xlu0 %v2919
        %v2951 = vpop.xlane.xlu0 %2950
        %2952 = vadd.xlane.f32.xlu0 %v2921
        %v2953 = vpop.xlane.xlu0 %2952
        %2954 = vadd.xlane.f32.xlu0 %v2923
        %v2955 = vpop.xlane.xlu0 %2954
        %2956 = vadd.xlane.f32.xlu0 %v2925
        %v2957 = vpop.xlane.xlu0 %2956
        %2958 = vadd.xlane.f32.xlu0 %v2927
        %v2959 = vpop.xlane.xlu0 %2958
        %2960 = vadd.xlane.f32.xlu0 %v2929
        %v2961 = vpop.xlane.xlu0 %2960
        %2962 = vadd.xlane.f32.xlu0 %v2931
        %v2963 = vpop.xlane.xlu0 %2962
        %2964 = vadd.xlane.f32.xlu0 %v2933
        %v2965 = vpop.xlane.xlu0 %2964
        %v2966 = vrcp.pop %v2935
        %v2967 = vmul.f32 %v2935, %v2966
        %v2968 = vsub.f32 1.0, %v2967
        %v2969 = vmul.f32 %v2966, %v2968
        %v2970 = vadd.f32 %v2966, %v2969
        %vm2971 = vweird.f32 %v2935
        %vm2972 = vweird.f32 %v2966
        %vm2973 = vmor %vm2971, %vm2972
        %v2974 = vsel %vm2973, %v2966, %v2970
        %v2975 = vand.u32 2147483647, %v2935
        %vm2976 = vcmp.eq.f32.partialorder %v2975, 8.507059e+37
        %v2977 = vand.u32 %v2935, 2147483648
        %v2978 = vor.u32 1.1754944e-38, %v2977
        %v2979 = vsel %vm2976, %v2978, %v2974
        %v2980 = vrcp.pop %v2937
        %v2981 = vmul.f32 %v2937, %v2980
        %v2982 = vsub.f32 1.0, %v2981
        %v2983 = vmul.f32 %v2980, %v2982
        %v2984 = vadd.f32 %v2980, %v2983
        %vm2985 = vweird.f32 %v2937
        %vm2986 = vweird.f32 %v2980
        %vm2987 = vmor %vm2985, %vm2986
        %v2988 = vsel %vm2987, %v2980, %v2984
        %v2989 = vand.u32 2147483647, %v2937
        %vm2990 = vcmp.eq.f32.partialorder %v2989, 8.507059e+37
        %v2991 = vand.u32 %v2937, 2147483648
        %v2992 = vor.u32 1.1754944e-38, %v2991
        %v2993 = vsel %vm2990, %v2992, %v2988
        %v2994 = vrcp.pop %v2939
        %v2995 = vmul.f32 %v2939, %v2994
        %v2996 = vsub.f32 1.0, %v2995
        %v2997 = vmul.f32 %v2994, %v2996
        %v2998 = vadd.f32 %v2994, %v2997
        %vm2999 = vweird.f32 %v2939
        %vm3000 = vweird.f32 %v2994
        %vm3001 = vmor %vm2999, %vm3000
        %v3002 = vsel %vm3001, %v2994, %v2998
        %v3003 = vand.u32 2147483647, %v2939
        %vm3004 = vcmp.eq.f32.partialorder %v3003, 8.507059e+37
        %v3005 = vand.u32 %v2939, 2147483648
        %v3006 = vor.u32 1.1754944e-38, %v3005
        %v3007 = vsel %vm3004, %v3006, %v3002
        %v3008 = vrcp.pop %v2941
        %v3009 = vmul.f32 %v2941, %v3008
        %v3010 = vsub.f32 1.0, %v3009
        %v3011 = vmul.f32 %v3008, %v3010
        %v3012 = vadd.f32 %v3008, %v3011
        %vm3013 = vweird.f32 %v2941
        %vm3014 = vweird.f32 %v3008
        %vm3015 = vmor %vm3013, %vm3014
        %v3016 = vsel %vm3015, %v3008, %v3012
        %v3017 = vand.u32 2147483647, %v2941
        %vm3018 = vcmp.eq.f32.partialorder %v3017, 8.507059e+37
        %v3019 = vand.u32 %v2941, 2147483648
        %v3020 = vor.u32 1.1754944e-38, %v3019
        %v3021 = vsel %vm3018, %v3020, %v3016
        %v3022 = vrcp.pop %v2943
        %v3023 = vmul.f32 %v2943, %v3022
        %v3024 = vsub.f32 1.0, %v3023
        %v3025 = vmul.f32 %v3022, %v3024
        %v3026 = vadd.f32 %v3022, %v3025
        %vm3027 = vweird.f32 %v2943
        %vm3028 = vweird.f32 %v3022
        %vm3029 = vmor %vm3027, %vm3028
        %v3030 = vsel %vm3029, %v3022, %v3026
        %v3031 = vand.u32 2147483647, %v2943
        %vm3032 = vcmp.eq.f32.partialorder %v3031, 8.507059e+37
        %v3033 = vand.u32 %v2943, 2147483648
        %v3034 = vor.u32 1.1754944e-38, %v3033
        %v3035 = vsel %vm3032, %v3034, %v3030
        %v3036 = vrcp.pop %v2945
        %v3037 = vmul.f32 %v2945, %v3036
        %v3038 = vsub.f32 1.0, %v3037
        %v3039 = vmul.f32 %v3036, %v3038
        %v3040 = vadd.f32 %v3036, %v3039
        %vm3041 = vweird.f32 %v2945
        %vm3042 = vweird.f32 %v3036
        %vm3043 = vmor %vm3041, %vm3042
        %v3044 = vsel %vm3043, %v3036, %v3040
        %v3045 = vand.u32 2147483647, %v2945
        %vm3046 = vcmp.eq.f32.partialorder %v3045, 8.507059e+37
        %v3047 = vand.u32 %v2945, 2147483648
        %v3048 = vor.u32 1.1754944e-38, %v3047
        %v3049 = vsel %vm3046, %v3048, %v3044
        %v3050 = vrcp.pop %v2947
        %v3051 = vmul.f32 %v2947, %v3050
        %v3052 = vsub.f32 1.0, %v3051
        %v3053 = vmul.f32 %v3050, %v3052
        %v3054 = vadd.f32 %v3050, %v3053
        %vm3055 = vweird.f32 %v2947
        %vm3056 = vweird.f32 %v3050
        %vm3057 = vmor %vm3055, %vm3056
        %v3058 = vsel %vm3057, %v3050, %v3054
        %v3059 = vand.u32 2147483647, %v2947
        %vm3060 = vcmp.eq.f32.partialorder %v3059, 8.507059e+37
        %v3061 = vand.u32 %v2947, 2147483648
        %v3062 = vor.u32 1.1754944e-38, %v3061
        %v3063 = vsel %vm3060, %v3062, %v3058
        %v3064 = vrcp.pop %v2949
        %v3065 = vmul.f32 %v2949, %v3064
        %v3066 = vsub.f32 1.0, %v3065
        %v3067 = vmul.f32 %v3064, %v3066
        %v3068 = vadd.f32 %v3064, %v3067
        %vm3069 = vweird.f32 %v2949
        %vm3070 = vweird.f32 %v3064
        %vm3071 = vmor %vm3069, %vm3070
        %v3072 = vsel %vm3071, %v3064, %v3068
        %v3073 = vand.u32 2147483647, %v2949
        %vm3074 = vcmp.eq.f32.partialorder %v3073, 8.507059e+37
        %v3075 = vand.u32 %v2949, 2147483648
        %v3076 = vor.u32 1.1754944e-38, %v3075
        %v3077 = vsel %vm3074, %v3076, %v3072
        %v3078 = vrcp.pop %v2951
        %v3079 = vmul.f32 %v2951, %v3078
        %v3080 = vsub.f32 1.0, %v3079
        %v3081 = vmul.f32 %v3078, %v3080
        %v3082 = vadd.f32 %v3078, %v3081
        %vm3083 = vweird.f32 %v2951
        %vm3084 = vweird.f32 %v3078
        %vm3085 = vmor %vm3083, %vm3084
        %v3086 = vsel %vm3085, %v3078, %v3082
        %v3087 = vand.u32 2147483647, %v2951
        %vm3088 = vcmp.eq.f32.partialorder %v3087, 8.507059e+37
        %v3089 = vand.u32 %v2951, 2147483648
        %v3090 = vor.u32 1.1754944e-38, %v3089
        %v3091 = vsel %vm3088, %v3090, %v3086
        %v3092 = vrcp.pop %v2953
        %v3093 = vmul.f32 %v2953, %v3092
        %v3094 = vsub.f32 1.0, %v3093
        %v3095 = vmul.f32 %v3092, %v3094
        %v3096 = vadd.f32 %v3092, %v3095
        %vm3097 = vweird.f32 %v2953
        %vm3098 = vweird.f32 %v3092
        %vm3099 = vmor %vm3097, %vm3098
        %v3100 = vsel %vm3099, %v3092, %v3096
        %v3101 = vand.u32 2147483647, %v2953
        %vm3102 = vcmp.eq.f32.partialorder %v3101, 8.507059e+37
        %v3103 = vand.u32 %v2953, 2147483648
        %v3104 = vor.u32 1.1754944e-38, %v3103
        %v3105 = vsel %vm3102, %v3104, %v3100
        %v3106 = vrcp.pop %v2955
        %v3107 = vmul.f32 %v2955, %v3106
        %v3108 = vsub.f32 1.0, %v3107
        %v3109 = vmul.f32 %v3106, %v3108
        %v3110 = vadd.f32 %v3106, %v3109
        %vm3111 = vweird.f32 %v2955
        %vm3112 = vweird.f32 %v3106
        %vm3113 = vmor %vm3111, %vm3112
        %v3114 = vsel %vm3113, %v3106, %v3110
        %v3115 = vand.u32 2147483647, %v2955
        %vm3116 = vcmp.eq.f32.partialorder %v3115, 8.507059e+37
        %v3117 = vand.u32 %v2955, 2147483648
        %v3118 = vor.u32 1.1754944e-38, %v3117
        %v3119 = vsel %vm3116, %v3118, %v3114
        %v3120 = vrcp.pop %v2957
        %v3121 = vmul.f32 %v2957, %v3120
        %v3122 = vsub.f32 1.0, %v3121
        %v3123 = vmul.f32 %v3120, %v3122
        %v3124 = vadd.f32 %v3120, %v3123
        %vm3125 = vweird.f32 %v2957
        %vm3126 = vweird.f32 %v3120
        %vm3127 = vmor %vm3125, %vm3126
        %v3128 = vsel %vm3127, %v3120, %v3124
        %v3129 = vand.u32 2147483647, %v2957
        %vm3130 = vcmp.eq.f32.partialorder %v3129, 8.507059e+37
        %v3131 = vand.u32 %v2957, 2147483648
        %v3132 = vor.u32 1.1754944e-38, %v3131
        %v3133 = vsel %vm3130, %v3132, %v3128
        %v3134 = vrcp.pop %v2959
        %v3135 = vmul.f32 %v2959, %v3134
        %v3136 = vsub.f32 1.0, %v3135
        %v3137 = vmul.f32 %v3134, %v3136
        %v3138 = vadd.f32 %v3134, %v3137
        %vm3139 = vweird.f32 %v2959
        %vm3140 = vweird.f32 %v3134
        %vm3141 = vmor %vm3139, %vm3140
        %v3142 = vsel %vm3141, %v3134, %v3138
        %v3143 = vand.u32 2147483647, %v2959
        %vm3144 = vcmp.eq.f32.partialorder %v3143, 8.507059e+37
        %v3145 = vand.u32 %v2959, 2147483648
        %v3146 = vor.u32 1.1754944e-38, %v3145
        %v3147 = vsel %vm3144, %v3146, %v3142
        %v3148 = vrcp.pop %v2961
        %v3149 = vmul.f32 %v2961, %v3148
        %v3150 = vsub.f32 1.0, %v3149
        %v3151 = vmul.f32 %v3148, %v3150
        %v3152 = vadd.f32 %v3148, %v3151
        %vm3153 = vweird.f32 %v2961
        %vm3154 = vweird.f32 %v3148
        %vm3155 = vmor %vm3153, %vm3154
        %v3156 = vsel %vm3155, %v3148, %v3152
        %v3157 = vand.u32 2147483647, %v2961
        %vm3158 = vcmp.eq.f32.partialorder %v3157, 8.507059e+37
        %v3159 = vand.u32 %v2961, 2147483648
        %v3160 = vor.u32 1.1754944e-38, %v3159
        %v3161 = vsel %vm3158, %v3160, %v3156
        %v3162 = vrcp.pop %v2963
        %v3163 = vmul.f32 %v2963, %v3162
        %v3164 = vsub.f32 1.0, %v3163
        %v3165 = vmul.f32 %v3162, %v3164
        %v3166 = vadd.f32 %v3162, %v3165
        %vm3167 = vweird.f32 %v2963
        %vm3168 = vweird.f32 %v3162
        %vm3169 = vmor %vm3167, %vm3168
        %v3170 = vsel %vm3169, %v3162, %v3166
        %v3171 = vand.u32 2147483647, %v2963
        %vm3172 = vcmp.eq.f32.partialorder %v3171, 8.507059e+37
        %v3173 = vand.u32 %v2963, 2147483648
        %v3174 = vor.u32 1.1754944e-38, %v3173
        %v3175 = vsel %vm3172, %v3174, %v3170
        %v3176 = vrcp.pop %v2965
        %v3177 = vmul.f32 %v2965, %v3176
        %v3178 = vsub.f32 1.0, %v3177
        %v3179 = vmul.f32 %v3176, %v3178
        %v3180 = vadd.f32 %v3176, %v3179
        %vm3181 = vweird.f32 %v2965
        %vm3182 = vweird.f32 %v3176
        %vm3183 = vmor %vm3181, %vm3182
        %v3184 = vsel %vm3183, %v3176, %v3180
        %v3185 = vand.u32 2147483647, %v2965
        %vm3186 = vcmp.eq.f32.partialorder %v3185, 8.507059e+37
        %v3187 = vand.u32 %v2965, 2147483648
        %v3188 = vor.u32 1.1754944e-38, %v3187
        %v3189 = vsel %vm3186, %v3188, %v3184
        %v3190 = vmul.f32 %v2903, %v2979
        %v3191 = vmul.f32 %v2905, %v2993
        %v3192 = vmul.f32 %v2907, %v3007
        %v3193 = vmul.f32 %v2909, %v3021
        %v3194 = vmul.f32 %v2911, %v3035
        %v3195 = vmul.f32 %v2913, %v3049
        %v3196 = vmul.f32 %v2915, %v3063
        %v3197 = vmul.f32 %v2917, %v3077
        %v3198 = vmul.f32 %v2919, %v3091
        %v3199 = vmul.f32 %v2921, %v3105
        %v3200 = vmul.f32 %v2923, %v3119
        %v3201 = vmul.f32 %v2925, %v3133
        %v3202 = vmul.f32 %v2927, %v3147
        %v3203 = vmul.f32 %v2929, %v3161
        %v3204 = vmul.f32 %v2931, %v3175
        %v3205 = vmul.f32 %v2933, %v3189
        %s3206 = scalar_lea.vmem %s297, 384 [#allocation9]
        %3207 = vst [vmem:[%s3206] sm:$0xff] %v3190
        %3208 = vst [vmem:[%s3206 + $0x8] sm:$0xff] %v3191
        %3209 = vst [vmem:[%s3206 + $0x10] sm:$0xff] %v3192
        %3210 = vst [vmem:[%s3206 + $0x18] sm:$0xff] %v3193
        %3211 = vst [vmem:[%s3206 + $0x20] sm:$0xff] %v3194
        %3212 = vst [vmem:[%s3206 + $0x28] sm:$0xff] %v3195
        %3213 = vst [vmem:[%s3206 + $0x30] sm:$0xff] %v3196
        %3214 = vst [vmem:[%s3206 + $0x38] sm:$0xff] %v3197
        %3215 = vst [vmem:[%s3206 + $0x40] sm:$0xff] %v3198
        %3216 = vst [vmem:[%s3206 + $0x48] sm:$0xff] %v3199
        %3217 = vst [vmem:[%s3206 + $0x50] sm:$0xff] %v3200
        %3218 = vst [vmem:[%s3206 + $0x58] sm:$0xff] %v3201
        %3219 = vst [vmem:[%s3206 + $0x60] sm:$0xff] %v3202
        %3220 = vst [vmem:[%s3206 + $0x68] sm:$0xff] %v3203
        %3221 = vst [vmem:[%s3206 + $0x70] sm:$0xff] %v3204
        %3222 = vst [vmem:[%s3206 + $0x78] sm:$0xff] %v3205
        %3223 = vrot.lane.b32.xlu0 %v521, 32
        %v3224 = vpop.permute.xlu0 %3223
        %3225 = vrot.lane.b32.xlu0 %v524, 32
        %v3226 = vpop.permute.xlu0 %3225
        %3227 = vrot.lane.b32.xlu0 %v527, 32
        %v3228 = vpop.permute.xlu0 %3227
        %3229 = vrot.lane.b32.xlu0 %v530, 32
        %v3230 = vpop.permute.xlu0 %3229
        %3231 = vrot.lane.b32.xlu0 %v533, 32
        %v3232 = vpop.permute.xlu0 %3231
        %3233 = vrot.lane.b32.xlu0 %v536, 32
        %v3234 = vpop.permute.xlu0 %3233
        %3235 = vrot.lane.b32.xlu0 %v539, 32
        %v3236 = vpop.permute.xlu0 %3235
        %3237 = vrot.lane.b32.xlu0 %v542, 32
        %v3238 = vpop.permute.xlu0 %3237
        %3239 = vrot.lane.b32.xlu0 %v545, 32
        %v3240 = vpop.permute.xlu0 %3239
        %3241 = vrot.lane.b32.xlu0 %v548, 32
        %v3242 = vpop.permute.xlu0 %3241
        %3243 = vrot.lane.b32.xlu0 %v551, 32
        %v3244 = vpop.permute.xlu0 %3243
        %3245 = vrot.lane.b32.xlu0 %v554, 32
        %v3246 = vpop.permute.xlu0 %3245
        %3247 = vrot.lane.b32.xlu0 %v557, 32
        %v3248 = vpop.permute.xlu0 %3247
        %3249 = vrot.lane.b32.xlu0 %v560, 32
        %v3250 = vpop.permute.xlu0 %3249
        %3251 = vrot.lane.b32.xlu0 %v563, 32
        %v3252 = vpop.permute.xlu0 %3251
        %3253 = vrot.lane.b32.xlu0 %v566, 32
        %v3254 = vpop.permute.xlu0 %3253
        %3271 = vmatpush.msra.mxu0 %v3254
        %3272 = vmatpush.msra.mxu0 %v3252
        %3273 = vmatpush.msra.mxu0 %v3250
        %3274 = vmatpush.msra.mxu0 %v3248
        %3275 = vmatpush.msra.mxu0 %v3246
        %3276 = vmatpush.msra.mxu0 %v3244
        %3277 = vmatpush.msra.mxu0 %v3242
        %3278 = vmatpush.msra.mxu0 %v3240
        %3279 = vmatpush.msra.mxu0 %v3238
        %3280 = vmatpush.msra.mxu0 %v3236
        %3281 = vmatpush.msra.mxu0 %v3234
        %3282 = vmatpush.msra.mxu0 %v3232
        %3283 = vmatpush.msra.mxu0 %v3230
        %3284 = vmatpush.msra.mxu0 %v3228
        %3285 = vmatpush.msra.mxu0 %v3226
        %3286 = vmatpush.msra.mxu0 %v3224
        %3287 = vmatmul.f32.gmra.mxu0 %v3190
        %v3288 = vpop.f32.mrf.mxu0
        %v3289 = vadd.f32 0.0, %v3288
        %3290 = vmatmul.f32.gmra.mxu0 %v3191
        %v3291 = vpop.f32.mrf.mxu0
        %v3292 = vadd.f32 0.0, %v3291
        %3293 = vmatmul.f32.gmra.mxu0 %v3192
        %v3294 = vpop.f32.mrf.mxu0
        %v3295 = vadd.f32 0.0, %v3294
        %3296 = vmatmul.f32.gmra.mxu0 %v3193
        %v3297 = vpop.f32.mrf.mxu0
        %v3298 = vadd.f32 0.0, %v3297
        %3299 = vmatmul.f32.gmra.mxu0 %v3194
        %v3300 = vpop.f32.mrf.mxu0
        %v3301 = vadd.f32 0.0, %v3300
        %3302 = vmatmul.f32.gmra.mxu0 %v3195
        %v3303 = vpop.f32.mrf.mxu0
        %v3304 = vadd.f32 0.0, %v3303
        %3305 = vmatmul.f32.gmra.mxu0 %v3196
        %v3306 = vpop.f32.mrf.mxu0
        %v3307 = vadd.f32 0.0, %v3306
        %3308 = vmatmul.f32.gmra.mxu0 %v3197
        %v3309 = vpop.f32.mrf.mxu0
        %v3310 = vadd.f32 0.0, %v3309
        %3311 = vmatmul.f32.gmra.mxu0 %v3198
        %v3312 = vpop.f32.mrf.mxu0
        %v3313 = vadd.f32 0.0, %v3312
        %3314 = vmatmul.f32.gmra.mxu0 %v3199
        %v3315 = vpop.f32.mrf.mxu0
        %v3316 = vadd.f32 0.0, %v3315
        %3317 = vmatmul.f32.gmra.mxu0 %v3200
        %v3318 = vpop.f32.mrf.mxu0
        %v3319 = vadd.f32 0.0, %v3318
        %3320 = vmatmul.f32.gmra.mxu0 %v3201
        %v3321 = vpop.f32.mrf.mxu0
        %v3322 = vadd.f32 0.0, %v3321
        %3323 = vmatmul.f32.gmra.mxu0 %v3202
        %v3324 = vpop.f32.mrf.mxu0
        %v3325 = vadd.f32 0.0, %v3324
        %3326 = vmatmul.f32.gmra.mxu0 %v3203
        %v3327 = vpop.f32.mrf.mxu0
        %v3328 = vadd.f32 0.0, %v3327
        %3329 = vmatmul.f32.gmra.mxu0 %v3204
        %v3330 = vpop.f32.mrf.mxu0
        %v3331 = vadd.f32 0.0, %v3330
        %3332 = vmatmul.f32.gmra.mxu0 %v3205
        %v3333 = vpop.f32.mrf.mxu0
        %v3334 = vadd.f32 0.0, %v3333
        %3335 = vdwg.mxu0
        %3352 = vrot.lane.b32.xlu0 %v1875, 32
        %v3353 = vpop.permute.xlu0 %3352
        %3354 = vrot.lane.b32.xlu0 %v1878, 32
        %v3355 = vpop.permute.xlu0 %3354
        %3356 = vrot.lane.b32.xlu0 %v1881, 32
        %v3357 = vpop.permute.xlu0 %3356
        %3358 = vrot.lane.b32.xlu0 %v1884, 32
        %v3359 = vpop.permute.xlu0 %3358
        %3360 = vrot.lane.b32.xlu0 %v1887, 32
        %v3361 = vpop.permute.xlu0 %3360
        %3362 = vrot.lane.b32.xlu0 %v1890, 32
        %v3363 = vpop.permute.xlu0 %3362
        %3364 = vrot.lane.b32.xlu0 %v1893, 32
        %v3365 = vpop.permute.xlu0 %3364
        %3366 = vrot.lane.b32.xlu0 %v1896, 32
        %v3367 = vpop.permute.xlu0 %3366
        %3368 = vrot.lane.b32.xlu0 %v1899, 32
        %v3369 = vpop.permute.xlu0 %3368
        %3370 = vrot.lane.b32.xlu0 %v1902, 32
        %v3371 = vpop.permute.xlu0 %3370
        %3372 = vrot.lane.b32.xlu0 %v1905, 32
        %v3373 = vpop.permute.xlu0 %3372
        %3374 = vrot.lane.b32.xlu0 %v1908, 32
        %v3375 = vpop.permute.xlu0 %3374
        %3376 = vrot.lane.b32.xlu0 %v1911, 32
        %v3377 = vpop.permute.xlu0 %3376
        %3378 = vrot.lane.b32.xlu0 %v1914, 32
        %v3379 = vpop.permute.xlu0 %3378
        %3380 = vrot.lane.b32.xlu0 %v1917, 32
        %v3381 = vpop.permute.xlu0 %3380
        %3382 = vrot.lane.b32.xlu0 %v1920, 32
        %v3383 = vpop.permute.xlu0 %3382
        %3416 = vrot.lane.b32.xlu0 %v2582, 64
        %v3417 = vpop.permute.xlu0 %3416
        %3418 = vrot.lane.b32.xlu0 %v2585, 64
        %v3419 = vpop.permute.xlu0 %3418
        %3420 = vrot.lane.b32.xlu0 %v2588, 64
        %v3421 = vpop.permute.xlu0 %3420
        %3422 = vrot.lane.b32.xlu0 %v2591, 64
        %v3423 = vpop.permute.xlu0 %3422
        %3424 = vrot.lane.b32.xlu0 %v2594, 64
        %v3425 = vpop.permute.xlu0 %3424
        %3426 = vrot.lane.b32.xlu0 %v2597, 64
        %v3427 = vpop.permute.xlu0 %3426
        %3428 = vrot.lane.b32.xlu0 %v2600, 64
        %v3429 = vpop.permute.xlu0 %3428
        %3430 = vrot.lane.b32.xlu0 %v2603, 64
        %v3431 = vpop.permute.xlu0 %3430
        %3432 = vrot.lane.b32.xlu0 %v2606, 64
        %v3433 = vpop.permute.xlu0 %3432
        %3434 = vrot.lane.b32.xlu0 %v2609, 64
        %v3435 = vpop.permute.xlu0 %3434
        %3436 = vrot.lane.b32.xlu0 %v2612, 64
        %v3437 = vpop.permute.xlu0 %3436
        %3438 = vrot.lane.b32.xlu0 %v2615, 64
        %v3439 = vpop.permute.xlu0 %3438
        %3440 = vrot.lane.b32.xlu0 %v2618, 64
        %v3441 = vpop.permute.xlu0 %3440
        %3442 = vrot.lane.b32.xlu0 %v2621, 64
        %v3443 = vpop.permute.xlu0 %3442
        %3444 = vrot.lane.b32.xlu0 %v2624, 64
        %v3445 = vpop.permute.xlu0 %3444
        %3446 = vrot.lane.b32.xlu0 %v2627, 64
        %v3447 = vpop.permute.xlu0 %3446
        %3480 = vrot.lane.b32.xlu0 %v3289, 96
        %v3481 = vpop.permute.xlu0 %3480
        %3482 = vrot.lane.b32.xlu0 %v3292, 96
        %v3483 = vpop.permute.xlu0 %3482
        %3484 = vrot.lane.b32.xlu0 %v3295, 96
        %v3485 = vpop.permute.xlu0 %3484
        %3486 = vrot.lane.b32.xlu0 %v3298, 96
        %v3487 = vpop.permute.xlu0 %3486
        %3488 = vrot.lane.b32.xlu0 %v3301, 96
        %v3489 = vpop.permute.xlu0 %3488
        %3490 = vrot.lane.b32.xlu0 %v3304, 96
        %v3491 = vpop.permute.xlu0 %3490
        %3492 = vrot.lane.b32.xlu0 %v3307, 96
        %v3493 = vpop.permute.xlu0 %3492
        %3494 = vrot.lane.b32.xlu0 %v3310, 96
        %v3495 = vpop.permute.xlu0 %3494
        %3496 = vrot.lane.b32.xlu0 %v3313, 96
        %v3497 = vpop.permute.xlu0 %3496
        %3498 = vrot.lane.b32.xlu0 %v3316, 96
        %v3499 = vpop.permute.xlu0 %3498
        %3500 = vrot.lane.b32.xlu0 %v3319, 96
        %v3501 = vpop.permute.xlu0 %3500
        %3502 = vrot.lane.b32.xlu0 %v3322, 96
        %v3503 = vpop.permute.xlu0 %3502
        %3504 = vrot.lane.b32.xlu0 %v3325, 96
        %v3505 = vpop.permute.xlu0 %3504
        %3506 = vrot.lane.b32.xlu0 %v3328, 96
        %v3507 = vpop.permute.xlu0 %3506
        %3508 = vrot.lane.b32.xlu0 %v3331, 96
        %v3509 = vpop.permute.xlu0 %3508
        %3510 = vrot.lane.b32.xlu0 %v3334, 96
        %v3511 = vpop.permute.xlu0 %3510
        %v3528 = vsel %vm569, %v1152, %v3353
        %v3529 = vsel %vm569, %v1155, %v3355
        %v3530 = vsel %vm569, %v1158, %v3357
        %v3531 = vsel %vm569, %v1161, %v3359
        %v3532 = vsel %vm569, %v1164, %v3361
        %v3533 = vsel %vm569, %v1167, %v3363
        %v3534 = vsel %vm569, %v1170, %v3365
        %v3535 = vsel %vm569, %v1173, %v3367
        %v3536 = vsel %vm569, %v1176, %v3369
        %v3537 = vsel %vm569, %v1179, %v3371
        %v3538 = vsel %vm569, %v1182, %v3373
        %v3539 = vsel %vm569, %v1185, %v3375
        %v3540 = vsel %vm569, %v1188, %v3377
        %v3541 = vsel %vm569, %v1191, %v3379
        %v3542 = vsel %vm569, %v1194, %v3381
        %v3543 = vsel %vm569, %v1197, %v3383
        %vm3544 = vcmask 523264
        %v3545 = vsel %vm3544, %v3528, %v3417
        %v3546 = vsel %vm3544, %v3529, %v3419
        %v3547 = vsel %vm3544, %v3530, %v3421
        %v3548 = vsel %vm3544, %v3531, %v3423
        %v3549 = vsel %vm3544, %v3532, %v3425
        %v3550 = vsel %vm3544, %v3533, %v3427
        %v3551 = vsel %vm3544, %v3534, %v3429
        %v3552 = vsel %vm3544, %v3535, %v3431
        %v3553 = vsel %vm3544, %v3536, %v3433
        %v3554 = vsel %vm3544, %v3537, %v3435
        %v3555 = vsel %vm3544, %v3538, %v3437
        %v3556 = vsel %vm3544, %v3539, %v3439
        %v3557 = vsel %vm3544, %v3540, %v3441
        %v3558 = vsel %vm3544, %v3541, %v3443
        %v3559 = vsel %vm3544, %v3542, %v3445
        %v3560 = vsel %vm3544, %v3543, %v3447
        %vm3561 = vcmask 785408
        %v3562 = vsel %vm3561, %v3545, %v3481
        %v3563 = vsel %vm3561, %v3546, %v3483
        %v3564 = vsel %vm3561, %v3547, %v3485
        %v3565 = vsel %vm3561, %v3548, %v3487
        %v3566 = vsel %vm3561, %v3549, %v3489
        %v3567 = vsel %vm3561, %v3550, %v3491
        %v3568 = vsel %vm3561, %v3551, %v3493
        %v3569 = vsel %vm3561, %v3552, %v3495
        %v3570 = vsel %vm3561, %v3553, %v3497
        %v3571 = vsel %vm3561, %v3554, %v3499
        %v3572 = vsel %vm3561, %v3555, %v3501
        %v3573 = vsel %vm3561, %v3556, %v3503
        %v3574 = vsel %vm3561, %v3557, %v3505
        %v3575 = vsel %vm3561, %v3558, %v3507
        %v3576 = vsel %vm3561, %v3559, %v3509
        %v3577 = vsel %vm3561, %v3560, %v3511
        %3578 = vst [vmem:[%s290] sm:$0xff] %v3562
        %3579 = vst [vmem:[%s290 + $0x8] sm:$0xff] %v3563
        %3580 = vst [vmem:[%s290 + $0x10] sm:$0xff] %v3564
        %3581 = vst [vmem:[%s290 + $0x18] sm:$0xff] %v3565
        %3582 = vst [vmem:[%s290 + $0x20] sm:$0xff] %v3566
        %3583 = vst [vmem:[%s290 + $0x28] sm:$0xff] %v3567
        %3584 = vst [vmem:[%s290 + $0x30] sm:$0xff] %v3568
        %3585 = vst [vmem:[%s290 + $0x38] sm:$0xff] %v3569
        %3586 = vst [vmem:[%s290 + $0x40] sm:$0xff] %v3570
        %3587 = vst [vmem:[%s290 + $0x48] sm:$0xff] %v3571
        %3588 = vst [vmem:[%s290 + $0x50] sm:$0xff] %v3572
        %3589 = vst [vmem:[%s290 + $0x58] sm:$0xff] %v3573
        %3590 = vst [vmem:[%s290 + $0x60] sm:$0xff] %v3574
        %3591 = vst [vmem:[%s290 + $0x68] sm:$0xff] %v3575
        %3592 = vst [vmem:[%s290 + $0x70] sm:$0xff] %v3576
        %3593 = vst [vmem:[%s290 + $0x78] sm:$0xff] %v3577
        %s3594 = sand.u32 %s129, 1
        %s3595 = scalar_lea.sflag [#allocation4], %s3594
        %s3596 = sand.u32 %s129, 1
        %s3597 = smul.addr %s3596, 128
        %s3598 = scalar_lea.vmem [#allocation8], %s3597
        %s3599 = sand.u32 %s155, 1
        %s3600 = scalar_lea.sflag [#allocation10], %s3599
        %s3601 = sand.u32 %s155, 1
        %s3602 = smul.addr %s3601, 512
        %s3603 = scalar_lea.vmem [#allocation9], %s3602
        // Predicated region
        $region49: #{tpu_custom_call.1} parent=35 // pred_check
          %p3604 = pneg %p139
        $region50: #{tpu_custom_call.1} parent=35 // pred_check_branch
          %3606 = sbr.rel (%p3604) target = $region52
        $region51: #{tpu_custom_call.1} parent=35 // pred_region
          %3608 = vsyncadd %s3595, 0
          %s3609 = smul.addr %s27, 16
          %s3610 = smul.addr %s3609, 8
          %s3611 = scalar_lea.hbm %s4, %s3610
          %s3612 = sshll.u32 %s3598, 4
          %s3613 = int_to_ptr.vmem [resolvable:$true] %s3612
          %s3614 = sshll.u32 %s3611, 4
          %s3615 = int_to_ptr.hbm [resolvable:$true] %s3614
          %3620 = dma.vmem_to_hbm [thread:$0]  %s3613, 2048, %s3615, %s3595, 128, 128, 8
        $region52: #{tpu_custom_call.1} parent=35 // pred_fallthru
          _
        // Predicated region
        $region53: #{tpu_custom_call.1} parent=35 // pred_check
          %p3621 = pneg %p165
        $region54: #{tpu_custom_call.1} parent=35 // pred_check_branch
          %3623 = sbr.rel (%p3621) target = $region56
        $region55: #{tpu_custom_call.1} parent=35 // pred_region
          %3625 = vsyncadd %s3600, 0
          %s3626 = smul.addr %s27, 64
          %s3627 = smul.addr %s3626, 8
          %s3628 = scalar_lea.hbm %s5, %s3627
          %s3629 = sshll.u32 %s3603, 4
          %s3630 = int_to_ptr.vmem [resolvable:$true] %s3629
          %s3631 = sshll.u32 %s3628, 4
          %s3632 = int_to_ptr.hbm [resolvable:$true] %s3631
          %3637 = dma.vmem_to_hbm [thread:$0]  %s3630, 8192, %s3632, %s3600, 128, 128, 8
        $region56: #{tpu_custom_call.1} parent=35 // pred_fallthru
          _
      $region36: #{tpu_custom_call.1} parent=5 // pred_fallthru
        _
      %p3638 = scmp.le.s32.totalorder 2, %s22
      // Predicated region
      $region57: #{tpu_custom_call.1} parent=5 // pred_check
        %p3639 = pneg %p3638
      $region58: #{tpu_custom_call.1} parent=5 // pred_check_branch
        %3641 = sbr.rel (%p3639) target = $region60
      $region59: #{tpu_custom_call.1} parent=5 // pred_region
        %s3642 = ssub.s32 %s22, 2
        // Predicated region
        $region61: #{tpu_custom_call.1} parent=59 // pred_check
          %p3643 = pneg %p145
        $region62: #{tpu_custom_call.1} parent=59 // pred_check_branch
          %3645 = sbr.rel (%p3643) target = $region64
        $region63: #{tpu_custom_call.1} parent=59 // pred_region
          %s3646 = sand.u32 %s130, 1
          %s3647 = scalar_lea.sflag [#allocation4], %s3646
          %s3648 = sand.u32 %s130, 1
          %s3649 = smul.addr %s3648, 128
          %s3650 = scalar_lea.vmem [#allocation8], %s3649
          %3652 = dma.done %s3647, 2048
        $region64: #{tpu_custom_call.1} parent=59 // pred_fallthru
          _
        // Predicated region
        $region65: #{tpu_custom_call.1} parent=59 // pred_check
          %p3653 = pneg %p171
        $region66: #{tpu_custom_call.1} parent=59 // pred_check_branch
          %3655 = sbr.rel (%p3653) target = $region68
        $region67: #{tpu_custom_call.1} parent=59 // pred_region
          %s3656 = sand.u32 %s156, 1
          %s3657 = scalar_lea.sflag [#allocation10], %s3656
          %s3658 = sand.u32 %s156, 1
          %s3659 = smul.addr %s3658, 512
          %s3660 = scalar_lea.vmem [#allocation9], %s3659
          %3662 = dma.done %s3657, 8192
        $region68: #{tpu_custom_call.1} parent=59 // pred_fallthru
          _
      $region60: #{tpu_custom_call.1} parent=5 // pred_fallthru
        _
    $region6: #{tpu_custom_call.1} parent=1 // loop_footer
      %s26 = sadd.s32 1, %s22
    $region7: #{tpu_custom_call.1} parent=1 // loop_footer_branch
      %21 = sbr.rel target = $region3
    $region8: #{tpu_custom_call.1} parent=1 // loop_exit
      _
    %3663 = vsyncpa [#allocation3], 1
    %s3664 = scalar_lea.sflag [#allocation3], 1
    %3665 = vsyncpa %s3664, 1
    %3666 = vsyncpa [#allocation6], 1
    %3667 = vsyncpa [#allocation4], 1
    %s3668 = scalar_lea.sflag [#allocation4], 1
    %3669 = vsyncpa %s3668, 1
    %3670 = vsyncpa [#allocation10], 1
    %s3671 = scalar_lea.sflag [#allocation10], 1
    %3672 = vsyncpa %s3671, 1

</llo_original>
